<compile_context>
chip_gen: v6e
topology: v6e:2x2x1
jax: 0.10.0
libtpu: 0.0.40
codegen_flags: <defaults>
</compile_context>

<pallas_src>
import jax
import jax.numpy as jnp
from jax.experimental import pallas as pl
from jax.experimental.pallas import tpu as pltpu


# ----------------------------- Pallas kernel ------------------------------

def _im2col_5x5_same(y_flat):
    """y_flat: (56, C) = 7x8 row-major spatial map whose column 7 is zero.
    Returns (56, 25*C) patches for a 5x5 'same' conv (pad=2), K order (kh,kw,C)."""
    c = y_flat.shape[-1]
    dt = y_flat.dtype
    blk = y_flat.reshape(7, 8, c)                          # layout-trivial (8 % 8 == 0)
    zc = jnp.zeros((7, 2, c), dt)
    wide = jnp.concatenate([zc, blk, zc], axis=1)          # (7, 12, c) zero left/right pad
    zr = jnp.zeros((2, 12, c), dt)
    padded = jnp.concatenate([zr, wide, zr], axis=0)       # (11, 12, c) zero top/bottom pad
    taps = []
    for i in range(5):
        for j in range(5):
            taps.append(padded[i:i + 7, j:j + 8, :].reshape(56, c))
    return jnp.concatenate(taps, axis=-1)                  # (56, 25*c)


def _fused_kernel(p1_ref, g_ref, w1_ref, b1_ref, w2_ref, b2_ref, w3_ref, b3_ref,
                  o_ref):
    f32 = jnp.float32
    bf16 = jnp.bfloat16

    # ---- fine1: Conv2d(3, 63->64, k=9, s=2) as one MXU matmul + bias + ReLU.
    # p1 rows are (h, w) with the 16 w-slots permuted to [even | odd]; w=14,15 pad.
    y1 = jnp.dot(p1_ref[0], w1_ref[...], preferred_element_type=f32)
    y1 = jnp.maximum(y1 + b1_ref[...], 0.0)                        # (224, 64)

    # ---- MaxPool2d(2): row pairs (2a, 2a+1) are adjacent 16-row blocks; column
    # pairs sit at sublane offsets (p, p+8) thanks to the [even|odd] permutation.
    y1 = y1.reshape(7, 2, 16, 64)                                  # layout-trivial
    rmax = jnp.maximum(y1[:, 0], y1[:, 1])                         # (7, 16, 64)
    pooled = jnp.maximum(rmax[:, 0:8, :], rmax[:, 8:16, :])        # (7, 8, 64)
    col = jax.lax.broadcasted_iota(jnp.int32, (7, 8, 64), 1)
    pooled = jnp.where(col < 7, pooled, 0.0)                       # zero the pad column

    # ---- torch.cat((x, global), dim=1): global map was pre-placed in lane 63
    # of a zero slab; fine1's lane 63 is guaranteed zero (zero weight column).
    y = pooled.reshape(56, 64) + g_ref[0]                          # (56, 64) f32

    # ---- fine2: Conv2d(64, 64, k=5, pad=2) + ReLU, im2col built in VMEM.
    p2 = _im2col_5x5_same(y).astype(bf16)                          # (56, 1600)
    y2 = jnp.dot(p2, w2_ref[...], preferred_element_type=f32)
    y2 = jnp.maximum(y2 + b2_ref[...], 0.0)                        # (56, 64)
    rows = jax.lax.broadcasted_iota(jnp.int32, (56, 64), 0)
    y2 = jnp.where(rows % 8 < 7, y2, 0.0)                          # zero the pad column

    # ---- fine3: Conv2d(64, 1, k=5, pad=2); weights padded to 128 lanes so the
    # MXU result and the output store stay lane-dense (column 0 is the depth).
    p3 = _im2col_5x5_same(y2).astype(bf16)                         # (56, 1600)
    y3 = jnp.dot(p3, w3_ref[...], preferred_element_type=f32) + b3_ref[...]
    o_ref[0] = y3.astype(o_ref.dtype)                              # (56, 128)


# ------------------------------- wrapper -----------------------------------

def init_params(key):
    """Deterministic kaiming-normal (relu) conv weights (HWIO), zero biases."""
    k1, k2, k3 = jax.random.split(key, 3)
    w1 = jax.random.normal(k1, (9, 9, 3, 63), jnp.float32) * jnp.sqrt(2.0 / (9 * 9 * 3))
    b1 = jnp.zeros((63,), jnp.float32)
    w2 = jax.random.normal(k2, (5, 5, 64, 64), jnp.float32) * jnp.sqrt(2.0 / (5 * 5 * 64))
    b2 = jnp.zeros((64,), jnp.float32)
    w3 = jax.random.normal(k3, (5, 5, 64, 1), jnp.float32) * jnp.sqrt(2.0 / (5 * 5 * 64))
    b3 = jnp.zeros((1,), jnp.float32)
    return dict(w1=w1, b1=b1, w2=w2, b2=b2, w3=w3, b3=b3)


def local_fine_net_forward(params, x_nchw, global_nchw):
    f32, bf16 = jnp.float32, jnp.bfloat16
    x = jnp.transpose(x_nchw, (0, 2, 3, 1)).astype(f32)            # (N, 36, 36, 3)
    g = jnp.transpose(global_nchw, (0, 2, 3, 1)).astype(f32)       # (N, 7, 7, 1)
    n = x.shape[0]
    assert x.shape[1:] == (36, 36, 3) and g.shape[1:] == (7, 7, 1), (
        "fused kernel is specialized to the reference LocalFineNet geometry")

    # fine1 stride-2 im2col (pure gather of the raw input, done by XLA): rows
    # become (14 x 16) with the 16 w-slots permuted to [even | odd] columns so
    # the in-kernel 2x2 pool is two aligned sublane slices; K padded 243 -> 256.
    taps = []
    for i in range(9):
        for j in range(9):
            taps.append(x[:, i:i + 27:2, j:j + 27:2, :])           # (N, 14, 14, 3)
    p1 = jnp.stack(taps, axis=3).reshape(n, 14, 14, 9 * 9 * 3)     # K order (kh, kw, C)
    p1 = jnp.pad(p1, ((0, 0), (0, 0), (0, 2), (0, 13)))            # (N, 14, 16, 256)
    perm = jnp.array([0, 2, 4, 6, 8, 10, 12, 14,
                      1, 3, 5, 7, 9, 11, 13, 15], jnp.int32)
    p1 = jnp.take(p1, perm, axis=2).reshape(n, 224, 256).astype(bf16)

    # global map -> lane 63 of a zero (N, 7x8, 64) slab (this *is* the concat).
    gpad = jnp.pad(g, ((0, 0), (0, 0), (0, 1), (63, 0))).reshape(n, 56, 64)

    # weights: HWIO -> (K, N) with lane-dense N (63->64, 1->128), bf16 for MXU.
    w1 = jnp.pad(params["w1"].reshape(243, 63), ((0, 13), (0, 1))).astype(bf16)
    b1 = jnp.pad(params["b1"], (0, 1)).reshape(1, 64).astype(f32)
    w2 = params["w2"].reshape(1600, 64).astype(bf16)
    b2 = params["b2"].reshape(1, 64).astype(f32)
    w3 = jnp.pad(params["w3"].reshape(1600, 1), ((0, 0), (0, 127))).astype(bf16)
    b3 = jnp.pad(params["b3"].reshape(1, 1), ((0, 0), (0, 127))).astype(f32)

    out_full = pl.pallas_call(
        _fused_kernel,
        out_shape=jax.ShapeDtypeStruct((n, 56, 128), f32),
        grid=(n,),
        in_specs=[
            pl.BlockSpec((1, 224, 256), lambda b: (b, 0, 0)),      # fine1 patches
            pl.BlockSpec((1, 56, 64), lambda b: (b, 0, 0)),        # global map (lane 63)
            pl.BlockSpec((256, 64), lambda b: (0, 0)),             # w1 (resident)
            pl.BlockSpec((1, 64), lambda b: (0, 0)),               # b1
            pl.BlockSpec((1600, 64), lambda b: (0, 0)),            # w2
            pl.BlockSpec((1, 64), lambda b: (0, 0)),               # b2
            pl.BlockSpec((1600, 128), lambda b: (0, 0)),           # w3 (padded lanes)
            pl.BlockSpec((1, 128), lambda b: (0, 0)),              # b3
        ],
        out_specs=pl.BlockSpec((1, 56, 128), lambda b: (b, 0, 0)),
        compiler_params=pltpu.CompilerParams(
            dimension_semantics=("parallel",)),                    # v7x: use both TCs
    )(p1, gpad, w1, b1, w2, b2, w3, b3)

    depth = out_full[:, :, 0].reshape(n, 7, 8)[:, :, :7]           # drop pad column
    return depth[:, None, :, :]                                    # (N, 1, 7, 7)


# --------------------------- pure-JAX reference ----------------------------

def _ref_forward(params, x_nchw, g_nchw):
    dn = ("NCHW", "HWIO", "NCHW")
    y = jax.lax.conv_general_dilated(x_nchw, params["w1"], (2, 2), "VALID",
                                     dimension_numbers=dn)
    y = jax.nn.relu(y + params["b1"].reshape(1, -1, 1, 1))
    y = jax.lax.reduce_window(y, -jnp.inf, jax.lax.max,
                              (1, 1, 2, 2), (1, 1, 2, 2), "VALID")
    y = jnp.concatenate([y, g_nchw], axis=1)
    y = jax.lax.conv_general_dilated(y, params["w2"], (1, 1), [(2, 2), (2, 2)],
                                     dimension_numbers=dn)
    y = jax.nn.relu(y + params["b2"].reshape(1, -1, 1, 1))
    y = jax.lax.conv_general_dilated(y, params["w3"], (1, 1), [(2, 2), (2, 2)],
                                     dimension_numbers=dn)
    return y + params["b3"].reshape(1, -1, 1, 1)


if __name__ == "__main__":
    key = jax.random.PRNGKey(0)
    kp, kx, kg = jax.random.split(key, 3)
    params = init_params(kp)

    # x: (N, 3, 36, 36) -> fine1 conv 14x14 -> pool 7x7; global map: (N, 1, 7, 7)
    x = jax.random.normal(kx, (2, 3, 36, 36), jnp.float32)
    g = jax.random.normal(kg, (2, 1, 7, 7), jnp.float32)

    out = jax.jit(local_fine_net_forward)(params, x, g)
    out = jax.block_until_ready(out)
    assert out.shape == (2, 1, 7, 7), out.shape
    assert bool(jnp.all(jnp.isfinite(out)))

    # loose tolerance: MXU operands are bf16 (accumulation stays f32)
    ref = jax.jit(_ref_forward)(params, x, g)
    assert bool(jnp.allclose(out, ref, rtol=1e-1, atol=1e-1)), (
        float(jnp.max(jnp.abs(out - ref))))
    print("KERNEL_OK")
</pallas_src>

<mosaic_0001>
module attributes {stable_mosaic.version = 11 : i64} {
  func.func @_fused_kernel(%arg0: i32, %arg1: memref<1x224x256xbf16, #tpu.memory_space<vmem>>, %arg2: memref<1x56x64xf32, #tpu.memory_space<vmem>>, %arg3: memref<256x64xbf16, #tpu.memory_space<vmem>>, %arg4: memref<1x64xf32, #tpu.memory_space<vmem>>, %arg5: memref<1600x64xbf16, #tpu.memory_space<vmem>>, %arg6: memref<1x64xf32, #tpu.memory_space<vmem>>, %arg7: memref<1600x128xbf16, #tpu.memory_space<vmem>>, %arg8: memref<1x128xf32, #tpu.memory_space<vmem>>, %arg9: memref<1x56x128xf32, #tpu.memory_space<vmem>>) attributes {dimension_semantics = [#tpu.dimension_semantics<parallel>], iteration_bounds = array<i64: 2>, scalar_prefetch = 0 : i64, scratch_operands = 0 : i64, tpu.core_type = #tpu.core_type<tc>, window_params = [{transform_indices = @transform_0, window_bounds = array<i64: 1, 224, 256>}, {transform_indices = @transform_1, window_bounds = array<i64: 1, 56, 64>}, {pipeline_mode = #tpu.pipeline_mode<synchronous>, transform_indices = @transform_2, window_bounds = array<i64: 256, 64>}, {pipeline_mode = #tpu.pipeline_mode<synchronous>, transform_indices = @transform_3, window_bounds = array<i64: 1, 64>}, {pipeline_mode = #tpu.pipeline_mode<synchronous>, transform_indices = @transform_4, window_bounds = array<i64: 1600, 64>}, {pipeline_mode = #tpu.pipeline_mode<synchronous>, transform_indices = @transform_5, window_bounds = array<i64: 1, 64>}, {pipeline_mode = #tpu.pipeline_mode<synchronous>, transform_indices = @transform_6, window_bounds = array<i64: 1600, 128>}, {pipeline_mode = #tpu.pipeline_mode<synchronous>, transform_indices = @transform_7, window_bounds = array<i64: 1, 128>}, {transform_indices = @transform_8, window_bounds = array<i64: 1, 56, 128>}]} {
    %c0 = arith.constant 0 : index
    %c0_0 = arith.constant 0 : index
    %c0_1 = arith.constant 0 : index
    %0 = vector.load %arg1[%c0, %c0_0, %c0_1] : memref<1x224x256xbf16, #tpu.memory_space<vmem>>, vector<1x224x256xbf16>
    %1 = vector.shape_cast %0 : vector<1x224x256xbf16> to vector<224x256xbf16>
    %c0_2 = arith.constant 0 : index
    %c0_3 = arith.constant 0 : index
    %2 = vector.load %arg3[%c0_2, %c0_3] : memref<256x64xbf16, #tpu.memory_space<vmem>>, vector<256x64xbf16>
    %cst = arith.constant dense<0.000000e+00> : vector<224x64xf32>
    %3 = tpu.matmul %1, %2, %cst {dimension_numbers = #tpu.dot_dimension_numbers<[1], [0], [0], [1], [0, 0, 1, 1], [], []>} : vector<224x256xbf16>, vector<256x64xbf16>, vector<224x64xf32> -> vector<224x64xf32>
    %c0_4 = arith.constant 0 : index
    %c0_5 = arith.constant 0 : index
    %4 = vector.load %arg4[%c0_4, %c0_5] : memref<1x64xf32, #tpu.memory_space<vmem>>, vector<1x64xf32>
    %5 = vector.broadcast %4 : vector<1x64xf32> to vector<224x64xf32>
    %6 = arith.addf %3, %5 : vector<224x64xf32>
    %cst_6 = arith.constant 0.000000e+00 : f32
    %7 = vector.broadcast %cst_6 : f32 to vector<224x64xf32>
    %8 = arith.maximumf %6, %7 : vector<224x64xf32>
    %9 = vector.shape_cast %8 : vector<224x64xf32> to vector<7x2x16x64xf32>
    %10 = vector.extract_strided_slice %9 {offsets = [0, 0, 0, 0], sizes = [7, 1, 16, 64], strides = [1, 1, 1, 1]} : vector<7x2x16x64xf32> to vector<7x1x16x64xf32>
    %11 = vector.shape_cast %10 : vector<7x1x16x64xf32> to vector<7x16x64xf32>
    %12 = vector.extract_strided_slice %9 {offsets = [0, 1, 0, 0], sizes = [7, 1, 16, 64], strides = [1, 1, 1, 1]} : vector<7x2x16x64xf32> to vector<7x1x16x64xf32>
    %13 = vector.shape_cast %12 : vector<7x1x16x64xf32> to vector<7x16x64xf32>
    %14 = arith.maximumf %11, %13 : vector<7x16x64xf32>
    %15 = vector.extract_strided_slice %14 {offsets = [0, 0, 0], sizes = [7, 8, 64], strides = [1, 1, 1]} : vector<7x16x64xf32> to vector<7x8x64xf32>
    %16 = vector.extract_strided_slice %14 {offsets = [0, 8, 0], sizes = [7, 8, 64], strides = [1, 1, 1]} : vector<7x16x64xf32> to vector<7x8x64xf32>
    %17 = arith.maximumf %15, %16 : vector<7x8x64xf32>
    %18 = tpu.iota {dimensions = array<i32: 1>} : vector<7x8x64xi32>
    %c7_i32 = arith.constant 7 : i32
    %19 = vector.broadcast %c7_i32 : i32 to vector<7x8x64xi32>
    %20 = arith.cmpi slt, %18, %19 : vector<7x8x64xi32>
    %cst_7 = arith.constant 0.000000e+00 : f32
    %21 = vector.broadcast %cst_7 : f32 to vector<7x8x64xf32>
    %22 = arith.select %20, %17, %21 : vector<7x8x64xi1>, vector<7x8x64xf32>
    %23 = vector.shape_cast %22 : vector<7x8x64xf32> to vector<56x64xf32>
    %c0_8 = arith.constant 0 : index
    %c0_9 = arith.constant 0 : index
    %c0_10 = arith.constant 0 : index
    %24 = vector.load %arg2[%c0_8, %c0_9, %c0_10] : memref<1x56x64xf32, #tpu.memory_space<vmem>>, vector<1x56x64xf32>
    %25 = vector.shape_cast %24 : vector<1x56x64xf32> to vector<56x64xf32>
    %26 = arith.addf %23, %25 : vector<56x64xf32>
    %27 = vector.shape_cast %26 : vector<56x64xf32> to vector<7x8x64xf32>
    %cst_11 = arith.constant 0.000000e+00 : f32
    %28 = vector.broadcast %cst_11 : f32 to vector<7x2x64xf32>
    %29 = tpu.concatenate %28, %27, %28 in 1 : vector<7x2x64xf32>, vector<7x8x64xf32>, vector<7x2x64xf32> -> vector<7x12x64xf32>
    %cst_12 = arith.constant 0.000000e+00 : f32
    %30 = vector.broadcast %cst_12 : f32 to vector<2x12x64xf32>
    %31 = tpu.concatenate %30, %29, %30 in 0 : vector<2x12x64xf32>, vector<7x12x64xf32>, vector<2x12x64xf32> -> vector<11x12x64xf32>
    %32 = vector.extract_strided_slice %31 {offsets = [0, 0, 0], sizes = [7, 8, 64], strides = [1, 1, 1]} : vector<11x12x64xf32> to vector<7x8x64xf32>
    %33 = vector.shape_cast %32 : vector<7x8x64xf32> to vector<56x64xf32>
    %34 = vector.extract_strided_slice %31 {offsets = [0, 1, 0], sizes = [7, 8, 64], strides = [1, 1, 1]} : vector<11x12x64xf32> to vector<7x8x64xf32>
    %35 = vector.shape_cast %34 : vector<7x8x64xf32> to vector<56x64xf32>
    %36 = vector.extract_strided_slice %31 {offsets = [0, 2, 0], sizes = [7, 8, 64], strides = [1, 1, 1]} : vector<11x12x64xf32> to vector<7x8x64xf32>
    %37 = vector.shape_cast %36 : vector<7x8x64xf32> to vector<56x64xf32>
    %38 = vector.extract_strided_slice %31 {offsets = [0, 3, 0], sizes = [7, 8, 64], strides = [1, 1, 1]} : vector<11x12x64xf32> to vector<7x8x64xf32>
    %39 = vector.shape_cast %38 : vector<7x8x64xf32> to vector<56x64xf32>
    %40 = vector.extract_strided_slice %31 {offsets = [0, 4, 0], sizes = [7, 8, 64], strides = [1, 1, 1]} : vector<11x12x64xf32> to vector<7x8x64xf32>
    %41 = vector.shape_cast %40 : vector<7x8x64xf32> to vector<56x64xf32>
    %42 = vector.extract_strided_slice %31 {offsets = [1, 0, 0], sizes = [7, 8, 64], strides = [1, 1, 1]} : vector<11x12x64xf32> to vector<7x8x64xf32>
    %43 = vector.shape_cast %42 : vector<7x8x64xf32> to vector<56x64xf32>
    %44 = vector.extract_strided_slice %31 {offsets = [1, 1, 0], sizes = [7, 8, 64], strides = [1, 1, 1]} : vector<11x12x64xf32> to vector<7x8x64xf32>
    %45 = vector.shape_cast %44 : vector<7x8x64xf32> to vector<56x64xf32>
    %46 = vector.extract_strided_slice %31 {offsets = [1, 2, 0], sizes = [7, 8, 64], strides = [1, 1, 1]} : vector<11x12x64xf32> to vector<7x8x64xf32>
    %47 = vector.shape_cast %46 : vector<7x8x64xf32> to vector<56x64xf32>
    %48 = vector.extract_strided_slice %31 {offsets = [1, 3, 0], sizes = [7, 8, 64], strides = [1, 1, 1]} : vector<11x12x64xf32> to vector<7x8x64xf32>
    %49 = vector.shape_cast %48 : vector<7x8x64xf32> to vector<56x64xf32>
    %50 = vector.extract_strided_slice %31 {offsets = [1, 4, 0], sizes = [7, 8, 64], strides = [1, 1, 1]} : vector<11x12x64xf32> to vector<7x8x64xf32>
    %51 = vector.shape_cast %50 : vector<7x8x64xf32> to vector<56x64xf32>
    %52 = vector.extract_strided_slice %31 {offsets = [2, 0, 0], sizes = [7, 8, 64], strides = [1, 1, 1]} : vector<11x12x64xf32> to vector<7x8x64xf32>
    %53 = vector.shape_cast %52 : vector<7x8x64xf32> to vector<56x64xf32>
    %54 = vector.extract_strided_slice %31 {offsets = [2, 1, 0], sizes = [7, 8, 64], strides = [1, 1, 1]} : vector<11x12x64xf32> to vector<7x8x64xf32>
    %55 = vector.shape_cast %54 : vector<7x8x64xf32> to vector<56x64xf32>
    %56 = vector.extract_strided_slice %31 {offsets = [2, 2, 0], sizes = [7, 8, 64], strides = [1, 1, 1]} : vector<11x12x64xf32> to vector<7x8x64xf32>
    %57 = vector.shape_cast %56 : vector<7x8x64xf32> to vector<56x64xf32>
    %58 = vector.extract_strided_slice %31 {offsets = [2, 3, 0], sizes = [7, 8, 64], strides = [1, 1, 1]} : vector<11x12x64xf32> to vector<7x8x64xf32>
    %59 = vector.shape_cast %58 : vector<7x8x64xf32> to vector<56x64xf32>
    %60 = vector.extract_strided_slice %31 {offsets = [2, 4, 0], sizes = [7, 8, 64], strides = [1, 1, 1]} : vector<11x12x64xf32> to vector<7x8x64xf32>
    %61 = vector.shape_cast %60 : vector<7x8x64xf32> to vector<56x64xf32>
    %62 = vector.extract_strided_slice %31 {offsets = [3, 0, 0], sizes = [7, 8, 64], strides = [1, 1, 1]} : vector<11x12x64xf32> to vector<7x8x64xf32>
    %63 = vector.shape_cast %62 : vector<7x8x64xf32> to vector<56x64xf32>
    %64 = vector.extract_strided_slice %31 {offsets = [3, 1, 0], sizes = [7, 8, 64], strides = [1, 1, 1]} : vector<11x12x64xf32> to vector<7x8x64xf32>
    %65 = vector.shape_cast %64 : vector<7x8x64xf32> to vector<56x64xf32>
    %66 = vector.extract_strided_slice %31 {offsets = [3, 2, 0], sizes = [7, 8, 64], strides = [1, 1, 1]} : vector<11x12x64xf32> to vector<7x8x64xf32>
    %67 = vector.shape_cast %66 : vector<7x8x64xf32> to vector<56x64xf32>
    %68 = vector.extract_strided_slice %31 {offsets = [3, 3, 0], sizes = [7, 8, 64], strides = [1, 1, 1]} : vector<11x12x64xf32> to vector<7x8x64xf32>
    %69 = vector.shape_cast %68 : vector<7x8x64xf32> to vector<56x64xf32>
    %70 = vector.extract_strided_slice %31 {offsets = [3, 4, 0], sizes = [7, 8, 64], strides = [1, 1, 1]} : vector<11x12x64xf32> to vector<7x8x64xf32>
    %71 = vector.shape_cast %70 : vector<7x8x64xf32> to vector<56x64xf32>
    %72 = vector.extract_strided_slice %31 {offsets = [4, 0, 0], sizes = [7, 8, 64], strides = [1, 1, 1]} : vector<11x12x64xf32> to vector<7x8x64xf32>
    %73 = vector.shape_cast %72 : vector<7x8x64xf32> to vector<56x64xf32>
    %74 = vector.extract_strided_slice %31 {offsets = [4, 1, 0], sizes = [7, 8, 64], strides = [1, 1, 1]} : vector<11x12x64xf32> to vector<7x8x64xf32>
    %75 = vector.shape_cast %74 : vector<7x8x64xf32> to vector<56x64xf32>
    %76 = vector.extract_strided_slice %31 {offsets = [4, 2, 0], sizes = [7, 8, 64], strides = [1, 1, 1]} : vector<11x12x64xf32> to vector<7x8x64xf32>
    %77 = vector.shape_cast %76 : vector<7x8x64xf32> to vector<56x64xf32>
    %78 = vector.extract_strided_slice %31 {offsets = [4, 3, 0], sizes = [7, 8, 64], strides = [1, 1, 1]} : vector<11x12x64xf32> to vector<7x8x64xf32>
    %79 = vector.shape_cast %78 : vector<7x8x64xf32> to vector<56x64xf32>
    %80 = vector.extract_strided_slice %31 {offsets = [4, 4, 0], sizes = [7, 8, 64], strides = [1, 1, 1]} : vector<11x12x64xf32> to vector<7x8x64xf32>
    %81 = vector.shape_cast %80 : vector<7x8x64xf32> to vector<56x64xf32>
    %82 = tpu.concatenate %33, %35, %37, %39, %41, %43, %45, %47, %49, %51, %53, %55, %57, %59, %61, %63 in 1 : vector<56x64xf32>, vector<56x64xf32>, vector<56x64xf32>, vector<56x64xf32>, vector<56x64xf32>, vector<56x64xf32>, vector<56x64xf32>, vector<56x64xf32>, vector<56x64xf32>, vector<56x64xf32>, vector<56x64xf32>, vector<56x64xf32>, vector<56x64xf32>, vector<56x64xf32>, vector<56x64xf32>, vector<56x64xf32> -> vector<56x1024xf32>
    %83 = tpu.concatenate %65, %67, %69, %71, %73, %75, %77, %79, %81 in 1 : vector<56x64xf32>, vector<56x64xf32>, vector<56x64xf32>, vector<56x64xf32>, vector<56x64xf32>, vector<56x64xf32>, vector<56x64xf32>, vector<56x64xf32>, vector<56x64xf32> -> vector<56x576xf32>
    %84 = tpu.concatenate %82, %83 in 1 : vector<56x1024xf32>, vector<56x576xf32> -> vector<56x1600xf32>
    %85 = arith.truncf %84 : vector<56x1600xf32> to vector<56x1600xbf16>
    %c0_13 = arith.constant 0 : index
    %c0_14 = arith.constant 0 : index
    %86 = vector.load %arg5[%c0_13, %c0_14] : memref<1600x64xbf16, #tpu.memory_space<vmem>>, vector<1600x64xbf16>
    %cst_15 = arith.constant dense<0.000000e+00> : vector<56x64xf32>
    %87 = tpu.matmul %85, %86, %cst_15 {dimension_numbers = #tpu.dot_dimension_numbers<[1], [0], [0], [1], [0, 0, 1, 1], [], []>} : vector<56x1600xbf16>, vector<1600x64xbf16>, vector<56x64xf32> -> vector<56x64xf32>
    %c0_16 = arith.constant 0 : index
    %c0_17 = arith.constant 0 : index
    %88 = vector.load %arg6[%c0_16, %c0_17] : memref<1x64xf32, #tpu.memory_space<vmem>>, vector<1x64xf32>
    %89 = vector.broadcast %88 : vector<1x64xf32> to vector<56x64xf32>
    %90 = arith.addf %87, %89 : vector<56x64xf32>
    %cst_18 = arith.constant 0.000000e+00 : f32
    %91 = vector.broadcast %cst_18 : f32 to vector<56x64xf32>
    %92 = arith.maximumf %90, %91 : vector<56x64xf32>
    %93 = tpu.iota {dimensions = array<i32: 0>} : vector<56x64xi32>
    %c8_i32 = arith.constant 8 : i32
    %c0_i32 = arith.constant 0 : i32
    %94 = arith.cmpi eq, %c8_i32, %c0_i32 : i32
    %c1_i32 = arith.constant 1 : i32
    %95 = arith.select %94, %c1_i32, %c8_i32 : i32
    %96 = vector.broadcast %95 : i32 to vector<56x64xi32>
    %97 = arith.remsi %93, %96 : vector<56x64xi32>
    %c0_i32_19 = arith.constant 0 : i32
    %98 = vector.broadcast %c0_i32_19 : i32 to vector<56x64xi32>
    %99 = arith.cmpi ne, %97, %98 : vector<56x64xi32>
    %c0_i32_20 = arith.constant 0 : i32
    %100 = vector.broadcast %c0_i32_20 : i32 to vector<56x64xi32>
    %101 = arith.cmpi slt, %97, %100 : vector<56x64xi32>
    %c0_i32_21 = arith.constant 0 : i32
    %102 = arith.cmpi slt, %95, %c0_i32_21 : i32
    %103 = vector.broadcast %102 : i1 to vector<56x64xi1>
    %104 = vector.broadcast %103 : vector<56x64xi1> to vector<56x64xi1>
    %105 = arith.xori %101, %104 : vector<56x64xi1>
    %106 = arith.andi %105, %99 : vector<56x64xi1>
    %107 = vector.broadcast %95 : i32 to vector<56x64xi32>
    %108 = arith.addi %97, %107 : vector<56x64xi32>
    %109 = arith.select %106, %108, %97 : vector<56x64xi1>, vector<56x64xi32>
    %c7_i32_22 = arith.constant 7 : i32
    %110 = vector.broadcast %c7_i32_22 : i32 to vector<56x64xi32>
    %111 = arith.cmpi slt, %109, %110 : vector<56x64xi32>
    %cst_23 = arith.constant 0.000000e+00 : f32
    %112 = vector.broadcast %cst_23 : f32 to vector<56x64xf32>
    %113 = arith.select %111, %92, %112 : vector<56x64xi1>, vector<56x64xf32>
    %114 = vector.shape_cast %113 : vector<56x64xf32> to vector<7x8x64xf32>
    %cst_24 = arith.constant 0.000000e+00 : f32
    %115 = vector.broadcast %cst_24 : f32 to vector<7x2x64xf32>
    %116 = tpu.concatenate %115, %114, %115 in 1 : vector<7x2x64xf32>, vector<7x8x64xf32>, vector<7x2x64xf32> -> vector<7x12x64xf32>
    %cst_25 = arith.constant 0.000000e+00 : f32
    %117 = vector.broadcast %cst_25 : f32 to vector<2x12x64xf32>
    %118 = tpu.concatenate %117, %116, %117 in 0 : vector<2x12x64xf32>, vector<7x12x64xf32>, vector<2x12x64xf32> -> vector<11x12x64xf32>
    %119 = vector.extract_strided_slice %118 {offsets = [0, 0, 0], sizes = [7, 8, 64], strides = [1, 1, 1]} : vector<11x12x64xf32> to vector<7x8x64xf32>
    %120 = vector.shape_cast %119 : vector<7x8x64xf32> to vector<56x64xf32>
    %121 = vector.extract_strided_slice %118 {offsets = [0, 1, 0], sizes = [7, 8, 64], strides = [1, 1, 1]} : vector<11x12x64xf32> to vector<7x8x64xf32>
    %122 = vector.shape_cast %121 : vector<7x8x64xf32> to vector<56x64xf32>
    %123 = vector.extract_strided_slice %118 {offsets = [0, 2, 0], sizes = [7, 8, 64], strides = [1, 1, 1]} : vector<11x12x64xf32> to vector<7x8x64xf32>
    %124 = vector.shape_cast %123 : vector<7x8x64xf32> to vector<56x64xf32>
    %125 = vector.extract_strided_slice %118 {offsets = [0, 3, 0], sizes = [7, 8, 64], strides = [1, 1, 1]} : vector<11x12x64xf32> to vector<7x8x64xf32>
    %126 = vector.shape_cast %125 : vector<7x8x64xf32> to vector<56x64xf32>
    %127 = vector.extract_strided_slice %118 {offsets = [0, 4, 0], sizes = [7, 8, 64], strides = [1, 1, 1]} : vector<11x12x64xf32> to vector<7x8x64xf32>
    %128 = vector.shape_cast %127 : vector<7x8x64xf32> to vector<56x64xf32>
    %129 = vector.extract_strided_slice %118 {offsets = [1, 0, 0], sizes = [7, 8, 64], strides = [1, 1, 1]} : vector<11x12x64xf32> to vector<7x8x64xf32>
    %130 = vector.shape_cast %129 : vector<7x8x64xf32> to vector<56x64xf32>
    %131 = vector.extract_strided_slice %118 {offsets = [1, 1, 0], sizes = [7, 8, 64], strides = [1, 1, 1]} : vector<11x12x64xf32> to vector<7x8x64xf32>
    %132 = vector.shape_cast %131 : vector<7x8x64xf32> to vector<56x64xf32>
    %133 = vector.extract_strided_slice %118 {offsets = [1, 2, 0], sizes = [7, 8, 64], strides = [1, 1, 1]} : vector<11x12x64xf32> to vector<7x8x64xf32>
    %134 = vector.shape_cast %133 : vector<7x8x64xf32> to vector<56x64xf32>
    %135 = vector.extract_strided_slice %118 {offsets = [1, 3, 0], sizes = [7, 8, 64], strides = [1, 1, 1]} : vector<11x12x64xf32> to vector<7x8x64xf32>
    %136 = vector.shape_cast %135 : vector<7x8x64xf32> to vector<56x64xf32>
    %137 = vector.extract_strided_slice %118 {offsets = [1, 4, 0], sizes = [7, 8, 64], strides = [1, 1, 1]} : vector<11x12x64xf32> to vector<7x8x64xf32>
    %138 = vector.shape_cast %137 : vector<7x8x64xf32> to vector<56x64xf32>
    %139 = vector.extract_strided_slice %118 {offsets = [2, 0, 0], sizes = [7, 8, 64], strides = [1, 1, 1]} : vector<11x12x64xf32> to vector<7x8x64xf32>
    %140 = vector.shape_cast %139 : vector<7x8x64xf32> to vector<56x64xf32>
    %141 = vector.extract_strided_slice %118 {offsets = [2, 1, 0], sizes = [7, 8, 64], strides = [1, 1, 1]} : vector<11x12x64xf32> to vector<7x8x64xf32>
    %142 = vector.shape_cast %141 : vector<7x8x64xf32> to vector<56x64xf32>
    %143 = vector.extract_strided_slice %118 {offsets = [2, 2, 0], sizes = [7, 8, 64], strides = [1, 1, 1]} : vector<11x12x64xf32> to vector<7x8x64xf32>
    %144 = vector.shape_cast %143 : vector<7x8x64xf32> to vector<56x64xf32>
    %145 = vector.extract_strided_slice %118 {offsets = [2, 3, 0], sizes = [7, 8, 64], strides = [1, 1, 1]} : vector<11x12x64xf32> to vector<7x8x64xf32>
    %146 = vector.shape_cast %145 : vector<7x8x64xf32> to vector<56x64xf32>
    %147 = vector.extract_strided_slice %118 {offsets = [2, 4, 0], sizes = [7, 8, 64], strides = [1, 1, 1]} : vector<11x12x64xf32> to vector<7x8x64xf32>
    %148 = vector.shape_cast %147 : vector<7x8x64xf32> to vector<56x64xf32>
    %149 = vector.extract_strided_slice %118 {offsets = [3, 0, 0], sizes = [7, 8, 64], strides = [1, 1, 1]} : vector<11x12x64xf32> to vector<7x8x64xf32>
    %150 = vector.shape_cast %149 : vector<7x8x64xf32> to vector<56x64xf32>
    %151 = vector.extract_strided_slice %118 {offsets = [3, 1, 0], sizes = [7, 8, 64], strides = [1, 1, 1]} : vector<11x12x64xf32> to vector<7x8x64xf32>
    %152 = vector.shape_cast %151 : vector<7x8x64xf32> to vector<56x64xf32>
    %153 = vector.extract_strided_slice %118 {offsets = [3, 2, 0], sizes = [7, 8, 64], strides = [1, 1, 1]} : vector<11x12x64xf32> to vector<7x8x64xf32>
    %154 = vector.shape_cast %153 : vector<7x8x64xf32> to vector<56x64xf32>
    %155 = vector.extract_strided_slice %118 {offsets = [3, 3, 0], sizes = [7, 8, 64], strides = [1, 1, 1]} : vector<11x12x64xf32> to vector<7x8x64xf32>
    %156 = vector.shape_cast %155 : vector<7x8x64xf32> to vector<56x64xf32>
    %157 = vector.extract_strided_slice %118 {offsets = [3, 4, 0], sizes = [7, 8, 64], strides = [1, 1, 1]} : vector<11x12x64xf32> to vector<7x8x64xf32>
    %158 = vector.shape_cast %157 : vector<7x8x64xf32> to vector<56x64xf32>
    %159 = vector.extract_strided_slice %118 {offsets = [4, 0, 0], sizes = [7, 8, 64], strides = [1, 1, 1]} : vector<11x12x64xf32> to vector<7x8x64xf32>
    %160 = vector.shape_cast %159 : vector<7x8x64xf32> to vector<56x64xf32>
    %161 = vector.extract_strided_slice %118 {offsets = [4, 1, 0], sizes = [7, 8, 64], strides = [1, 1, 1]} : vector<11x12x64xf32> to vector<7x8x64xf32>
    %162 = vector.shape_cast %161 : vector<7x8x64xf32> to vector<56x64xf32>
    %163 = vector.extract_strided_slice %118 {offsets = [4, 2, 0], sizes = [7, 8, 64], strides = [1, 1, 1]} : vector<11x12x64xf32> to vector<7x8x64xf32>
    %164 = vector.shape_cast %163 : vector<7x8x64xf32> to vector<56x64xf32>
    %165 = vector.extract_strided_slice %118 {offsets = [4, 3, 0], sizes = [7, 8, 64], strides = [1, 1, 1]} : vector<11x12x64xf32> to vector<7x8x64xf32>
    %166 = vector.shape_cast %165 : vector<7x8x64xf32> to vector<56x64xf32>
    %167 = vector.extract_strided_slice %118 {offsets = [4, 4, 0], sizes = [7, 8, 64], strides = [1, 1, 1]} : vector<11x12x64xf32> to vector<7x8x64xf32>
    %168 = vector.shape_cast %167 : vector<7x8x64xf32> to vector<56x64xf32>
    %169 = tpu.concatenate %120, %122, %124, %126, %128, %130, %132, %134, %136, %138, %140, %142, %144, %146, %148, %150 in 1 : vector<56x64xf32>, vector<56x64xf32>, vector<56x64xf32>, vector<56x64xf32>, vector<56x64xf32>, vector<56x64xf32>, vector<56x64xf32>, vector<56x64xf32>, vector<56x64xf32>, vector<56x64xf32>, vector<56x64xf32>, vector<56x64xf32>, vector<56x64xf32>, vector<56x64xf32>, vector<56x64xf32>, vector<56x64xf32> -> vector<56x1024xf32>
    %170 = tpu.concatenate %152, %154, %156, %158, %160, %162, %164, %166, %168 in 1 : vector<56x64xf32>, vector<56x64xf32>, vector<56x64xf32>, vector<56x64xf32>, vector<56x64xf32>, vector<56x64xf32>, vector<56x64xf32>, vector<56x64xf32>, vector<56x64xf32> -> vector<56x576xf32>
    %171 = tpu.concatenate %169, %170 in 1 : vector<56x1024xf32>, vector<56x576xf32> -> vector<56x1600xf32>
    %172 = arith.truncf %171 : vector<56x1600xf32> to vector<56x1600xbf16>
    %c0_26 = arith.constant 0 : index
    %c0_27 = arith.constant 0 : index
    %173 = vector.load %arg7[%c0_26, %c0_27] : memref<1600x128xbf16, #tpu.memory_space<vmem>>, vector<1600x128xbf16>
    %cst_28 = arith.constant dense<0.000000e+00> : vector<56x128xf32>
    %174 = tpu.matmul %172, %173, %cst_28 {dimension_numbers = #tpu.dot_dimension_numbers<[1], [0], [0], [1], [0, 0, 1, 1], [], []>} : vector<56x1600xbf16>, vector<1600x128xbf16>, vector<56x128xf32> -> vector<56x128xf32>
    %c0_29 = arith.constant 0 : index
    %c0_30 = arith.constant 0 : index
    %175 = vector.load %arg8[%c0_29, %c0_30] : memref<1x128xf32, #tpu.memory_space<vmem>>, vector<1x128xf32>
    %176 = vector.broadcast %175 : vector<1x128xf32> to vector<56x128xf32>
    %177 = arith.addf %174, %176 : vector<56x128xf32>
    %c0_31 = arith.constant 0 : index
    %c0_32 = arith.constant 0 : index
    %c0_33 = arith.constant 0 : index
    %178 = vector.load %arg9[%c0_31, %c0_32, %c0_33] : memref<1x56x128xf32, #tpu.memory_space<vmem>>, vector<1x56x128xf32>
    %179 = vector.shape_cast %178 : vector<1x56x128xf32> to vector<56x128xf32>
    %180 = vector.shape_cast %177 : vector<56x128xf32> to vector<1x56x128xf32>
    tpu.vector_store %arg9[%c0_31, %c0_32, %c0_33], %180 {strides = array<i32>} : memref<1x56x128xf32, #tpu.memory_space<vmem>>, vector<1x56x128xf32>,
    return
  }
  func.func @transform_0(%arg0: i32) -> (i32, i32, i32) {
    %c0_i32 = arith.constant 0 : i32
    %c0_i32_0 = arith.constant 0 : i32
    %c0_i32_1 = arith.constant 0 : i32
    return %arg0, %c0_i32, %c0_i32_0 : i32, i32, i32
  }
  func.func @transform_1(%arg0: i32) -> (i32, i32, i32) {
    %c0_i32 = arith.constant 0 : i32
    %c0_i32_0 = arith.constant 0 : i32
    %c0_i32_1 = arith.constant 0 : i32
    return %arg0, %c0_i32, %c0_i32_0 : i32, i32, i32
  }
  func.func @transform_2(%arg0: i32) -> (i32, i32) {
    %c0_i32 = arith.constant 0 : i32
    %c0_i32_0 = arith.constant 0 : i32
    %c0_i32_1 = arith.constant 0 : i32
    return %c0_i32, %c0_i32_0 : i32, i32
  }
  func.func @transform_3(%arg0: i32) -> (i32, i32) {
    %c0_i32 = arith.constant 0 : i32
    %c0_i32_0 = arith.constant 0 : i32
    %c0_i32_1 = arith.constant 0 : i32
    return %c0_i32, %c0_i32_0 : i32, i32
  }
  func.func @transform_4(%arg0: i32) -> (i32, i32) {
    %c0_i32 = arith.constant 0 : i32
    %c0_i32_0 = arith.constant 0 : i32
    %c0_i32_1 = arith.constant 0 : i32
    return %c0_i32, %c0_i32_0 : i32, i32
  }
  func.func @transform_5(%arg0: i32) -> (i32, i32) {
    %c0_i32 = arith.constant 0 : i32
    %c0_i32_0 = arith.constant 0 : i32
    %c0_i32_1 = arith.constant 0 : i32
    return %c0_i32, %c0_i32_0 : i32, i32
  }
  func.func @transform_6(%arg0: i32) -> (i32, i32) {
    %c0_i32 = arith.constant 0 : i32
    %c0_i32_0 = arith.constant 0 : i32
    %c0_i32_1 = arith.constant 0 : i32
    return %c0_i32, %c0_i32_0 : i32, i32
  }
  func.func @transform_7(%arg0: i32) -> (i32, i32) {
    %c0_i32 = arith.constant 0 : i32
    %c0_i32_0 = arith.constant 0 : i32
    %c0_i32_1 = arith.constant 0 : i32
    return %c0_i32, %c0_i32_0 : i32, i32
  }
  func.func @transform_8(%arg0: i32) -> (i32, i32, i32) {
    %c0_i32 = arith.constant 0 : i32
    %c0_i32_0 = arith.constant 0 : i32
    %c0_i32_1 = arith.constant 0 : i32
    return %arg0, %c0_i32, %c0_i32_0 : i32, i32, i32
  }
}

</mosaic_0001>

<llo_original>
// kernel: squeeze.1
$region0: #{squeeze.1}
  %s0 = inlined_call_operand.vmem [shape: f32[2,56], index: 0, kind: input, shape index: {}]
  %s1 = inlined_call_operand.vmem [shape: f32[2,7,8], index: 1, kind: output, shape index: {}]
  $region1: #{squeeze.1} parent=0
    #allocation0 [shape = 'u8[4096]{0}', space=vmem, size = 0x1000, scoped, tag = 'scoped mem for input reshape']
    %s3 = sshll.u32 1, 2
    %s4 = ssub.s32 %s3, 1
    %v5 = vld [vmem:[%s0] sm:%s4]
    %6 = vst [vmem:[#allocation0] sm:%s4] %v5
    %v7 = vld [vmem:[#allocation0] sm:$0x3]
    %vm8 = vcmask 64512
    %9 = vst.msk [vmem:[%s1] ss:$8 sm:$0x3] %vm8, %v7
    %v10 = vld [vmem:[#allocation0] sm:$0x3]
    %11 = vrot.lane.b32.xlu0 %v10, 120
    %v12 = vpop.permute.xlu0 %11
    %vm13 = vcmask 64512
    %s14 = scalar_lea.vmem %s1, 1
    %15 = vst.msk [vmem:[%s14] ss:$8 sm:$0x3] %vm13, %v12
    %v16 = vld [vmem:[#allocation0] sm:$0x3]
    %17 = vrot.lane.b32.xlu0 %v16, 112
    %v18 = vpop.permute.xlu0 %17
    %vm19 = vcmask 64512
    %s20 = scalar_lea.vmem %s1, 2
    %21 = vst.msk [vmem:[%s20] ss:$8 sm:$0x3] %vm19, %v18
    %v22 = vld [vmem:[#allocation0] sm:$0x3]
    %23 = vrot.lane.b32.xlu0 %v22, 104
    %v24 = vpop.permute.xlu0 %23
    %vm25 = vcmask 64512
    %s26 = scalar_lea.vmem %s1, 3
    %27 = vst.msk [vmem:[%s26] ss:$8 sm:$0x3] %vm25, %v24
    %v28 = vld [vmem:[#allocation0] sm:$0x3]
    %29 = vrot.lane.b32.xlu0 %v28, 96
    %v30 = vpop.permute.xlu0 %29
    %vm31 = vcmask 64512
    %s32 = scalar_lea.vmem %s1, 4
    %33 = vst.msk [vmem:[%s32] ss:$8 sm:$0x3] %vm31, %v30
    %v34 = vld [vmem:[#allocation0] sm:$0x3]
    %35 = vrot.lane.b32.xlu0 %v34, 88
    %v36 = vpop.permute.xlu0 %35
    %vm37 = vcmask 64512
    %s38 = scalar_lea.vmem %s1, 5
    %39 = vst.msk [vmem:[%s38] ss:$8 sm:$0x3] %vm37, %v36
    %v40 = vld [vmem:[#allocation0] sm:$0x3]
    %41 = vrot.lane.b32.xlu0 %v40, 80
    %v42 = vpop.permute.xlu0 %41
    %vm43 = vcmask 64512
    %s44 = scalar_lea.vmem %s1, 6
    %45 = vst.msk [vmem:[%s44] ss:$8 sm:$0x3] %vm43, %v42

// kernel: local_fine_net_forward.1
$region0: #{local_fine_net_forward.1}
  #allocation0 [shape = 'u32[]', space=smem, size = 0x4, offset = 0x4, fixed_abs, tag = 'smem constant byte address 0x4 - core index']
  #allocation1 [shape = 'u32[144,128]{1,0:T(1,128)}', space=vmem, size = 0x12000, scoped, tag = 'internal scratch']
  %s0 = inlined_call_operand.vmem [shape: bf16[2,224,256], index: 0, kind: input, shape index: {}]
  %s1 = inlined_call_operand.vmem [shape: f32[2,56,64], index: 1, kind: input, shape index: {}]
  %s2 = inlined_call_operand.vmem [shape: bf16[256,64], index: 2, kind: input, shape index: {}]
  %s3 = inlined_call_operand.vmem [shape: f32[1,64], index: 3, kind: input, shape index: {}]
  %s4 = inlined_call_operand.vmem [shape: bf16[1600,64], index: 4, kind: input, shape index: {}]
  %s5 = inlined_call_operand.vmem [shape: f32[1,64], index: 5, kind: input, shape index: {}]
  %s6 = inlined_call_operand.vmem [shape: bf16[1600,128], index: 6, kind: input, shape index: {}]
  %s7 = inlined_call_operand.vmem [shape: f32[1,128], index: 7, kind: input, shape index: {}]
  %s8 = inlined_call_operand.vmem [shape: f32[2,56,128], index: 8, kind: output, shape index: {}]
  %s9 = sld [smem:[#allocation0]]
  $region65: #{local_fine_net_forward.1} parent=0
    _
  %s11 = ssub.s32 1, %s9
  %s12 = scalar_select 0, %s11, %s9
  loop: start=0, step=1, limit=4
  $region2: #{local_fine_net_forward.1} parent=0 // loop_pre_header
    _
  $region3: #{local_fine_net_forward.1} parent=0 // loop_header
    %s14 = sphi 0, %s18
    %p15 = scmp.ge.s32.totalorder %s14, 4
    %s24 = sphi 0, %s26
    %s27 = sphi 0, %s24
    %s28 = sphi 0, %s27
    %s44 = sphi 0, %s28
    %s50 = sphi 0, %s52
    %s53 = sphi 0, %s50
    %s54 = sphi 0, %s53
    %s70 = sphi 0, %s54
    %s74 = sphi 0, %s74
    %s76 = sphi 0, %s74
    %s77 = sphi 0, %s76
    %s91 = sphi 0, %s77
    %s95 = sphi 0, %s95
    %s97 = sphi 0, %s95
    %s98 = sphi 0, %s97
    %s112 = sphi 0, %s98
    %s116 = sphi 0, %s116
    %s118 = sphi 0, %s116
    %s119 = sphi 0, %s118
    %s133 = sphi 0, %s119
    %s137 = sphi 0, %s137
    %s139 = sphi 0, %s137
    %s140 = sphi 0, %s139
    %s154 = sphi 0, %s140
    %s158 = sphi 0, %s158
    %s160 = sphi 0, %s158
    %s161 = sphi 0, %s160
    %s175 = sphi 0, %s161
    %s179 = sphi 0, %s179
    %s181 = sphi 0, %s179
    %s182 = sphi 0, %s181
    %s196 = sphi 0, %s182
    %s202 = sphi 0, %s204
    %s205 = sphi 0, %s202
    %s206 = sphi 0, %s205
    %s222 = sphi 0, %s206
  $region4: #{local_fine_net_forward.1} parent=0 // loop_header_branch
    %17 = sbr.rel (%p15) target = $region8
  $region5: #{local_fine_net_forward.1} parent=0 // loop_body
    %s19 = ssub.s32 %s14, 1
    %s20 = ssub.s32 %s14, 2
    %s21 = sadd.s32 %s14, 1
    %s22 = ssub.s32 %s14, %s21
    %p23 = scmp.eq.s32.totalorder %s22, 0
    %s25 = sadd.s32 %s24, 1
    %s26 = scalar_select %p23, %s24, %s25
    %p29 = pneg %p23
    %p30 = scmp.eq.s32.totalorder %s14, 1
    %p31 = por %p29, %p30
    %p32 = scmp.ne.s32.totalorder %s24, %s27
    %p33 = scmp.eq.s32.totalorder %s14, 0
    %p34 = por %p32, %p33
    %p35 = scmp.ne.s32.totalorder %s24, %s27
    %p36 = scmp.eq.s32.totalorder %s19, 1
    %p37 = por %p35, %p36
    %p38 = scmp.ne.s32.totalorder %s27, %s28
    %p39 = scmp.eq.s32.totalorder %s19, 0
    %p40 = por %p38, %p39
    %p41 = scmp.ne.s32.totalorder %s27, %s28
    %p42 = scmp.eq.s32.totalorder %s20, 1
    %p43 = por %p41, %p42
    %p45 = scmp.ne.s32.totalorder %s28, %s44
    %p46 = scmp.eq.s32.totalorder %s20, 0
    %p47 = por %p45, %p46
    %s48 = ssub.s32 %s14, %s21
    %p49 = scmp.eq.s32.totalorder %s48, 0
    %s51 = sadd.s32 %s50, 1
    %s52 = scalar_select %p49, %s50, %s51
    %p55 = pneg %p49
    %p56 = scmp.eq.s32.totalorder %s14, 1
    %p57 = por %p55, %p56
    %p58 = scmp.ne.s32.totalorder %s50, %s53
    %p59 = scmp.eq.s32.totalorder %s14, 0
    %p60 = por %p58, %p59
    %p61 = scmp.ne.s32.totalorder %s50, %s53
    %p62 = scmp.eq.s32.totalorder %s19, 1
    %p63 = por %p61, %p62
    %p64 = scmp.ne.s32.totalorder %s53, %s54
    %p65 = scmp.eq.s32.totalorder %s19, 0
    %p66 = por %p64, %p65
    %p67 = scmp.ne.s32.totalorder %s53, %s54
    %p68 = scmp.eq.s32.totalorder %s20, 1
    %p69 = por %p67, %p68
    %p71 = scmp.ne.s32.totalorder %s54, %s70
    %p72 = scmp.eq.s32.totalorder %s20, 0
    %p73 = por %p71, %p72
    %s75 = sadd.s32 %s74, 1
    %p78 = scmp.eq.s32.totalorder %s14, 1
    %p79 = scmp.ne.s32.totalorder %s74, %s76
    %p80 = scmp.eq.s32.totalorder %s14, 0
    %p81 = por %p79, %p80
    %p82 = scmp.ne.s32.totalorder %s74, %s76
    %p83 = scmp.eq.s32.totalorder %s19, 1
    %p84 = por %p82, %p83
    %p85 = scmp.ne.s32.totalorder %s76, %s77
    %p86 = scmp.eq.s32.totalorder %s19, 0
    %p87 = por %p85, %p86
    %p88 = scmp.ne.s32.totalorder %s76, %s77
    %p89 = scmp.eq.s32.totalorder %s20, 1
    %p90 = por %p88, %p89
    %p92 = scmp.ne.s32.totalorder %s77, %s91
    %p93 = scmp.eq.s32.totalorder %s20, 0
    %p94 = por %p92, %p93
    %s96 = sadd.s32 %s95, 1
    %p99 = scmp.eq.s32.totalorder %s14, 1
    %p100 = scmp.ne.s32.totalorder %s95, %s97
    %p101 = scmp.eq.s32.totalorder %s14, 0
    %p102 = por %p100, %p101
    %p103 = scmp.ne.s32.totalorder %s95, %s97
    %p104 = scmp.eq.s32.totalorder %s19, 1
    %p105 = por %p103, %p104
    %p106 = scmp.ne.s32.totalorder %s97, %s98
    %p107 = scmp.eq.s32.totalorder %s19, 0
    %p108 = por %p106, %p107
    %p109 = scmp.ne.s32.totalorder %s97, %s98
    %p110 = scmp.eq.s32.totalorder %s20, 1
    %p111 = por %p109, %p110
    %p113 = scmp.ne.s32.totalorder %s98, %s112
    %p114 = scmp.eq.s32.totalorder %s20, 0
    %p115 = por %p113, %p114
    %s117 = sadd.s32 %s116, 1
    %p120 = scmp.eq.s32.totalorder %s14, 1
    %p121 = scmp.ne.s32.totalorder %s116, %s118
    %p122 = scmp.eq.s32.totalorder %s14, 0
    %p123 = por %p121, %p122
    %p124 = scmp.ne.s32.totalorder %s116, %s118
    %p125 = scmp.eq.s32.totalorder %s19, 1
    %p126 = por %p124, %p125
    %p127 = scmp.ne.s32.totalorder %s118, %s119
    %p128 = scmp.eq.s32.totalorder %s19, 0
    %p129 = por %p127, %p128
    %p130 = scmp.ne.s32.totalorder %s118, %s119
    %p131 = scmp.eq.s32.totalorder %s20, 1
    %p132 = por %p130, %p131
    %p134 = scmp.ne.s32.totalorder %s119, %s133
    %p135 = scmp.eq.s32.totalorder %s20, 0
    %p136 = por %p134, %p135
    %s138 = sadd.s32 %s137, 1
    %p141 = scmp.eq.s32.totalorder %s14, 1
    %p142 = scmp.ne.s32.totalorder %s137, %s139
    %p143 = scmp.eq.s32.totalorder %s14, 0
    %p144 = por %p142, %p143
    %p145 = scmp.ne.s32.totalorder %s137, %s139
    %p146 = scmp.eq.s32.totalorder %s19, 1
    %p147 = por %p145, %p146
    %p148 = scmp.ne.s32.totalorder %s139, %s140
    %p149 = scmp.eq.s32.totalorder %s19, 0
    %p150 = por %p148, %p149
    %p151 = scmp.ne.s32.totalorder %s139, %s140
    %p152 = scmp.eq.s32.totalorder %s20, 1
    %p153 = por %p151, %p152
    %p155 = scmp.ne.s32.totalorder %s140, %s154
    %p156 = scmp.eq.s32.totalorder %s20, 0
    %p157 = por %p155, %p156
    %s159 = sadd.s32 %s158, 1
    %p162 = scmp.eq.s32.totalorder %s14, 1
    %p163 = scmp.ne.s32.totalorder %s158, %s160
    %p164 = scmp.eq.s32.totalorder %s14, 0
    %p165 = por %p163, %p164
    %p166 = scmp.ne.s32.totalorder %s158, %s160
    %p167 = scmp.eq.s32.totalorder %s19, 1
    %p168 = por %p166, %p167
    %p169 = scmp.ne.s32.totalorder %s160, %s161
    %p170 = scmp.eq.s32.totalorder %s19, 0
    %p171 = por %p169, %p170
    %p172 = scmp.ne.s32.totalorder %s160, %s161
    %p173 = scmp.eq.s32.totalorder %s20, 1
    %p174 = por %p172, %p173
    %p176 = scmp.ne.s32.totalorder %s161, %s175
    %p177 = scmp.eq.s32.totalorder %s20, 0
    %p178 = por %p176, %p177
    %s180 = sadd.s32 %s179, 1
    %p183 = scmp.eq.s32.totalorder %s14, 1
    %p184 = scmp.ne.s32.totalorder %s179, %s181
    %p185 = scmp.eq.s32.totalorder %s14, 0
    %p186 = por %p184, %p185
    %p187 = scmp.ne.s32.totalorder %s179, %s181
    %p188 = scmp.eq.s32.totalorder %s19, 1
    %p189 = por %p187, %p188
    %p190 = scmp.ne.s32.totalorder %s181, %s182
    %p191 = scmp.eq.s32.totalorder %s19, 0
    %p192 = por %p190, %p191
    %p193 = scmp.ne.s32.totalorder %s181, %s182
    %p194 = scmp.eq.s32.totalorder %s20, 1
    %p195 = por %p193, %p194
    %p197 = scmp.ne.s32.totalorder %s182, %s196
    %p198 = scmp.eq.s32.totalorder %s20, 0
    %p199 = por %p197, %p198
    %s200 = ssub.s32 %s14, %s21
    %p201 = scmp.eq.s32.totalorder %s200, 0
    %s203 = sadd.s32 %s202, 1
    %s204 = scalar_select %p201, %s202, %s203
    %p207 = pneg %p201
    %p208 = scmp.eq.s32.totalorder %s14, 1
    %p209 = por %p207, %p208
    %p210 = scmp.ne.s32.totalorder %s202, %s205
    %p211 = scmp.eq.s32.totalorder %s14, 0
    %p212 = por %p210, %p211
    %p213 = scmp.ne.s32.totalorder %s202, %s205
    %p214 = scmp.eq.s32.totalorder %s19, 1
    %p215 = por %p213, %p214
    %p216 = scmp.ne.s32.totalorder %s205, %s206
    %p217 = scmp.eq.s32.totalorder %s19, 0
    %p218 = por %p216, %p217
    %p219 = scmp.ne.s32.totalorder %s205, %s206
    %p220 = scmp.eq.s32.totalorder %s20, 1
    %p221 = por %p219, %p220
    %p223 = scmp.ne.s32.totalorder %s206, %s222
    %p224 = scmp.eq.s32.totalorder %s20, 0
    %p225 = por %p223, %p224
    %p226 = scmp.le.s32.totalorder 1, %s14
    %p227 = scmp.lt.s32.totalorder %s14, 3
    %p228 = pnand %p226, %p227
    %p229 = pneg %p228
    // Predicated region
    $region9: #{local_fine_net_forward.1} parent=5 // pred_check
      _
    $region10: #{local_fine_net_forward.1} parent=5 // pred_check_branch
      %231 = sbr.rel (%p228) target = $region12
    $region11: #{local_fine_net_forward.1} parent=5 // pred_region
      %s232 = ssub.s32 %s14, 1
      // Predicated region
      $region13: #{local_fine_net_forward.1} parent=11 // pred_check
        %p233 = pneg %p87
      $region14: #{local_fine_net_forward.1} parent=11 // pred_check_branch
        %235 = sbr.rel (%p233) target = $region16
      $region15: #{local_fine_net_forward.1} parent=11 // pred_region
        _
      $region16: #{local_fine_net_forward.1} parent=11 // pred_fallthru
        _
      // Predicated region
      $region17: #{local_fine_net_forward.1} parent=11 // pred_check
        %p236 = pneg %p108
      $region18: #{local_fine_net_forward.1} parent=11 // pred_check_branch
        %238 = sbr.rel (%p236) target = $region20
      $region19: #{local_fine_net_forward.1} parent=11 // pred_region
        _
      $region20: #{local_fine_net_forward.1} parent=11 // pred_fallthru
        _
      // Predicated region
      $region21: #{local_fine_net_forward.1} parent=11 // pred_check
        %p239 = pneg %p129
      $region22: #{local_fine_net_forward.1} parent=11 // pred_check_branch
        %241 = sbr.rel (%p239) target = $region24
      $region23: #{local_fine_net_forward.1} parent=11 // pred_region
        _
      $region24: #{local_fine_net_forward.1} parent=11 // pred_fallthru
        _
      // Predicated region
      $region25: #{local_fine_net_forward.1} parent=11 // pred_check
        %p242 = pneg %p150
      $region26: #{local_fine_net_forward.1} parent=11 // pred_check_branch
        %244 = sbr.rel (%p242) target = $region28
      $region27: #{local_fine_net_forward.1} parent=11 // pred_region
        _
      $region28: #{local_fine_net_forward.1} parent=11 // pred_fallthru
        _
      // Predicated region
      $region29: #{local_fine_net_forward.1} parent=11 // pred_check
        %p245 = pneg %p171
      $region30: #{local_fine_net_forward.1} parent=11 // pred_check_branch
        %247 = sbr.rel (%p245) target = $region32
      $region31: #{local_fine_net_forward.1} parent=11 // pred_region
        _
      $region32: #{local_fine_net_forward.1} parent=11 // pred_fallthru
        _
      // Predicated region
      $region33: #{local_fine_net_forward.1} parent=11 // pred_check
        %p248 = pneg %p192
      $region34: #{local_fine_net_forward.1} parent=11 // pred_check_branch
        %250 = sbr.rel (%p248) target = $region36
      $region35: #{local_fine_net_forward.1} parent=11 // pred_region
        _
      $region36: #{local_fine_net_forward.1} parent=11 // pred_fallthru
        _
    $region12: #{local_fine_net_forward.1} parent=5 // pred_fallthru
      _
    %p251 = scmp.lt.s32.totalorder %s14, 2
    // Predicated region
    $region37: #{local_fine_net_forward.1} parent=5 // pred_check
      %p252 = pneg %p251
    $region38: #{local_fine_net_forward.1} parent=5 // pred_check_branch
      %254 = sbr.rel (%p252) target = $region40
    $region39: #{local_fine_net_forward.1} parent=5 // pred_region
      // Predicated region
      $region41: #{local_fine_net_forward.1} parent=39 // pred_check
        %p255 = pneg %p34
      $region42: #{local_fine_net_forward.1} parent=39 // pred_check_branch
        %257 = sbr.rel (%p255) target = $region44
      $region43: #{local_fine_net_forward.1} parent=39 // pred_region
        %p258 = scmp.lt.s32.totalorder %s14, 1
        %s259 = scalar_select %p258, %s14, 1
        %s260 = smul.addr %s259, 56
        %s261 = smul.addr %s260, 4
        %s262 = scalar_lea.vmem %s0, %s261
      $region44: #{local_fine_net_forward.1} parent=39 // pred_fallthru
        _
      // Predicated region
      $region45: #{local_fine_net_forward.1} parent=39 // pred_check
        %p263 = pneg %p60
      $region46: #{local_fine_net_forward.1} parent=39 // pred_check_branch
        %265 = sbr.rel (%p263) target = $region48
      $region47: #{local_fine_net_forward.1} parent=39 // pred_region
        %p266 = scmp.lt.s32.totalorder %s14, 1
        %s267 = scalar_select %p266, %s14, 1
        %s268 = smul.addr %s267, 7
        %s269 = smul.addr %s268, 8
        %s270 = scalar_lea.vmem %s1, %s269
      $region48: #{local_fine_net_forward.1} parent=39 // pred_fallthru
        _
    $region40: #{local_fine_net_forward.1} parent=5 // pred_fallthru
      _
    %p271 = scmp.le.s32.totalorder 1, %s14
    %p272 = scmp.lt.s32.totalorder %s14, 3
    %p273 = pnand %p271, %p272
    %p274 = pneg %p273
    // Predicated region
    $region49: #{local_fine_net_forward.1} parent=5 // pred_check
      _
    $region50: #{local_fine_net_forward.1} parent=5 // pred_check_branch
      %276 = sbr.rel (%p273) target = $region52
    $region51: #{local_fine_net_forward.1} parent=5 // pred_region
      %s277 = ssub.s32 %s14, 1
      %p278 = scmp.lt.s32.totalorder %s19, 1
      %s279 = scalar_select %p278, %s19, 1
      %s280 = smul.addr %s279, 56
      %s281 = smul.addr %s280, 4
      %s282 = scalar_lea.vmem %s0, %s281
      %p283 = pneg %p40
      %p284 = pneg %p37
      %p285 = scmp.lt.s32.totalorder %s19, 1
      %s286 = scalar_select %p285, %s19, 1
      %s287 = smul.addr %s286, 7
      %s288 = smul.addr %s287, 8
      %s289 = scalar_lea.vmem %s1, %s288
      %p290 = pneg %p66
      %p291 = pneg %p63
      %p292 = pneg %p87
      %p293 = pneg %p84
      %p294 = pneg %p108
      %p295 = pneg %p105
      %p296 = pneg %p129
      %p297 = pneg %p126
      %p298 = pneg %p150
      %p299 = pneg %p147
      %p300 = pneg %p171
      %p301 = pneg %p168
      %p302 = pneg %p192
      %p303 = pneg %p189
      %p304 = pneg %p218
      %p305 = pneg %p215
      %p306 = scmp.lt.s32.totalorder %s19, 1
      %s307 = scalar_select %p306, %s19, 1
      %s308 = smul.addr %s307, 7
      %s309 = smul.addr %s308, 8
      %s310 = scalar_lea.vmem %s8, %s309
      %p311 = scmp.lt.s32.totalorder %s19, 1
      %s312 = scalar_select %p311, %s19, 1
      %s313 = smul.addr %s312, 56
      %s314 = smul.addr %s313, 4
      %s315 = scalar_lea.vmem %s0, %s314
      %p316 = scmp.lt.s32.totalorder %s19, 1
      %s317 = scalar_select %p316, %s19, 1
      %s318 = smul.addr %s317, 7
      %s319 = smul.addr %s318, 8
      %s320 = scalar_lea.vmem %s1, %s319
      %p321 = scmp.lt.s32.totalorder %s19, 1
      %s322 = scalar_select %p321, %s19, 1
      %s323 = smul.addr %s322, 7
      %s324 = smul.addr %s323, 8
      %s325 = scalar_lea.vmem %s8, %s324
      %v327 = vld [vmem:[%s315] sm:$0xff]
      %v328 = vld [vmem:[%s315 + $0x8] sm:$0xff]
      %v329 = vld [vmem:[%s315 + $0x10] sm:$0xff]
      %v330 = vld [vmem:[%s315 + $0x18] sm:$0xff]
      %v331 = vld [vmem:[%s315 + $0x20] sm:$0xff]
      %v332 = vld [vmem:[%s315 + $0x28] sm:$0xff]
      %v333 = vld [vmem:[%s315 + $0x30] sm:$0xff]
      %v334 = vld [vmem:[%s315 + $0x38] sm:$0xff]
      %v335 = vld [vmem:[%s315 + $0x40] sm:$0xff]
      %v336 = vld [vmem:[%s315 + $0x48] sm:$0xff]
      %v337 = vld [vmem:[%s315 + $0x50] sm:$0xff]
      %v338 = vld [vmem:[%s315 + $0x58] sm:$0xff]
      %v339 = vld [vmem:[%s315 + $0x60] sm:$0xff]
      %v340 = vld [vmem:[%s315 + $0x68] sm:$0xff]
      %v341 = vld [vmem:[%s315 + $0x70] sm:$0xff]
      %v342 = vld [vmem:[%s315 + $0x78] sm:$0xff]
      %v343 = vld [vmem:[%s315 + $0x80] sm:$0xff]
      %v344 = vld [vmem:[%s315 + $0x88] sm:$0xff]
      %v345 = vld [vmem:[%s315 + $0x90] sm:$0xff]
      %v346 = vld [vmem:[%s315 + $0x98] sm:$0xff]
      %v347 = vld [vmem:[%s315 + $0xa0] sm:$0xff]
      %v348 = vld [vmem:[%s315 + $0xa8] sm:$0xff]
      %v349 = vld [vmem:[%s315 + $0xb0] sm:$0xff]
      %v350 = vld [vmem:[%s315 + $0xb8] sm:$0xff]
      %v351 = vld [vmem:[%s315 + $0xc0] sm:$0xff]
      %v352 = vld [vmem:[%s315 + $0xc8] sm:$0xff]
      %v353 = vld [vmem:[%s315 + $0xd0] sm:$0xff]
      %v354 = vld [vmem:[%s315 + $0xd8] sm:$0xff]
      %v355 = vld [vmem:[%s2] sm:$0xf]
      %v356 = vld [vmem:[%s2 + $0x4] sm:$0xf]
      %v357 = vld [vmem:[%s2 + $0x8] sm:$0xf]
      %v358 = vld [vmem:[%s2 + $0xc] sm:$0xf]
      %v359 = vld [vmem:[%s2 + $0x10] sm:$0xf]
      %v360 = vld [vmem:[%s2 + $0x14] sm:$0xf]
      %v361 = vld [vmem:[%s2 + $0x18] sm:$0xf]
      %v362 = vld [vmem:[%s2 + $0x1c] sm:$0xf]
      %v363 = vld [vmem:[%s2 + $0x20] sm:$0xf]
      %v364 = vld [vmem:[%s2 + $0x24] sm:$0xf]
      %v365 = vld [vmem:[%s2 + $0x28] sm:$0xf]
      %v366 = vld [vmem:[%s2 + $0x2c] sm:$0xf]
      %v367 = vld [vmem:[%s2 + $0x30] sm:$0xf]
      %v368 = vld [vmem:[%s2 + $0x34] sm:$0xf]
      %v369 = vld [vmem:[%s2 + $0x38] sm:$0xf]
      %v370 = vld [vmem:[%s2 + $0x3c] sm:$0xf]
      %v371 = vld [vmem:[%s2 + $0x40] sm:$0xf]
      %v372 = vld [vmem:[%s2 + $0x44] sm:$0xf]
      %v373 = vld [vmem:[%s2 + $0x48] sm:$0xf]
      %v374 = vld [vmem:[%s2 + $0x4c] sm:$0xf]
      %v375 = vld [vmem:[%s2 + $0x50] sm:$0xf]
      %v376 = vld [vmem:[%s2 + $0x54] sm:$0xf]
      %v377 = vld [vmem:[%s2 + $0x58] sm:$0xf]
      %v378 = vld [vmem:[%s2 + $0x5c] sm:$0xf]
      %v379 = vld [vmem:[%s2 + $0x60] sm:$0xf]
      %v380 = vld [vmem:[%s2 + $0x64] sm:$0xf]
      %v381 = vld [vmem:[%s2 + $0x68] sm:$0xf]
      %v382 = vld [vmem:[%s2 + $0x6c] sm:$0xf]
      %v383 = vld [vmem:[%s2 + $0x70] sm:$0xf]
      %v384 = vld [vmem:[%s2 + $0x74] sm:$0xf]
      %v385 = vld [vmem:[%s2 + $0x78] sm:$0xf]
      %v386 = vld [vmem:[%s2 + $0x7c] sm:$0xf]
      %v387 = vld [vmem:[%s3] sm:$0x1]
      %v389 = vlaneseq
      %v390 = vshrl.u32 %v389, 7
      %v391 = vsub.s32 0, %v390
      %v392 = vrot.slane %v387, %v391
      %v422 = vunpack.c.l.b16 %v327
      %v423 = vunpack.c.h.b16 %v327
      %v424 = vunpack.c.l.b16 %v328
      %v425 = vunpack.c.h.b16 %v328
      %v426 = vunpack.c.l.b16 %v329
      %v427 = vunpack.c.h.b16 %v329
      %v428 = vunpack.c.l.b16 %v330
      %v429 = vunpack.c.h.b16 %v330
      %v430 = vunpack.c.l.b16 %v331
      %v431 = vunpack.c.h.b16 %v331
      %v432 = vunpack.c.l.b16 %v332
      %v433 = vunpack.c.h.b16 %v332
      %v434 = vunpack.c.l.b16 %v333
      %v435 = vunpack.c.h.b16 %v333
      %v436 = vunpack.c.l.b16 %v334
      %v437 = vunpack.c.h.b16 %v334
      %v438 = vunpack.c.l.b16 %v335
      %v439 = vunpack.c.h.b16 %v335
      %v440 = vunpack.c.l.b16 %v336
      %v441 = vunpack.c.h.b16 %v336
      %v442 = vunpack.c.l.b16 %v337
      %v443 = vunpack.c.h.b16 %v337
      %v444 = vunpack.c.l.b16 %v338
      %v445 = vunpack.c.h.b16 %v338
      %v446 = vunpack.c.l.b16 %v339
      %v447 = vunpack.c.h.b16 %v339
      %v448 = vunpack.c.l.b16 %v340
      %v449 = vunpack.c.h.b16 %v340
      %v450 = vunpack.c.l.b16 %v341
      %v451 = vunpack.c.h.b16 %v341
      %v452 = vunpack.c.l.b16 %v342
      %v453 = vunpack.c.h.b16 %v342
      %v454 = vunpack.c.l.b16 %v343
      %v455 = vunpack.c.h.b16 %v343
      %v456 = vunpack.c.l.b16 %v344
      %v457 = vunpack.c.h.b16 %v344
      %v458 = vunpack.c.l.b16 %v345
      %v459 = vunpack.c.h.b16 %v345
      %v460 = vunpack.c.l.b16 %v346
      %v461 = vunpack.c.h.b16 %v346
      %v462 = vunpack.c.l.b16 %v347
      %v463 = vunpack.c.h.b16 %v347
      %v464 = vunpack.c.l.b16 %v348
      %v465 = vunpack.c.h.b16 %v348
      %v466 = vunpack.c.l.b16 %v349
      %v467 = vunpack.c.h.b16 %v349
      %v468 = vunpack.c.l.b16 %v350
      %v469 = vunpack.c.h.b16 %v350
      %v470 = vunpack.c.l.b16 %v351
      %v471 = vunpack.c.h.b16 %v351
      %v472 = vunpack.c.l.b16 %v352
      %v473 = vunpack.c.h.b16 %v352
      %v474 = vunpack.c.l.b16 %v353
      %v475 = vunpack.c.h.b16 %v353
      %v476 = vunpack.c.l.b16 %v354
      %v477 = vunpack.c.h.b16 %v354
      %v478 = vpack.c.b16 %v424, %v422
      %v479 = vpack.c.b16 %v425, %v423
      %v480 = vpack.c.b16 %v428, %v426
      %v481 = vpack.c.b16 %v429, %v427
      %v482 = vpack.c.b16 %v432, %v430
      %v483 = vpack.c.b16 %v433, %v431
      %v484 = vpack.c.b16 %v436, %v434
      %v485 = vpack.c.b16 %v437, %v435
      %v486 = vpack.c.b16 %v440, %v438
      %v487 = vpack.c.b16 %v441, %v439
      %v488 = vpack.c.b16 %v444, %v442
      %v489 = vpack.c.b16 %v445, %v443
      %v490 = vpack.c.b16 %v448, %v446
      %v491 = vpack.c.b16 %v449, %v447
      %v492 = vpack.c.b16 %v452, %v450
      %v493 = vpack.c.b16 %v453, %v451
      %v494 = vpack.c.b16 %v456, %v454
      %v495 = vpack.c.b16 %v457, %v455
      %v496 = vpack.c.b16 %v460, %v458
      %v497 = vpack.c.b16 %v461, %v459
      %v498 = vpack.c.b16 %v464, %v462
      %v499 = vpack.c.b16 %v465, %v463
      %v500 = vpack.c.b16 %v468, %v466
      %v501 = vpack.c.b16 %v469, %v467
      %v502 = vpack.c.b16 %v472, %v470
      %v503 = vpack.c.b16 %v473, %v471
      %v504 = vpack.c.b16 %v476, %v474
      %v505 = vpack.c.b16 %v477, %v475
      %v566 = vunpack.c.l.b16 %v355
      %v567 = vunpack.c.l.b16 %v356
      %v568 = vunpack.c.l.b16 %v357
      %v569 = vunpack.c.l.b16 %v358
      %v570 = vunpack.c.l.b16 %v359
      %v571 = vunpack.c.l.b16 %v360
      %v572 = vunpack.c.l.b16 %v361
      %v573 = vunpack.c.l.b16 %v362
      %v574 = vunpack.c.l.b16 %v363
      %v575 = vunpack.c.l.b16 %v364
      %v576 = vunpack.c.l.b16 %v365
      %v577 = vunpack.c.l.b16 %v366
      %v578 = vunpack.c.l.b16 %v367
      %v579 = vunpack.c.l.b16 %v368
      %v580 = vunpack.c.l.b16 %v369
      %v581 = vunpack.c.l.b16 %v370
      %v582 = vunpack.c.l.b16 %v371
      %v583 = vunpack.c.l.b16 %v372
      %v584 = vunpack.c.l.b16 %v373
      %v585 = vunpack.c.l.b16 %v374
      %v586 = vunpack.c.l.b16 %v375
      %v587 = vunpack.c.l.b16 %v376
      %v588 = vunpack.c.l.b16 %v377
      %v589 = vunpack.c.l.b16 %v378
      %v590 = vunpack.c.l.b16 %v379
      %v591 = vunpack.c.l.b16 %v380
      %v592 = vunpack.c.l.b16 %v381
      %v593 = vunpack.c.l.b16 %v382
      %v594 = vunpack.c.l.b16 %v383
      %v595 = vunpack.c.l.b16 %v384
      %v596 = vunpack.c.l.b16 %v385
      %v597 = vunpack.c.l.b16 %v386
      %v598 = vpack.c.b16 %v567, %v566
      %v599 = vpack.c.b16 %v569, %v568
      %v600 = vpack.c.b16 %v571, %v570
      %v601 = vpack.c.b16 %v573, %v572
      %v602 = vpack.c.b16 %v575, %v574
      %v603 = vpack.c.b16 %v577, %v576
      %v604 = vpack.c.b16 %v579, %v578
      %v605 = vpack.c.b16 %v581, %v580
      %v606 = vpack.c.b16 %v583, %v582
      %v607 = vpack.c.b16 %v585, %v584
      %v608 = vpack.c.b16 %v587, %v586
      %v609 = vpack.c.b16 %v589, %v588
      %v610 = vpack.c.b16 %v591, %v590
      %v611 = vpack.c.b16 %v593, %v592
      %v612 = vpack.c.b16 %v595, %v594
      %v613 = vpack.c.b16 %v597, %v596
      %630 = vmatprep.subr.bf16.mxu0 0
      %631 = vmatpush1.bf16.msra.mxu0 %v605
      %632 = vmatprep.subr.bf16.mxu0 0
      %633 = vmatpush1.bf16.msra.mxu0 %v604
      %634 = vmatprep.subr.bf16.mxu0 0
      %635 = vmatpush1.bf16.msra.mxu0 %v603
      %636 = vmatprep.subr.bf16.mxu0 0
      %637 = vmatpush1.bf16.msra.mxu0 %v602
      %638 = vmatprep.subr.bf16.mxu0 0
      %639 = vmatpush1.bf16.msra.mxu0 %v601
      %640 = vmatprep.subr.bf16.mxu0 0
      %641 = vmatpush1.bf16.msra.mxu0 %v600
      %642 = vmatprep.subr.bf16.mxu0 0
      %643 = vmatpush1.bf16.msra.mxu0 %v599
      %644 = vmatprep.subr.bf16.mxu0 0
      %645 = vmatpush1.bf16.msra.mxu0 %v598
      %646 = vmatprep.subr.bf16.mxu0 0
      %647 = vmatpush2.bf16.msra.mxu0 %v613
      %648 = vmatprep.subr.bf16.mxu0 0
      %649 = vmatpush2.bf16.msra.mxu0 %v612
      %650 = vmatprep.subr.bf16.mxu0 0
      %651 = vmatpush2.bf16.msra.mxu0 %v611
      %652 = vmatprep.subr.bf16.mxu0 0
      %653 = vmatpush2.bf16.msra.mxu0 %v610
      %654 = vmatprep.subr.bf16.mxu0 0
      %655 = vmatpush2.bf16.msra.mxu0 %v609
      %656 = vmatprep.subr.bf16.mxu0 0
      %657 = vmatpush2.bf16.msra.mxu0 %v608
      %658 = vmatprep.subr.bf16.mxu0 0
      %659 = vmatpush2.bf16.msra.mxu0 %v607
      %660 = vmatprep.subr.bf16.mxu0 0
      %661 = vmatpush2.bf16.msra.mxu0 %v606
      %662 = vmatprep.mubr.bf16.mxu0 %v479
      %663 = vmatmul.mubr.bf16.gmra.mxu0 %v478
      %v664 = vpop.f32.mrf.mxu0
      %v665 = vadd.f32 %v392, %v664
      %v666 = vpop.f32.mrf.mxu0
      %v667 = vpop.f32.mrf.mxu0
      %v668 = vadd.f32 %v392, %v667
      %v669 = vpop.f32.mrf.mxu0
      %670 = vmatprep.mubr.bf16.mxu0 %v481
      %671 = vmatmul.mubr.bf16.gmra.mxu0 %v480
      %v672 = vpop.f32.mrf.mxu0
      %v673 = vadd.f32 %v392, %v672
      %v674 = vpop.f32.mrf.mxu0
      %v675 = vpop.f32.mrf.mxu0
      %v676 = vadd.f32 %v392, %v675
      %v677 = vpop.f32.mrf.mxu0
      %678 = vmatprep.mubr.bf16.mxu0 %v483
      %679 = vmatmul.mubr.bf16.gmra.mxu0 %v482
      %v680 = vpop.f32.mrf.mxu0
      %v681 = vadd.f32 %v392, %v680
      %v682 = vpop.f32.mrf.mxu0
      %v683 = vpop.f32.mrf.mxu0
      %v684 = vadd.f32 %v392, %v683
      %v685 = vpop.f32.mrf.mxu0
      %686 = vmatprep.mubr.bf16.mxu0 %v485
      %687 = vmatmul.mubr.bf16.gmra.mxu0 %v484
      %v688 = vpop.f32.mrf.mxu0
      %v689 = vadd.f32 %v392, %v688
      %v690 = vpop.f32.mrf.mxu0
      %v691 = vpop.f32.mrf.mxu0
      %v692 = vadd.f32 %v392, %v691
      %v693 = vpop.f32.mrf.mxu0
      %694 = vmatprep.mubr.bf16.mxu0 %v487
      %695 = vmatmul.mubr.bf16.gmra.mxu0 %v486
      %v696 = vpop.f32.mrf.mxu0
      %v697 = vadd.f32 %v392, %v696
      %v698 = vpop.f32.mrf.mxu0
      %v699 = vpop.f32.mrf.mxu0
      %v700 = vadd.f32 %v392, %v699
      %v701 = vpop.f32.mrf.mxu0
      %702 = vmatprep.mubr.bf16.mxu0 %v489
      %703 = vmatmul.mubr.bf16.gmra.mxu0 %v488
      %v704 = vpop.f32.mrf.mxu0
      %v705 = vadd.f32 %v392, %v704
      %v706 = vpop.f32.mrf.mxu0
      %v707 = vpop.f32.mrf.mxu0
      %v708 = vadd.f32 %v392, %v707
      %v709 = vpop.f32.mrf.mxu0
      %710 = vmatprep.mubr.bf16.mxu0 %v491
      %711 = vmatmul.mubr.bf16.gmra.mxu0 %v490
      %v712 = vpop.f32.mrf.mxu0
      %v713 = vadd.f32 %v392, %v712
      %v714 = vpop.f32.mrf.mxu0
      %v715 = vpop.f32.mrf.mxu0
      %v716 = vadd.f32 %v392, %v715
      %v717 = vpop.f32.mrf.mxu0
      %718 = vmatprep.mubr.bf16.mxu0 %v493
      %719 = vmatmul.mubr.bf16.gmra.mxu0 %v492
      %v720 = vpop.f32.mrf.mxu0
      %v721 = vadd.f32 %v392, %v720
      %v722 = vpop.f32.mrf.mxu0
      %v723 = vpop.f32.mrf.mxu0
      %v724 = vadd.f32 %v392, %v723
      %v725 = vpop.f32.mrf.mxu0
      %726 = vmatprep.mubr.bf16.mxu0 %v495
      %727 = vmatmul.mubr.bf16.gmra.mxu0 %v494
      %v728 = vpop.f32.mrf.mxu0
      %v729 = vadd.f32 %v392, %v728
      %v730 = vpop.f32.mrf.mxu0
      %v731 = vpop.f32.mrf.mxu0
      %v732 = vadd.f32 %v392, %v731
      %v733 = vpop.f32.mrf.mxu0
      %734 = vmatprep.mubr.bf16.mxu0 %v497
      %735 = vmatmul.mubr.bf16.gmra.mxu0 %v496
      %v736 = vpop.f32.mrf.mxu0
      %v737 = vadd.f32 %v392, %v736
      %v738 = vpop.f32.mrf.mxu0
      %v739 = vpop.f32.mrf.mxu0
      %v740 = vadd.f32 %v392, %v739
      %v741 = vpop.f32.mrf.mxu0
      %742 = vmatprep.mubr.bf16.mxu0 %v499
      %743 = vmatmul.mubr.bf16.gmra.mxu0 %v498
      %v744 = vpop.f32.mrf.mxu0
      %v745 = vadd.f32 %v392, %v744
      %v746 = vpop.f32.mrf.mxu0
      %v747 = vpop.f32.mrf.mxu0
      %v748 = vadd.f32 %v392, %v747
      %v749 = vpop.f32.mrf.mxu0
      %750 = vmatprep.mubr.bf16.mxu0 %v501
      %751 = vmatmul.mubr.bf16.gmra.mxu0 %v500
      %v752 = vpop.f32.mrf.mxu0
      %v753 = vadd.f32 %v392, %v752
      %v754 = vpop.f32.mrf.mxu0
      %v755 = vpop.f32.mrf.mxu0
      %v756 = vadd.f32 %v392, %v755
      %v757 = vpop.f32.mrf.mxu0
      %758 = vmatprep.mubr.bf16.mxu0 %v503
      %759 = vmatmul.mubr.bf16.gmra.mxu0 %v502
      %v760 = vpop.f32.mrf.mxu0
      %v761 = vadd.f32 %v392, %v760
      %v762 = vpop.f32.mrf.mxu0
      %v763 = vpop.f32.mrf.mxu0
      %v764 = vadd.f32 %v392, %v763
      %v765 = vpop.f32.mrf.mxu0
      %766 = vmatprep.mubr.bf16.mxu0 %v505
      %767 = vmatmul.mubr.bf16.gmra.mxu0 %v504
      %v768 = vpop.f32.mrf.mxu0
      %v769 = vadd.f32 %v392, %v768
      %v770 = vpop.f32.mrf.mxu0
      %v771 = vpop.f32.mrf.mxu0
      %v772 = vadd.f32 %v392, %v771
      %v773 = vpop.f32.mrf.mxu0
      %774 = vdwg.mxu0
      %v775 = vmax.f32 %v665, 0.0
      %v776 = vmax.f32 %v668, 0.0
      %v777 = vmax.f32 %v673, 0.0
      %v778 = vmax.f32 %v676, 0.0
      %v779 = vmax.f32 %v681, 0.0
      %v780 = vmax.f32 %v684, 0.0
      %v781 = vmax.f32 %v689, 0.0
      %v782 = vmax.f32 %v692, 0.0
      %v783 = vmax.f32 %v697, 0.0
      %v784 = vmax.f32 %v700, 0.0
      %v785 = vmax.f32 %v705, 0.0
      %v786 = vmax.f32 %v708, 0.0
      %v787 = vmax.f32 %v713, 0.0
      %v788 = vmax.f32 %v716, 0.0
      %v789 = vmax.f32 %v721, 0.0
      %v790 = vmax.f32 %v724, 0.0
      %v791 = vmax.f32 %v729, 0.0
      %v792 = vmax.f32 %v732, 0.0
      %v793 = vmax.f32 %v737, 0.0
      %v794 = vmax.f32 %v740, 0.0
      %v795 = vmax.f32 %v745, 0.0
      %v796 = vmax.f32 %v748, 0.0
      %v797 = vmax.f32 %v753, 0.0
      %v798 = vmax.f32 %v756, 0.0
      %v799 = vmax.f32 %v761, 0.0
      %v800 = vmax.f32 %v764, 0.0
      %v801 = vmax.f32 %v769, 0.0
      %v802 = vmax.f32 %v772, 0.0
      %v803 = vmax.f32 %v775, %v777
      %v804 = vmax.f32 %v776, %v778
      %v805 = vmax.f32 %v779, %v781
      %v806 = vmax.f32 %v780, %v782
      %v807 = vmax.f32 %v783, %v785
      %v808 = vmax.f32 %v784, %v786
      %v809 = vmax.f32 %v787, %v789
      %v810 = vmax.f32 %v788, %v790
      %v811 = vmax.f32 %v791, %v793
      %v812 = vmax.f32 %v792, %v794
      %v813 = vmax.f32 %v795, %v797
      %v814 = vmax.f32 %v796, %v798
      %v815 = vmax.f32 %v799, %v801
      %v816 = vmax.f32 %v800, %v802
      %v817 = vmax.f32 %v803, %v804
      %v818 = vmax.f32 %v805, %v806
      %v819 = vmax.f32 %v807, %v808
      %v820 = vmax.f32 %v809, %v810
      %v821 = vmax.f32 %v811, %v812
      %v822 = vmax.f32 %v813, %v814
      %v823 = vmax.f32 %v815, %v816
      %v824 = vlaneseq
      %v825 = vshrl.u32 %v824, 7
      %vm826 = vcmp.lt.s32.totalorder %v825, 7
      %v827 = vsel %vm826, %v817, 0.0
      %v828 = vsel %vm826, %v818, 0.0
      %v829 = vsel %vm826, %v819, 0.0
      %v830 = vsel %vm826, %v820, 0.0
      %v831 = vsel %vm826, %v821, 0.0
      %v832 = vsel %vm826, %v822, 0.0
      %v833 = vsel %vm826, %v823, 0.0
      %v834 = vld [vmem:[%s320] sm:$0xff]
      %v835 = vld [vmem:[%s320 + $0x8] sm:$0xff]
      %v836 = vld [vmem:[%s320 + $0x10] sm:$0xff]
      %v837 = vld [vmem:[%s320 + $0x18] sm:$0xff]
      %v838 = vld [vmem:[%s320 + $0x20] sm:$0xff]
      %v839 = vld [vmem:[%s320 + $0x28] sm:$0xff]
      %v840 = vld [vmem:[%s320 + $0x30] sm:$0xff]
      %v841 = vadd.f32 %v827, %v834
      %v842 = vadd.f32 %v828, %v835
      %v843 = vadd.f32 %v829, %v836
      %v844 = vadd.f32 %v830, %v837
      %v845 = vadd.f32 %v831, %v838
      %v846 = vadd.f32 %v832, %v839
      %v847 = vadd.f32 %v833, %v840
      %v855 = vrot.slane %v841, 6
      %v856 = vrot.slane %v842, 6
      %v857 = vrot.slane %v843, 6
      %v858 = vrot.slane %v844, 6
      %v859 = vrot.slane %v845, 6
      %v860 = vrot.slane %v846, 6
      %v861 = vrot.slane %v847, 6
      %vm869 = vcmask 1041408
      %v870 = vsel %vm869, 0.0, %v855
      %v871 = vsel %vm869, 0.0, %v856
      %v872 = vsel %vm869, 0.0, %v857
      %v873 = vsel %vm869, 0.0, %v858
      %v874 = vsel %vm869, 0.0, %v859
      %v875 = vsel %vm869, 0.0, %v860
      %v876 = vsel %vm869, 0.0, %v861
      %v877 = vsel %vm869, %v855, 0.0
      %v878 = vsel %vm869, %v856, 0.0
      %v879 = vsel %vm869, %v857, 0.0
      %v880 = vsel %vm869, %v858, 0.0
      %v881 = vsel %vm869, %v859, 0.0
      %v882 = vsel %vm869, %v860, 0.0
      %v883 = vsel %vm869, %v861, 0.0
      %vm895 = vcmask 1046528
      %v896 = vrot.slane 0.0, 1
      %v897 = vsel %vm895, %v896, %v896
      %v898 = vrot.slane %v870, 1
      %v899 = vrot.slane %v877, 1
      %v900 = vsel %vm895, %v898, %v899
      %v901 = vrot.slane %v871, 1
      %v902 = vrot.slane %v878, 1
      %v903 = vsel %vm895, %v901, %v902
      %v904 = vrot.slane %v872, 1
      %v905 = vrot.slane %v879, 1
      %v906 = vsel %vm895, %v904, %v905
      %v907 = vrot.slane %v873, 1
      %v908 = vrot.slane %v880, 1
      %v909 = vsel %vm895, %v907, %v908
      %v910 = vrot.slane %v874, 1
      %v911 = vrot.slane %v881, 1
      %v912 = vsel %vm895, %v910, %v911
      %vm913 = vcmask 1045504
      %v914 = vrot.slane 0.0, 2
      %v915 = vsel %vm913, %v914, %v914
      %v916 = vrot.slane %v870, 2
      %v917 = vrot.slane %v877, 2
      %v918 = vsel %vm913, %v916, %v917
      %v919 = vrot.slane %v871, 2
      %v920 = vrot.slane %v878, 2
      %v921 = vsel %vm913, %v919, %v920
      %v922 = vrot.slane %v872, 2
      %v923 = vrot.slane %v879, 2
      %v924 = vsel %vm913, %v922, %v923
      %v925 = vrot.slane %v873, 2
      %v926 = vrot.slane %v880, 2
      %v927 = vsel %vm913, %v925, %v926
      %v928 = vrot.slane %v874, 2
      %v929 = vrot.slane %v881, 2
      %v930 = vsel %vm913, %v928, %v929
      %vm937 = vcmask 1044480
      %v938 = vrot.slane 0.0, 3
      %v939 = vsel %vm937, %v938, %v938
      %v940 = vrot.slane %v870, 3
      %v941 = vrot.slane %v877, 3
      %v942 = vsel %vm937, %v940, %v941
      %v943 = vrot.slane %v871, 3
      %v944 = vrot.slane %v878, 3
      %v945 = vsel %vm937, %v943, %v944
      %v946 = vrot.slane %v872, 3
      %v947 = vrot.slane %v879, 3
      %v948 = vsel %vm937, %v946, %v947
      %v949 = vrot.slane %v873, 3
      %v950 = vrot.slane %v880, 3
      %v951 = vsel %vm937, %v949, %v950
      %v952 = vrot.slane %v874, 3
      %v953 = vrot.slane %v881, 3
      %v954 = vsel %vm937, %v952, %v953
      %vm955 = vcmask 1043456
      %v956 = vrot.slane 0.0, 4
      %v957 = vsel %vm955, %v956, %v956
      %v958 = vrot.slane %v870, 4
      %v959 = vrot.slane %v877, 4
      %v960 = vsel %vm955, %v958, %v959
      %v961 = vrot.slane %v871, 4
      %v962 = vrot.slane %v878, 4
      %v963 = vsel %vm955, %v961, %v962
      %v964 = vrot.slane %v872, 4
      %v965 = vrot.slane %v879, 4
      %v966 = vsel %vm955, %v964, %v965
      %v967 = vrot.slane %v873, 4
      %v968 = vrot.slane %v880, 4
      %v969 = vsel %vm955, %v967, %v968
      %v970 = vrot.slane %v874, 4
      %v971 = vrot.slane %v881, 4
      %v972 = vsel %vm955, %v970, %v971
      %v981 = vrot.slane %v875, 1
      %v982 = vrot.slane %v882, 1
      %v983 = vsel %vm895, %v981, %v982
      %v991 = vrot.slane %v875, 2
      %v992 = vrot.slane %v882, 2
      %v993 = vsel %vm913, %v991, %v992
      %v994 = vrot.slane %v875, 3
      %v995 = vrot.slane %v882, 3
      %v996 = vsel %vm937, %v994, %v995
      %v1004 = vrot.slane %v875, 4
      %v1005 = vrot.slane %v882, 4
      %v1006 = vsel %vm955, %v1004, %v1005
      %v1009 = vrot.slane %v876, 1
      %v1010 = vrot.slane %v883, 1
      %v1011 = vsel %vm895, %v1009, %v1010
      %v1012 = vrot.slane %v876, 2
      %v1013 = vrot.slane %v883, 2
      %v1014 = vsel %vm913, %v1012, %v1013
      %v1017 = vrot.slane %v876, 3
      %v1018 = vrot.slane %v883, 3
      %v1019 = vsel %vm937, %v1017, %v1018
      %v1020 = vrot.slane %v876, 4
      %v1021 = vrot.slane %v883, 4
      %v1022 = vsel %vm955, %v1020, %v1021
      %1027 = vrot.lane.b32.xlu0 %v897, 64
      %v1028 = vpop.permute.xlu0 %1027
      %1029 = vrot.lane.b32.xlu0 %v900, 64
      %v1030 = vpop.permute.xlu0 %1029
      %1031 = vrot.lane.b32.xlu0 %v903, 64
      %v1032 = vpop.permute.xlu0 %1031
      %1033 = vrot.lane.b32.xlu0 %v906, 64
      %v1034 = vpop.permute.xlu0 %1033
      %1035 = vrot.lane.b32.xlu0 %v909, 64
      %v1036 = vpop.permute.xlu0 %1035
      %1037 = vrot.lane.b32.xlu0 %v912, 64
      %v1038 = vpop.permute.xlu0 %1037
      %1045 = vrot.lane.b32.xlu0 %v939, 64
      %v1046 = vpop.permute.xlu0 %1045
      %1047 = vrot.lane.b32.xlu0 %v942, 64
      %v1048 = vpop.permute.xlu0 %1047
      %1049 = vrot.lane.b32.xlu0 %v945, 64
      %v1050 = vpop.permute.xlu0 %1049
      %1051 = vrot.lane.b32.xlu0 %v948, 64
      %v1052 = vpop.permute.xlu0 %1051
      %1053 = vrot.lane.b32.xlu0 %v951, 64
      %v1054 = vpop.permute.xlu0 %1053
      %1055 = vrot.lane.b32.xlu0 %v954, 64
      %v1056 = vpop.permute.xlu0 %1055
      %1063 = vrot.lane.b32.xlu0 0.0, 64
      %v1064 = vpop.permute.xlu0 %1063
      %1065 = vrot.lane.b32.xlu0 %v870, 64
      %v1066 = vpop.permute.xlu0 %1065
      %1067 = vrot.lane.b32.xlu0 %v871, 64
      %v1068 = vpop.permute.xlu0 %1067
      %1069 = vrot.lane.b32.xlu0 %v872, 64
      %v1070 = vpop.permute.xlu0 %1069
      %1071 = vrot.lane.b32.xlu0 %v873, 64
      %v1072 = vpop.permute.xlu0 %1071
      %1073 = vrot.lane.b32.xlu0 %v874, 64
      %v1074 = vpop.permute.xlu0 %1073
      %1075 = vrot.lane.b32.xlu0 %v875, 64
      %v1076 = vpop.permute.xlu0 %1075
      %1084 = vrot.lane.b32.xlu0 %v915, 64
      %v1085 = vpop.permute.xlu0 %1084
      %1086 = vrot.lane.b32.xlu0 %v918, 64
      %v1087 = vpop.permute.xlu0 %1086
      %1088 = vrot.lane.b32.xlu0 %v921, 64
      %v1089 = vpop.permute.xlu0 %1088
      %1090 = vrot.lane.b32.xlu0 %v924, 64
      %v1091 = vpop.permute.xlu0 %1090
      %1092 = vrot.lane.b32.xlu0 %v927, 64
      %v1093 = vpop.permute.xlu0 %1092
      %1094 = vrot.lane.b32.xlu0 %v930, 64
      %v1095 = vpop.permute.xlu0 %1094
      %1096 = vrot.lane.b32.xlu0 %v993, 64
      %v1097 = vpop.permute.xlu0 %1096
      %1105 = vrot.lane.b32.xlu0 %v957, 64
      %v1106 = vpop.permute.xlu0 %1105
      %1107 = vrot.lane.b32.xlu0 %v960, 64
      %v1108 = vpop.permute.xlu0 %1107
      %1109 = vrot.lane.b32.xlu0 %v963, 64
      %v1110 = vpop.permute.xlu0 %1109
      %1111 = vrot.lane.b32.xlu0 %v966, 64
      %v1112 = vpop.permute.xlu0 %1111
      %1113 = vrot.lane.b32.xlu0 %v969, 64
      %v1114 = vpop.permute.xlu0 %1113
      %1115 = vrot.lane.b32.xlu0 %v972, 64
      %v1116 = vpop.permute.xlu0 %1115
      %1117 = vrot.lane.b32.xlu0 %v1006, 64
      %v1118 = vpop.permute.xlu0 %1117
      %1126 = vrot.lane.b32.xlu0 %v983, 64
      %v1127 = vpop.permute.xlu0 %1126
      %1128 = vrot.lane.b32.xlu0 %v1011, 64
      %v1129 = vpop.permute.xlu0 %1128
      %1132 = vrot.lane.b32.xlu0 %v996, 64
      %v1133 = vpop.permute.xlu0 %1132
      %1134 = vrot.lane.b32.xlu0 %v1019, 64
      %v1135 = vpop.permute.xlu0 %1134
      %1138 = vrot.lane.b32.xlu0 %v876, 64
      %v1139 = vpop.permute.xlu0 %1138
      %vm1141 = vcmask 523264
      %v1142 = vsel %vm1141, 0.0, %v1028
      %v1143 = vsel %vm1141, %v870, %v1030
      %v1144 = vsel %vm1141, %v871, %v1032
      %v1145 = vsel %vm1141, %v872, %v1034
      %v1146 = vsel %vm1141, %v873, %v1036
      %v1147 = vsel %vm1141, %v874, %v1038
      %v1148 = vsel %vm1141, %v915, %v1046
      %v1149 = vsel %vm1141, %v918, %v1048
      %v1150 = vsel %vm1141, %v921, %v1050
      %v1151 = vsel %vm1141, %v924, %v1052
      %v1152 = vsel %vm1141, %v927, %v1054
      %v1153 = vsel %vm1141, %v930, %v1056
      %v1154 = vsel %vm1141, %v957, %v1064
      %v1155 = vsel %vm1141, %v957, %v1066
      %v1156 = vsel %vm1141, %v960, %v1068
      %v1157 = vsel %vm1141, %v963, %v1070
      %v1158 = vsel %vm1141, %v966, %v1072
      %v1159 = vsel %vm1141, %v969, %v1074
      %v1160 = vsel %vm1141, %v972, %v1076
      %v1161 = vsel %vm1141, %v897, %v1085
      %v1162 = vsel %vm1141, %v900, %v1087
      %v1163 = vsel %vm1141, %v903, %v1089
      %v1164 = vsel %vm1141, %v906, %v1091
      %v1165 = vsel %vm1141, %v909, %v1093
      %v1166 = vsel %vm1141, %v912, %v1095
      %v1167 = vsel %vm1141, %v983, %v1097
      %v1168 = vsel %vm1141, %v939, %v1106
      %v1169 = vsel %vm1141, %v942, %v1108
      %v1170 = vsel %vm1141, %v945, %v1110
      %v1171 = vsel %vm1141, %v948, %v1112
      %v1172 = vsel %vm1141, %v951, %v1114
      %v1173 = vsel %vm1141, %v954, %v1116
      %v1174 = vsel %vm1141, %v996, %v1118
      %v1175 = vsel %vm1141, %v875, %v1127
      %v1176 = vsel %vm1141, %v876, %v1129
      %v1177 = vsel %vm1141, %v993, %v1133
      %v1178 = vsel %vm1141, %v1014, %v1135
      %v1179 = vsel %vm1141, %v1006, %v1139
      %v1180 = vsel %vm1141, %v1022, %v1064
      %1181 = vrot.lane.b32.xlu0 %v1014, 64
      %v1182 = vpop.permute.xlu0 %1181
      %1184 = vrot.lane.b32.xlu0 %v1022, 64
      %v1185 = vpop.permute.xlu0 %1184
      %v1187 = vsel %vm1141, %v1011, %v1182
      %v1188 = vsel %vm1141, %v1019, %v1185
      %v1189 = vpack.c.bf16 %v1142, %v1142
      %v1190 = vpack.c.bf16 %v1148, %v1148
      %v1191 = vpack.c.bf16 %v1155, %v1154
      %v1192 = vpack.c.bf16 %v1162, %v1161
      %v1193 = vpack.c.bf16 %v1169, %v1168
      %v1194 = vpack.c.bf16 %v1144, %v1143
      %v1195 = vpack.c.bf16 %v1150, %v1149
      %v1196 = vpack.c.bf16 %v1157, %v1156
      %v1197 = vpack.c.bf16 %v1164, %v1163
      %v1198 = vpack.c.bf16 %v1171, %v1170
      %v1199 = vpack.c.bf16 %v1146, %v1145
      %v1200 = vpack.c.bf16 %v1152, %v1151
      %v1201 = vpack.c.bf16 %v969, %v966
      %v1202 = vpack.c.bf16 %v1159, %v1158
      %v1203 = vpack.c.bf16 %v1166, %v1165
      %v1204 = vpack.c.bf16 %v1173, %v1172
      %v1205 = vpack.c.bf16 %v1175, %v1147
      %v1206 = vpack.c.bf16 %v1177, %v1153
      %v1207 = vpack.c.bf16 %v1006, %v972
      %v1208 = vpack.c.bf16 %v1179, %v1160
      %v1209 = vpack.c.bf16 %v1187, %v1167
      %v1210 = vpack.c.bf16 %v1188, %v1174
      %v1211 = vpack.c.bf16 %v1142, %v1176
      %v1212 = vpack.c.bf16 %v1148, %v1178
      %v1213 = vpack.c.bf16 %v957, %v1022
      %v1214 = vpack.c.bf16 %v1147, %v1147
      %v1215 = vpack.c.bf16 %v1153, %v1153
      %v1216 = vpack.c.bf16 %v1160, %v1160
      %v1217 = vpack.c.bf16 %v1167, %v1167
      %v1218 = vpack.c.bf16 %v1174, %v1174
      %v1219 = vpack.c.bf16 %v1176, %v1176
      %v1220 = vpack.c.bf16 %v1178, %v1178
      %v1221 = vpack.c.bf16 %v1180, %v1180
      %v1222 = vpack.c.bf16 %v1161, %v1161
      %v1223 = vpack.c.bf16 %v1168, %v1168
      %v1224 = vpack.c.bf16 %v957, %v957
      %v1225 = vld [vmem:[%s4] sm:$0xf]
      %v1226 = vld [vmem:[%s4 + $0x4] sm:$0xf]
      %v1227 = vld [vmem:[%s4 + $0x8] sm:$0xf]
      %v1228 = vld [vmem:[%s4 + $0xc] sm:$0xf]
      %v1229 = vld [vmem:[%s4 + $0x10] sm:$0xf]
      %v1230 = vld [vmem:[%s4 + $0x14] sm:$0xf]
      %v1231 = vld [vmem:[%s4 + $0x18] sm:$0xf]
      %v1232 = vld [vmem:[%s4 + $0x1c] sm:$0xf]
      %v1233 = vld [vmem:[%s4 + $0x20] sm:$0xf]
      %v1234 = vld [vmem:[%s4 + $0x24] sm:$0xf]
      %v1235 = vld [vmem:[%s4 + $0x28] sm:$0xf]
      %v1236 = vld [vmem:[%s4 + $0x2c] sm:$0xf]
      %v1237 = vld [vmem:[%s4 + $0x30] sm:$0xf]
      %v1238 = vld [vmem:[%s4 + $0x34] sm:$0xf]
      %v1239 = vld [vmem:[%s4 + $0x38] sm:$0xf]
      %v1240 = vld [vmem:[%s4 + $0x3c] sm:$0xf]
      %v1241 = vld [vmem:[%s4 + $0x40] sm:$0xf]
      %v1242 = vld [vmem:[%s4 + $0x44] sm:$0xf]
      %v1243 = vld [vmem:[%s4 + $0x48] sm:$0xf]
      %v1244 = vld [vmem:[%s4 + $0x4c] sm:$0xf]
      %v1245 = vld [vmem:[%s4 + $0x50] sm:$0xf]
      %v1246 = vld [vmem:[%s4 + $0x54] sm:$0xf]
      %v1247 = vld [vmem:[%s4 + $0x58] sm:$0xf]
      %v1248 = vld [vmem:[%s4 + $0x5c] sm:$0xf]
      %v1249 = vld [vmem:[%s4 + $0x60] sm:$0xf]
      %v1250 = vld [vmem:[%s4 + $0x64] sm:$0xf]
      %v1251 = vld [vmem:[%s4 + $0x68] sm:$0xf]
      %v1252 = vld [vmem:[%s4 + $0x6c] sm:$0xf]
      %v1253 = vld [vmem:[%s4 + $0x70] sm:$0xf]
      %v1254 = vld [vmem:[%s4 + $0x74] sm:$0xf]
      %v1255 = vld [vmem:[%s4 + $0x78] sm:$0xf]
      %v1256 = vld [vmem:[%s4 + $0x7c] sm:$0xf]
      %v1257 = vld [vmem:[%s4 + $0x80] sm:$0xf]
      %v1258 = vld [vmem:[%s4 + $0x84] sm:$0xf]
      %v1259 = vld [vmem:[%s4 + $0x88] sm:$0xf]
      %v1260 = vld [vmem:[%s4 + $0x8c] sm:$0xf]
      %v1261 = vld [vmem:[%s4 + $0x90] sm:$0xf]
      %v1262 = vld [vmem:[%s4 + $0x94] sm:$0xf]
      %v1263 = vld [vmem:[%s4 + $0x98] sm:$0xf]
      %v1264 = vld [vmem:[%s4 + $0x9c] sm:$0xf]
      %v1265 = vld [vmem:[%s4 + $0xa0] sm:$0xf]
      %v1266 = vld [vmem:[%s4 + $0xa4] sm:$0xf]
      %v1267 = vld [vmem:[%s4 + $0xa8] sm:$0xf]
      %v1268 = vld [vmem:[%s4 + $0xac] sm:$0xf]
      %v1269 = vld [vmem:[%s4 + $0xb0] sm:$0xf]
      %v1270 = vld [vmem:[%s4 + $0xb4] sm:$0xf]
      %v1271 = vld [vmem:[%s4 + $0xb8] sm:$0xf]
      %v1272 = vld [vmem:[%s4 + $0xbc] sm:$0xf]
      %v1273 = vld [vmem:[%s4 + $0xc0] sm:$0xf]
      %v1274 = vld [vmem:[%s4 + $0xc4] sm:$0xf]
      %v1275 = vld [vmem:[%s4 + $0xc8] sm:$0xf]
      %v1276 = vld [vmem:[%s4 + $0xcc] sm:$0xf]
      %v1277 = vld [vmem:[%s4 + $0xd0] sm:$0xf]
      %v1278 = vld [vmem:[%s4 + $0xd4] sm:$0xf]
      %v1279 = vld [vmem:[%s4 + $0xd8] sm:$0xf]
      %v1280 = vld [vmem:[%s4 + $0xdc] sm:$0xf]
      %v1281 = vld [vmem:[%s4 + $0xe0] sm:$0xf]
      %v1282 = vld [vmem:[%s4 + $0xe4] sm:$0xf]
      %v1283 = vld [vmem:[%s4 + $0xe8] sm:$0xf]
      %v1284 = vld [vmem:[%s4 + $0xec] sm:$0xf]
      %v1285 = vld [vmem:[%s4 + $0xf0] sm:$0xf]
      %v1286 = vld [vmem:[%s4 + $0xf4] sm:$0xf]
      %v1287 = vld [vmem:[%s4 + $0xf8] sm:$0xf]
      %v1288 = vld [vmem:[%s4 + $0xfc] sm:$0xf]
      %v1289 = vld [vmem:[%s4 + $0x100] sm:$0xf]
      %v1290 = vld [vmem:[%s4 + $0x104] sm:$0xf]
      %v1291 = vld [vmem:[%s4 + $0x108] sm:$0xf]
      %v1292 = vld [vmem:[%s4 + $0x10c] sm:$0xf]
      %v1293 = vld [vmem:[%s4 + $0x110] sm:$0xf]
      %v1294 = vld [vmem:[%s4 + $0x114] sm:$0xf]
      %v1295 = vld [vmem:[%s4 + $0x118] sm:$0xf]
      %v1296 = vld [vmem:[%s4 + $0x11c] sm:$0xf]
      %v1297 = vld [vmem:[%s4 + $0x120] sm:$0xf]
      %v1298 = vld [vmem:[%s4 + $0x124] sm:$0xf]
      %v1299 = vld [vmem:[%s4 + $0x128] sm:$0xf]
      %v1300 = vld [vmem:[%s4 + $0x12c] sm:$0xf]
      %v1301 = vld [vmem:[%s4 + $0x130] sm:$0xf]
      %v1302 = vld [vmem:[%s4 + $0x134] sm:$0xf]
      %v1303 = vld [vmem:[%s4 + $0x138] sm:$0xf]
      %v1304 = vld [vmem:[%s4 + $0x13c] sm:$0xf]
      %v1305 = vld [vmem:[%s4 + $0x140] sm:$0xf]
      %v1306 = vld [vmem:[%s4 + $0x144] sm:$0xf]
      %v1307 = vld [vmem:[%s4 + $0x148] sm:$0xf]
      %v1308 = vld [vmem:[%s4 + $0x14c] sm:$0xf]
      %v1309 = vld [vmem:[%s4 + $0x150] sm:$0xf]
      %v1310 = vld [vmem:[%s4 + $0x154] sm:$0xf]
      %v1311 = vld [vmem:[%s4 + $0x158] sm:$0xf]
      %v1312 = vld [vmem:[%s4 + $0x15c] sm:$0xf]
      %v1313 = vld [vmem:[%s4 + $0x160] sm:$0xf]
      %v1314 = vld [vmem:[%s4 + $0x164] sm:$0xf]
      %v1315 = vld [vmem:[%s4 + $0x168] sm:$0xf]
      %v1316 = vld [vmem:[%s4 + $0x16c] sm:$0xf]
      %v1317 = vld [vmem:[%s4 + $0x170] sm:$0xf]
      %v1318 = vld [vmem:[%s4 + $0x174] sm:$0xf]
      %v1319 = vld [vmem:[%s4 + $0x178] sm:$0xf]
      %v1320 = vld [vmem:[%s4 + $0x17c] sm:$0xf]
      %v1321 = vld [vmem:[%s4 + $0x180] sm:$0xf]
      %v1322 = vld [vmem:[%s4 + $0x184] sm:$0xf]
      %v1323 = vld [vmem:[%s4 + $0x188] sm:$0xf]
      %v1324 = vld [vmem:[%s4 + $0x18c] sm:$0xf]
      %v1325 = vld [vmem:[%s4 + $0x190] sm:$0xf]
      %v1326 = vld [vmem:[%s4 + $0x194] sm:$0xf]
      %v1327 = vld [vmem:[%s4 + $0x198] sm:$0xf]
      %v1328 = vld [vmem:[%s4 + $0x19c] sm:$0xf]
      %v1329 = vld [vmem:[%s4 + $0x1a0] sm:$0xf]
      %v1330 = vld [vmem:[%s4 + $0x1a4] sm:$0xf]
      %v1331 = vld [vmem:[%s4 + $0x1a8] sm:$0xf]
      %v1332 = vld [vmem:[%s4 + $0x1ac] sm:$0xf]
      %v1333 = vld [vmem:[%s4 + $0x1b0] sm:$0xf]
      %v1334 = vld [vmem:[%s4 + $0x1b4] sm:$0xf]
      %v1335 = vld [vmem:[%s4 + $0x1b8] sm:$0xf]
      %v1336 = vld [vmem:[%s4 + $0x1bc] sm:$0xf]
      %v1337 = vld [vmem:[%s4 + $0x1c0] sm:$0xf]
      %v1338 = vld [vmem:[%s4 + $0x1c4] sm:$0xf]
      %v1339 = vld [vmem:[%s4 + $0x1c8] sm:$0xf]
      %v1340 = vld [vmem:[%s4 + $0x1cc] sm:$0xf]
      %v1341 = vld [vmem:[%s4 + $0x1d0] sm:$0xf]
      %v1342 = vld [vmem:[%s4 + $0x1d4] sm:$0xf]
      %v1343 = vld [vmem:[%s4 + $0x1d8] sm:$0xf]
      %v1344 = vld [vmem:[%s4 + $0x1dc] sm:$0xf]
      %v1345 = vld [vmem:[%s4 + $0x1e0] sm:$0xf]
      %v1346 = vld [vmem:[%s4 + $0x1e4] sm:$0xf]
      %v1347 = vld [vmem:[%s4 + $0x1e8] sm:$0xf]
      %v1348 = vld [vmem:[%s4 + $0x1ec] sm:$0xf]
      %v1349 = vld [vmem:[%s4 + $0x1f0] sm:$0xf]
      %v1350 = vld [vmem:[%s4 + $0x1f4] sm:$0xf]
      %v1351 = vld [vmem:[%s4 + $0x1f8] sm:$0xf]
      %v1352 = vld [vmem:[%s4 + $0x1fc] sm:$0xf]
      %v1353 = vld [vmem:[%s4 + $0x200] sm:$0xf]
      %v1354 = vld [vmem:[%s4 + $0x204] sm:$0xf]
      %v1355 = vld [vmem:[%s4 + $0x208] sm:$0xf]
      %v1356 = vld [vmem:[%s4 + $0x20c] sm:$0xf]
      %v1357 = vld [vmem:[%s4 + $0x210] sm:$0xf]
      %v1358 = vld [vmem:[%s4 + $0x214] sm:$0xf]
      %v1359 = vld [vmem:[%s4 + $0x218] sm:$0xf]
      %v1360 = vld [vmem:[%s4 + $0x21c] sm:$0xf]
      %v1361 = vld [vmem:[%s4 + $0x220] sm:$0xf]
      %v1362 = vld [vmem:[%s4 + $0x224] sm:$0xf]
      %v1363 = vld [vmem:[%s4 + $0x228] sm:$0xf]
      %v1364 = vld [vmem:[%s4 + $0x22c] sm:$0xf]
      %v1365 = vld [vmem:[%s4 + $0x230] sm:$0xf]
      %v1366 = vld [vmem:[%s4 + $0x234] sm:$0xf]
      %v1367 = vld [vmem:[%s4 + $0x238] sm:$0xf]
      %v1368 = vld [vmem:[%s4 + $0x23c] sm:$0xf]
      %v1369 = vld [vmem:[%s4 + $0x240] sm:$0xf]
      %v1370 = vld [vmem:[%s4 + $0x244] sm:$0xf]
      %v1371 = vld [vmem:[%s4 + $0x248] sm:$0xf]
      %v1372 = vld [vmem:[%s4 + $0x24c] sm:$0xf]
      %v1373 = vld [vmem:[%s4 + $0x250] sm:$0xf]
      %v1374 = vld [vmem:[%s4 + $0x254] sm:$0xf]
      %v1375 = vld [vmem:[%s4 + $0x258] sm:$0xf]
      %v1376 = vld [vmem:[%s4 + $0x25c] sm:$0xf]
      %v1377 = vld [vmem:[%s4 + $0x260] sm:$0xf]
      %v1378 = vld [vmem:[%s4 + $0x264] sm:$0xf]
      %v1379 = vld [vmem:[%s4 + $0x268] sm:$0xf]
      %v1380 = vld [vmem:[%s4 + $0x26c] sm:$0xf]
      %v1381 = vld [vmem:[%s4 + $0x270] sm:$0xf]
      %v1382 = vld [vmem:[%s4 + $0x274] sm:$0xf]
      %v1383 = vld [vmem:[%s4 + $0x278] sm:$0xf]
      %v1384 = vld [vmem:[%s4 + $0x27c] sm:$0xf]
      %v1385 = vld [vmem:[%s4 + $0x280] sm:$0xf]
      %v1386 = vld [vmem:[%s4 + $0x284] sm:$0xf]
      %v1387 = vld [vmem:[%s4 + $0x288] sm:$0xf]
      %v1388 = vld [vmem:[%s4 + $0x28c] sm:$0xf]
      %v1389 = vld [vmem:[%s4 + $0x290] sm:$0xf]
      %v1390 = vld [vmem:[%s4 + $0x294] sm:$0xf]
      %v1391 = vld [vmem:[%s4 + $0x298] sm:$0xf]
      %v1392 = vld [vmem:[%s4 + $0x29c] sm:$0xf]
      %v1393 = vld [vmem:[%s4 + $0x2a0] sm:$0xf]
      %v1394 = vld [vmem:[%s4 + $0x2a4] sm:$0xf]
      %v1395 = vld [vmem:[%s4 + $0x2a8] sm:$0xf]
      %v1396 = vld [vmem:[%s4 + $0x2ac] sm:$0xf]
      %v1397 = vld [vmem:[%s4 + $0x2b0] sm:$0xf]
      %v1398 = vld [vmem:[%s4 + $0x2b4] sm:$0xf]
      %v1399 = vld [vmem:[%s4 + $0x2b8] sm:$0xf]
      %v1400 = vld [vmem:[%s4 + $0x2bc] sm:$0xf]
      %v1401 = vld [vmem:[%s4 + $0x2c0] sm:$0xf]
      %v1402 = vld [vmem:[%s4 + $0x2c4] sm:$0xf]
      %v1403 = vld [vmem:[%s4 + $0x2c8] sm:$0xf]
      %v1404 = vld [vmem:[%s4 + $0x2cc] sm:$0xf]
      %v1405 = vld [vmem:[%s4 + $0x2d0] sm:$0xf]
      %v1406 = vld [vmem:[%s4 + $0x2d4] sm:$0xf]
      %v1407 = vld [vmem:[%s4 + $0x2d8] sm:$0xf]
      %v1408 = vld [vmem:[%s4 + $0x2dc] sm:$0xf]
      %v1409 = vld [vmem:[%s4 + $0x2e0] sm:$0xf]
      %v1410 = vld [vmem:[%s4 + $0x2e4] sm:$0xf]
      %v1411 = vld [vmem:[%s4 + $0x2e8] sm:$0xf]
      %v1412 = vld [vmem:[%s4 + $0x2ec] sm:$0xf]
      %v1413 = vld [vmem:[%s4 + $0x2f0] sm:$0xf]
      %v1414 = vld [vmem:[%s4 + $0x2f4] sm:$0xf]
      %v1415 = vld [vmem:[%s4 + $0x2f8] sm:$0xf]
      %v1416 = vld [vmem:[%s4 + $0x2fc] sm:$0xf]
      %v1417 = vld [vmem:[%s4 + $0x300] sm:$0xf]
      %v1418 = vld [vmem:[%s4 + $0x304] sm:$0xf]
      %v1419 = vld [vmem:[%s4 + $0x308] sm:$0xf]
      %v1420 = vld [vmem:[%s4 + $0x30c] sm:$0xf]
      %v1421 = vld [vmem:[%s4 + $0x310] sm:$0xf]
      %v1422 = vld [vmem:[%s4 + $0x314] sm:$0xf]
      %v1423 = vld [vmem:[%s4 + $0x318] sm:$0xf]
      %v1424 = vld [vmem:[%s4 + $0x31c] sm:$0xf]
      %v1425 = vld [vmem:[%s5] sm:$0x1]
      %v1427 = vlaneseq
      %v1428 = vshrl.u32 %v1427, 7
      %v1429 = vsub.s32 0, %v1428
      %v1430 = vrot.slane %v1425, %v1429
      %v1632 = vunpack.c.l.b16 %v1225
      %v1633 = vunpack.c.l.b16 %v1226
      %v1634 = vunpack.c.l.b16 %v1227
      %v1635 = vunpack.c.l.b16 %v1228
      %v1636 = vunpack.c.l.b16 %v1229
      %v1637 = vunpack.c.l.b16 %v1230
      %v1638 = vunpack.c.l.b16 %v1231
      %v1639 = vunpack.c.l.b16 %v1232
      %v1640 = vunpack.c.l.b16 %v1233
      %v1641 = vunpack.c.l.b16 %v1234
      %v1642 = vunpack.c.l.b16 %v1235
      %v1643 = vunpack.c.l.b16 %v1236
      %v1644 = vunpack.c.l.b16 %v1237
      %v1645 = vunpack.c.l.b16 %v1238
      %v1646 = vunpack.c.l.b16 %v1239
      %v1647 = vunpack.c.l.b16 %v1240
      %v1648 = vunpack.c.l.b16 %v1241
      %v1649 = vunpack.c.l.b16 %v1242
      %v1650 = vunpack.c.l.b16 %v1243
      %v1651 = vunpack.c.l.b16 %v1244
      %v1652 = vunpack.c.l.b16 %v1245
      %v1653 = vunpack.c.l.b16 %v1246
      %v1654 = vunpack.c.l.b16 %v1247
      %v1655 = vunpack.c.l.b16 %v1248
      %v1656 = vunpack.c.l.b16 %v1249
      %v1657 = vunpack.c.l.b16 %v1250
      %v1658 = vunpack.c.l.b16 %v1251
      %v1659 = vunpack.c.l.b16 %v1252
      %v1660 = vunpack.c.l.b16 %v1253
      %v1661 = vunpack.c.l.b16 %v1254
      %v1662 = vunpack.c.l.b16 %v1255
      %v1663 = vunpack.c.l.b16 %v1256
      %v1664 = vunpack.c.l.b16 %v1257
      %v1665 = vunpack.c.l.b16 %v1258
      %v1666 = vunpack.c.l.b16 %v1259
      %v1667 = vunpack.c.l.b16 %v1260
      %v1668 = vunpack.c.l.b16 %v1261
      %v1669 = vunpack.c.l.b16 %v1262
      %v1670 = vunpack.c.l.b16 %v1263
      %v1671 = vunpack.c.l.b16 %v1264
      %v1672 = vunpack.c.l.b16 %v1265
      %v1673 = vunpack.c.l.b16 %v1266
      %v1674 = vunpack.c.l.b16 %v1267
      %v1675 = vunpack.c.l.b16 %v1268
      %v1676 = vunpack.c.l.b16 %v1269
      %v1677 = vunpack.c.l.b16 %v1270
      %v1678 = vunpack.c.l.b16 %v1271
      %v1679 = vunpack.c.l.b16 %v1272
      %v1680 = vunpack.c.l.b16 %v1273
      %v1681 = vunpack.c.l.b16 %v1274
      %v1682 = vunpack.c.l.b16 %v1275
      %v1683 = vunpack.c.l.b16 %v1276
      %v1684 = vunpack.c.l.b16 %v1277
      %v1685 = vunpack.c.l.b16 %v1278
      %v1686 = vunpack.c.l.b16 %v1279
      %v1687 = vunpack.c.l.b16 %v1280
      %v1688 = vunpack.c.l.b16 %v1281
      %v1689 = vunpack.c.l.b16 %v1282
      %v1690 = vunpack.c.l.b16 %v1283
      %v1691 = vunpack.c.l.b16 %v1284
      %v1692 = vunpack.c.l.b16 %v1285
      %v1693 = vunpack.c.l.b16 %v1286
      %v1694 = vunpack.c.l.b16 %v1287
      %v1695 = vunpack.c.l.b16 %v1288
      %v1696 = vunpack.c.l.b16 %v1289
      %v1697 = vunpack.c.l.b16 %v1290
      %v1698 = vunpack.c.l.b16 %v1291
      %v1699 = vunpack.c.l.b16 %v1292
      %v1700 = vunpack.c.l.b16 %v1293
      %v1701 = vunpack.c.l.b16 %v1294
      %v1702 = vunpack.c.l.b16 %v1295
      %v1703 = vunpack.c.l.b16 %v1296
      %v1704 = vunpack.c.l.b16 %v1297
      %v1705 = vunpack.c.l.b16 %v1298
      %v1706 = vunpack.c.l.b16 %v1299
      %v1707 = vunpack.c.l.b16 %v1300
      %v1708 = vunpack.c.l.b16 %v1301
      %v1709 = vunpack.c.l.b16 %v1302
      %v1710 = vunpack.c.l.b16 %v1303
      %v1711 = vunpack.c.l.b16 %v1304
      %v1712 = vunpack.c.l.b16 %v1305
      %v1713 = vunpack.c.l.b16 %v1306
      %v1714 = vunpack.c.l.b16 %v1307
      %v1715 = vunpack.c.l.b16 %v1308
      %v1716 = vunpack.c.l.b16 %v1309
      %v1717 = vunpack.c.l.b16 %v1310
      %v1718 = vunpack.c.l.b16 %v1311
      %v1719 = vunpack.c.l.b16 %v1312
      %v1720 = vunpack.c.l.b16 %v1313
      %v1721 = vunpack.c.l.b16 %v1314
      %v1722 = vunpack.c.l.b16 %v1315
      %v1723 = vunpack.c.l.b16 %v1316
      %v1724 = vunpack.c.l.b16 %v1317
      %v1725 = vunpack.c.l.b16 %v1318
      %v1726 = vunpack.c.l.b16 %v1319
      %v1727 = vunpack.c.l.b16 %v1320
      %v1728 = vunpack.c.l.b16 %v1321
      %v1729 = vunpack.c.l.b16 %v1322
      %v1730 = vunpack.c.l.b16 %v1323
      %v1731 = vunpack.c.l.b16 %v1324
      %v1732 = vunpack.c.l.b16 %v1325
      %v1733 = vunpack.c.l.b16 %v1326
      %v1734 = vunpack.c.l.b16 %v1327
      %v1735 = vunpack.c.l.b16 %v1328
      %v1736 = vunpack.c.l.b16 %v1329
      %v1737 = vunpack.c.l.b16 %v1330
      %v1738 = vunpack.c.l.b16 %v1331
      %v1739 = vunpack.c.l.b16 %v1332
      %v1740 = vunpack.c.l.b16 %v1333
      %v1741 = vunpack.c.l.b16 %v1334
      %v1742 = vunpack.c.l.b16 %v1335
      %v1743 = vunpack.c.l.b16 %v1336
      %v1744 = vunpack.c.l.b16 %v1337
      %v1745 = vunpack.c.l.b16 %v1338
      %v1746 = vunpack.c.l.b16 %v1339
      %v1747 = vunpack.c.l.b16 %v1340
      %v1748 = vunpack.c.l.b16 %v1341
      %v1749 = vunpack.c.l.b16 %v1342
      %v1750 = vunpack.c.l.b16 %v1343
      %v1751 = vunpack.c.l.b16 %v1344
      %v1752 = vunpack.c.l.b16 %v1345
      %v1753 = vunpack.c.l.b16 %v1346
      %v1754 = vunpack.c.l.b16 %v1347
      %v1755 = vunpack.c.l.b16 %v1348
      %v1756 = vunpack.c.l.b16 %v1349
      %v1757 = vunpack.c.l.b16 %v1350
      %v1758 = vunpack.c.l.b16 %v1351
      %v1759 = vunpack.c.l.b16 %v1352
      %v1760 = vunpack.c.l.b16 %v1353
      %v1761 = vunpack.c.l.b16 %v1354
      %v1762 = vunpack.c.l.b16 %v1355
      %v1763 = vunpack.c.l.b16 %v1356
      %v1764 = vunpack.c.l.b16 %v1357
      %v1765 = vunpack.c.l.b16 %v1358
      %v1766 = vunpack.c.l.b16 %v1359
      %v1767 = vunpack.c.l.b16 %v1360
      %v1768 = vunpack.c.l.b16 %v1361
      %v1769 = vunpack.c.l.b16 %v1362
      %v1770 = vunpack.c.l.b16 %v1363
      %v1771 = vunpack.c.l.b16 %v1364
      %v1772 = vunpack.c.l.b16 %v1365
      %v1773 = vunpack.c.l.b16 %v1366
      %v1774 = vunpack.c.l.b16 %v1367
      %v1775 = vunpack.c.l.b16 %v1368
      %v1776 = vunpack.c.l.b16 %v1369
      %v1777 = vunpack.c.l.b16 %v1370
      %v1778 = vunpack.c.l.b16 %v1371
      %v1779 = vunpack.c.l.b16 %v1372
      %v1780 = vunpack.c.l.b16 %v1373
      %v1781 = vunpack.c.l.b16 %v1374
      %v1782 = vunpack.c.l.b16 %v1375
      %v1783 = vunpack.c.l.b16 %v1376
      %v1784 = vunpack.c.l.b16 %v1377
      %v1785 = vunpack.c.l.b16 %v1378
      %v1786 = vunpack.c.l.b16 %v1379
      %v1787 = vunpack.c.l.b16 %v1380
      %v1788 = vunpack.c.l.b16 %v1381
      %v1789 = vunpack.c.l.b16 %v1382
      %v1790 = vunpack.c.l.b16 %v1383
      %v1791 = vunpack.c.l.b16 %v1384
      %v1792 = vunpack.c.l.b16 %v1385
      %v1793 = vunpack.c.l.b16 %v1386
      %v1794 = vunpack.c.l.b16 %v1387
      %v1795 = vunpack.c.l.b16 %v1388
      %v1796 = vunpack.c.l.b16 %v1389
      %v1797 = vunpack.c.l.b16 %v1390
      %v1798 = vunpack.c.l.b16 %v1391
      %v1799 = vunpack.c.l.b16 %v1392
      %v1800 = vunpack.c.l.b16 %v1393
      %v1801 = vunpack.c.l.b16 %v1394
      %v1802 = vunpack.c.l.b16 %v1395
      %v1803 = vunpack.c.l.b16 %v1396
      %v1804 = vunpack.c.l.b16 %v1397
      %v1805 = vunpack.c.l.b16 %v1398
      %v1806 = vunpack.c.l.b16 %v1399
      %v1807 = vunpack.c.l.b16 %v1400
      %v1808 = vunpack.c.l.b16 %v1401
      %v1809 = vunpack.c.l.b16 %v1402
      %v1810 = vunpack.c.l.b16 %v1403
      %v1811 = vunpack.c.l.b16 %v1404
      %v1812 = vunpack.c.l.b16 %v1405
      %v1813 = vunpack.c.l.b16 %v1406
      %v1814 = vunpack.c.l.b16 %v1407
      %v1815 = vunpack.c.l.b16 %v1408
      %v1816 = vunpack.c.l.b16 %v1409
      %v1817 = vunpack.c.l.b16 %v1410
      %v1818 = vunpack.c.l.b16 %v1411
      %v1819 = vunpack.c.l.b16 %v1412
      %v1820 = vunpack.c.l.b16 %v1413
      %v1821 = vunpack.c.l.b16 %v1414
      %v1822 = vunpack.c.l.b16 %v1415
      %v1823 = vunpack.c.l.b16 %v1416
      %v1824 = vunpack.c.l.b16 %v1417
      %v1825 = vunpack.c.l.b16 %v1418
      %v1826 = vunpack.c.l.b16 %v1419
      %v1827 = vunpack.c.l.b16 %v1420
      %v1828 = vunpack.c.l.b16 %v1421
      %v1829 = vunpack.c.l.b16 %v1422
      %v1830 = vunpack.c.l.b16 %v1423
      %v1831 = vunpack.c.l.b16 %v1424
      %v1832 = vpack.c.b16 %v1633, %v1632
      %v1833 = vpack.c.b16 %v1635, %v1634
      %v1834 = vpack.c.b16 %v1637, %v1636
      %v1835 = vpack.c.b16 %v1639, %v1638
      %v1836 = vpack.c.b16 %v1641, %v1640
      %v1837 = vpack.c.b16 %v1643, %v1642
      %v1838 = vpack.c.b16 %v1645, %v1644
      %v1839 = vpack.c.b16 %v1647, %v1646
      %v1840 = vpack.c.b16 %v1649, %v1648
      %v1841 = vpack.c.b16 %v1651, %v1650
      %v1842 = vpack.c.b16 %v1653, %v1652
      %v1843 = vpack.c.b16 %v1655, %v1654
      %v1844 = vpack.c.b16 %v1657, %v1656
      %v1845 = vpack.c.b16 %v1659, %v1658
      %v1846 = vpack.c.b16 %v1661, %v1660
      %v1847 = vpack.c.b16 %v1663, %v1662
      %v1848 = vpack.c.b16 %v1665, %v1664
      %v1849 = vpack.c.b16 %v1667, %v1666
      %v1850 = vpack.c.b16 %v1669, %v1668
      %v1851 = vpack.c.b16 %v1671, %v1670
      %v1852 = vpack.c.b16 %v1673, %v1672
      %v1853 = vpack.c.b16 %v1675, %v1674
      %v1854 = vpack.c.b16 %v1677, %v1676
      %v1855 = vpack.c.b16 %v1679, %v1678
      %v1856 = vpack.c.b16 %v1681, %v1680
      %v1857 = vpack.c.b16 %v1683, %v1682
      %v1858 = vpack.c.b16 %v1685, %v1684
      %v1859 = vpack.c.b16 %v1687, %v1686
      %v1860 = vpack.c.b16 %v1689, %v1688
      %v1861 = vpack.c.b16 %v1691, %v1690
      %v1862 = vpack.c.b16 %v1693, %v1692
      %v1863 = vpack.c.b16 %v1695, %v1694
      %v1864 = vpack.c.b16 %v1697, %v1696
      %v1865 = vpack.c.b16 %v1699, %v1698
      %v1866 = vpack.c.b16 %v1701, %v1700
      %v1867 = vpack.c.b16 %v1703, %v1702
      %v1868 = vpack.c.b16 %v1705, %v1704
      %v1869 = vpack.c.b16 %v1707, %v1706
      %v1870 = vpack.c.b16 %v1709, %v1708
      %v1871 = vpack.c.b16 %v1711, %v1710
      %v1872 = vpack.c.b16 %v1713, %v1712
      %v1873 = vpack.c.b16 %v1715, %v1714
      %v1874 = vpack.c.b16 %v1717, %v1716
      %v1875 = vpack.c.b16 %v1719, %v1718
      %v1876 = vpack.c.b16 %v1721, %v1720
      %v1877 = vpack.c.b16 %v1723, %v1722
      %v1878 = vpack.c.b16 %v1725, %v1724
      %v1879 = vpack.c.b16 %v1727, %v1726
      %v1880 = vpack.c.b16 %v1729, %v1728
      %v1881 = vpack.c.b16 %v1731, %v1730
      %v1882 = vpack.c.b16 %v1733, %v1732
      %v1883 = vpack.c.b16 %v1735, %v1734
      %v1884 = vpack.c.b16 %v1737, %v1736
      %v1885 = vpack.c.b16 %v1739, %v1738
      %v1886 = vpack.c.b16 %v1741, %v1740
      %v1887 = vpack.c.b16 %v1743, %v1742
      %v1888 = vpack.c.b16 %v1745, %v1744
      %v1889 = vpack.c.b16 %v1747, %v1746
      %v1890 = vpack.c.b16 %v1749, %v1748
      %v1891 = vpack.c.b16 %v1751, %v1750
      %v1892 = vpack.c.b16 %v1753, %v1752
      %v1893 = vpack.c.b16 %v1755, %v1754
      %v1894 = vpack.c.b16 %v1757, %v1756
      %v1895 = vpack.c.b16 %v1759, %v1758
      %v1896 = vpack.c.b16 %v1761, %v1760
      %v1897 = vpack.c.b16 %v1763, %v1762
      %v1898 = vpack.c.b16 %v1765, %v1764
      %v1899 = vpack.c.b16 %v1767, %v1766
      %v1900 = vpack.c.b16 %v1769, %v1768
      %v1901 = vpack.c.b16 %v1771, %v1770
      %v1902 = vpack.c.b16 %v1773, %v1772
      %v1903 = vpack.c.b16 %v1775, %v1774
      %v1904 = vpack.c.b16 %v1777, %v1776
      %v1905 = vpack.c.b16 %v1779, %v1778
      %v1906 = vpack.c.b16 %v1781, %v1780
      %v1907 = vpack.c.b16 %v1783, %v1782
      %v1908 = vpack.c.b16 %v1785, %v1784
      %v1909 = vpack.c.b16 %v1787, %v1786
      %v1910 = vpack.c.b16 %v1789, %v1788
      %v1911 = vpack.c.b16 %v1791, %v1790
      %v1912 = vpack.c.b16 %v1793, %v1792
      %v1913 = vpack.c.b16 %v1795, %v1794
      %v1914 = vpack.c.b16 %v1797, %v1796
      %v1915 = vpack.c.b16 %v1799, %v1798
      %v1916 = vpack.c.b16 %v1801, %v1800
      %v1917 = vpack.c.b16 %v1803, %v1802
      %v1918 = vpack.c.b16 %v1805, %v1804
      %v1919 = vpack.c.b16 %v1807, %v1806
      %v1920 = vpack.c.b16 %v1809, %v1808
      %v1921 = vpack.c.b16 %v1811, %v1810
      %v1922 = vpack.c.b16 %v1813, %v1812
      %v1923 = vpack.c.b16 %v1815, %v1814
      %v1924 = vpack.c.b16 %v1817, %v1816
      %v1925 = vpack.c.b16 %v1819, %v1818
      %v1926 = vpack.c.b16 %v1821, %v1820
      %v1927 = vpack.c.b16 %v1823, %v1822
      %v1928 = vpack.c.b16 %v1825, %v1824
      %v1929 = vpack.c.b16 %v1827, %v1826
      %v1930 = vpack.c.b16 %v1829, %v1828
      %v1931 = vpack.c.b16 %v1831, %v1830
      %v2033 = vsel %vm1141, %v1201, 0
      %v2036 = vsel %vm1141, %v1207, 0
      %v2039 = vsel %vm1141, %v1213, 0
      %v2042 = vsel %vm1141, %v1224, 0
      %2044 = vmatprep.subr.bf16.mxu0 0
      %2045 = vmatpush1.bf16.msra.mxu0 %v1839
      %2046 = vmatprep.subr.bf16.mxu0 0
      %2047 = vmatpush1.bf16.msra.mxu0 %v1838
      %2048 = vmatprep.subr.bf16.mxu0 0
      %2049 = vmatpush1.bf16.msra.mxu0 %v1837
      %2050 = vmatprep.subr.bf16.mxu0 0
      %2051 = vmatpush1.bf16.msra.mxu0 %v1836
      %2052 = vmatprep.subr.bf16.mxu0 0
      %2053 = vmatpush1.bf16.msra.mxu0 %v1835
      %2054 = vmatprep.subr.bf16.mxu0 0
      %2055 = vmatpush1.bf16.msra.mxu0 %v1834
      %2056 = vmatprep.subr.bf16.mxu0 0
      %2057 = vmatpush1.bf16.msra.mxu0 %v1833
      %2058 = vmatprep.subr.bf16.mxu0 0
      %2059 = vmatpush1.bf16.msra.mxu0 %v1832
      %2060 = vmatprep.subr.bf16.mxu0 0
      %2061 = vmatpush2.bf16.msra.mxu0 %v1847
      %2062 = vmatprep.subr.bf16.mxu0 0
      %2063 = vmatpush2.bf16.msra.mxu0 %v1846
      %2064 = vmatprep.subr.bf16.mxu0 0
      %2065 = vmatpush2.bf16.msra.mxu0 %v1845
      %2066 = vmatprep.subr.bf16.mxu0 0
      %2067 = vmatpush2.bf16.msra.mxu0 %v1844
      %2068 = vmatprep.subr.bf16.mxu0 0
      %2069 = vmatpush2.bf16.msra.mxu0 %v1843
      %2070 = vmatprep.subr.bf16.mxu0 0
      %2071 = vmatpush2.bf16.msra.mxu0 %v1842
      %2072 = vmatprep.subr.bf16.mxu0 0
      %2073 = vmatpush2.bf16.msra.mxu0 %v1841
      %2074 = vmatprep.subr.bf16.mxu0 0
      %2075 = vmatpush2.bf16.msra.mxu0 %v1840
      %2076 = vmatprep.mubr.bf16.mxu0 %v1190
      %2077 = vmatmul.mubr.bf16.gmra.mxu0 %v1189
      %v2078 = vpop.f32.mrf.mxu0
      %v2079 = vadd.f32 %v1430, %v2078
      %v2080 = vpop.f32.mrf.mxu0
      %v2081 = vpop.f32.mrf.mxu0
      %v2082 = vadd.f32 %v1430, %v2081
      %v2083 = vpop.f32.mrf.mxu0
      %2084 = vmatprep.mubr.bf16.mxu0 %v1195
      %2085 = vmatmul.mubr.bf16.gmra.mxu0 %v1194
      %v2086 = vpop.f32.mrf.mxu0
      %v2087 = vadd.f32 %v1430, %v2086
      %v2088 = vpop.f32.mrf.mxu0
      %v2089 = vpop.f32.mrf.mxu0
      %v2090 = vadd.f32 %v1430, %v2089
      %v2091 = vpop.f32.mrf.mxu0
      %2092 = vmatprep.mubr.bf16.mxu0 %v1200
      %2093 = vmatmul.mubr.bf16.gmra.mxu0 %v1199
      %v2094 = vpop.f32.mrf.mxu0
      %v2095 = vadd.f32 %v1430, %v2094
      %v2096 = vpop.f32.mrf.mxu0
      %v2097 = vpop.f32.mrf.mxu0
      %v2098 = vadd.f32 %v1430, %v2097
      %v2099 = vpop.f32.mrf.mxu0
      %2100 = vmatprep.mubr.bf16.mxu0 %v1215
      %2101 = vmatmul.mubr.bf16.gmra.mxu0 %v1214
      %v2102 = vpop.f32.mrf.mxu0
      %v2103 = vadd.f32 %v1430, %v2102
      %v2104 = vpop.f32.mrf.mxu0
      %v2105 = vpop.f32.mrf.mxu0
      %v2106 = vpop.f32.mrf.mxu0
      %2107 = vdwg.mxu0
      %2108 = vmatprep.subr.bf16.mxu0 0
      %2109 = vmatpush1.bf16.msra.mxu0 %v1855
      %2110 = vmatprep.subr.bf16.mxu0 0
      %2111 = vmatpush1.bf16.msra.mxu0 %v1854
      %2112 = vmatprep.subr.bf16.mxu0 0
      %2113 = vmatpush1.bf16.msra.mxu0 %v1853
      %2114 = vmatprep.subr.bf16.mxu0 0
      %2115 = vmatpush1.bf16.msra.mxu0 %v1852
      %2116 = vmatprep.subr.bf16.mxu0 0
      %2117 = vmatpush1.bf16.msra.mxu0 %v1851
      %2118 = vmatprep.subr.bf16.mxu0 0
      %2119 = vmatpush1.bf16.msra.mxu0 %v1850
      %2120 = vmatprep.subr.bf16.mxu0 0
      %2121 = vmatpush1.bf16.msra.mxu0 %v1849
      %2122 = vmatprep.subr.bf16.mxu0 0
      %2123 = vmatpush1.bf16.msra.mxu0 %v1848
      %2124 = vmatprep.subr.bf16.mxu0 0
      %2125 = vmatpush2.bf16.msra.mxu0 %v1863
      %2126 = vmatprep.subr.bf16.mxu0 0
      %2127 = vmatpush2.bf16.msra.mxu0 %v1862
      %2128 = vmatprep.subr.bf16.mxu0 0
      %2129 = vmatpush2.bf16.msra.mxu0 %v1861
      %2130 = vmatprep.subr.bf16.mxu0 0
      %2131 = vmatpush2.bf16.msra.mxu0 %v1860
      %2132 = vmatprep.subr.bf16.mxu0 0
      %2133 = vmatpush2.bf16.msra.mxu0 %v1859
      %2134 = vmatprep.subr.bf16.mxu0 0
      %2135 = vmatpush2.bf16.msra.mxu0 %v1858
      %2136 = vmatprep.subr.bf16.mxu0 0
      %2137 = vmatpush2.bf16.msra.mxu0 %v1857
      %2138 = vmatprep.subr.bf16.mxu0 0
      %2139 = vmatpush2.bf16.msra.mxu0 %v1856
      %2140 = vmatprep.mubr.bf16.mxu0 %v1192
      %2141 = vmatmul.mubr.bf16.gmra.mxu0 %v1191
      %v2142 = vpop.f32.mrf.mxu0
      %v2143 = vadd.f32 %v2079, %v2142
      %v2144 = vpop.f32.mrf.mxu0
      %v2145 = vpop.f32.mrf.mxu0
      %v2146 = vadd.f32 %v2082, %v2145
      %v2147 = vpop.f32.mrf.mxu0
      %2148 = vmatprep.mubr.bf16.mxu0 %v1197
      %2149 = vmatmul.mubr.bf16.gmra.mxu0 %v1196
      %v2150 = vpop.f32.mrf.mxu0
      %v2151 = vadd.f32 %v2087, %v2150
      %v2152 = vpop.f32.mrf.mxu0
      %v2153 = vpop.f32.mrf.mxu0
      %v2154 = vadd.f32 %v2090, %v2153
      %v2155 = vpop.f32.mrf.mxu0
      %2156 = vmatprep.mubr.bf16.mxu0 %v1203
      %2157 = vmatmul.mubr.bf16.gmra.mxu0 %v1202
      %v2158 = vpop.f32.mrf.mxu0
      %v2159 = vadd.f32 %v2095, %v2158
      %v2160 = vpop.f32.mrf.mxu0
      %v2161 = vpop.f32.mrf.mxu0
      %v2162 = vadd.f32 %v2098, %v2161
      %v2163 = vpop.f32.mrf.mxu0
      %2164 = vmatprep.mubr.bf16.mxu0 %v1217
      %2165 = vmatmul.mubr.bf16.gmra.mxu0 %v1216
      %v2166 = vpop.f32.mrf.mxu0
      %v2167 = vadd.f32 %v2103, %v2166
      %v2168 = vpop.f32.mrf.mxu0
      %v2169 = vpop.f32.mrf.mxu0
      %v2170 = vpop.f32.mrf.mxu0
      %2171 = vdwg.mxu0
      %2172 = vmatprep.subr.bf16.mxu0 0
      %2173 = vmatpush1.bf16.msra.mxu0 %v1871
      %2174 = vmatprep.subr.bf16.mxu0 0
      %2175 = vmatpush1.bf16.msra.mxu0 %v1870
      %2176 = vmatprep.subr.bf16.mxu0 0
      %2177 = vmatpush1.bf16.msra.mxu0 %v1869
      %2178 = vmatprep.subr.bf16.mxu0 0
      %2179 = vmatpush1.bf16.msra.mxu0 %v1868
      %2180 = vmatprep.subr.bf16.mxu0 0
      %2181 = vmatpush1.bf16.msra.mxu0 %v1867
      %2182 = vmatprep.subr.bf16.mxu0 0
      %2183 = vmatpush1.bf16.msra.mxu0 %v1866
      %2184 = vmatprep.subr.bf16.mxu0 0
      %2185 = vmatpush1.bf16.msra.mxu0 %v1865
      %2186 = vmatprep.subr.bf16.mxu0 0
      %2187 = vmatpush1.bf16.msra.mxu0 %v1864
      %2188 = vmatprep.subr.bf16.mxu0 0
      %2189 = vmatpush2.bf16.msra.mxu0 %v1879
      %2190 = vmatprep.subr.bf16.mxu0 0
      %2191 = vmatpush2.bf16.msra.mxu0 %v1878
      %2192 = vmatprep.subr.bf16.mxu0 0
      %2193 = vmatpush2.bf16.msra.mxu0 %v1877
      %2194 = vmatprep.subr.bf16.mxu0 0
      %2195 = vmatpush2.bf16.msra.mxu0 %v1876
      %2196 = vmatprep.subr.bf16.mxu0 0
      %2197 = vmatpush2.bf16.msra.mxu0 %v1875
      %2198 = vmatprep.subr.bf16.mxu0 0
      %2199 = vmatpush2.bf16.msra.mxu0 %v1874
      %2200 = vmatprep.subr.bf16.mxu0 0
      %2201 = vmatpush2.bf16.msra.mxu0 %v1873
      %2202 = vmatprep.subr.bf16.mxu0 0
      %2203 = vmatpush2.bf16.msra.mxu0 %v1872
      %2204 = vmatprep.mubr.bf16.mxu0 %v1194
      %2205 = vmatmul.mubr.bf16.gmra.mxu0 %v1193
      %v2206 = vpop.f32.mrf.mxu0
      %v2207 = vadd.f32 %v2143, %v2206
      %v2208 = vpop.f32.mrf.mxu0
      %v2209 = vpop.f32.mrf.mxu0
      %v2210 = vadd.f32 %v2146, %v2209
      %v2211 = vpop.f32.mrf.mxu0
      %2212 = vmatprep.mubr.bf16.mxu0 %v1199
      %2213 = vmatmul.mubr.bf16.gmra.mxu0 %v1198
      %v2214 = vpop.f32.mrf.mxu0
      %v2215 = vadd.f32 %v2151, %v2214
      %v2216 = vpop.f32.mrf.mxu0
      %v2217 = vpop.f32.mrf.mxu0
      %v2218 = vadd.f32 %v2154, %v2217
      %v2219 = vpop.f32.mrf.mxu0
      %2220 = vmatprep.mubr.bf16.mxu0 %v1205
      %2221 = vmatmul.mubr.bf16.gmra.mxu0 %v1204
      %v2222 = vpop.f32.mrf.mxu0
      %v2223 = vadd.f32 %v2159, %v2222
      %v2224 = vpop.f32.mrf.mxu0
      %v2225 = vpop.f32.mrf.mxu0
      %v2226 = vadd.f32 %v2162, %v2225
      %v2227 = vpop.f32.mrf.mxu0
      %2228 = vmatprep.mubr.bf16.mxu0 %v1219
      %2229 = vmatmul.mubr.bf16.gmra.mxu0 %v1218
      %v2230 = vpop.f32.mrf.mxu0
      %v2231 = vadd.f32 %v2167, %v2230
      %v2232 = vpop.f32.mrf.mxu0
      %v2233 = vpop.f32.mrf.mxu0
      %v2234 = vpop.f32.mrf.mxu0
      %2235 = vdwg.mxu0
      %2236 = vmatprep.subr.bf16.mxu0 0
      %2237 = vmatpush1.bf16.msra.mxu0 %v1887
      %2238 = vmatprep.subr.bf16.mxu0 0
      %2239 = vmatpush1.bf16.msra.mxu0 %v1886
      %2240 = vmatprep.subr.bf16.mxu0 0
      %2241 = vmatpush1.bf16.msra.mxu0 %v1885
      %2242 = vmatprep.subr.bf16.mxu0 0
      %2243 = vmatpush1.bf16.msra.mxu0 %v1884
      %2244 = vmatprep.subr.bf16.mxu0 0
      %2245 = vmatpush1.bf16.msra.mxu0 %v1883
      %2246 = vmatprep.subr.bf16.mxu0 0
      %2247 = vmatpush1.bf16.msra.mxu0 %v1882
      %2248 = vmatprep.subr.bf16.mxu0 0
      %2249 = vmatpush1.bf16.msra.mxu0 %v1881
      %2250 = vmatprep.subr.bf16.mxu0 0
      %2251 = vmatpush1.bf16.msra.mxu0 %v1880
      %2252 = vmatprep.subr.bf16.mxu0 0
      %2253 = vmatpush2.bf16.msra.mxu0 %v1895
      %2254 = vmatprep.subr.bf16.mxu0 0
      %2255 = vmatpush2.bf16.msra.mxu0 %v1894
      %2256 = vmatprep.subr.bf16.mxu0 0
      %2257 = vmatpush2.bf16.msra.mxu0 %v1893
      %2258 = vmatprep.subr.bf16.mxu0 0
      %2259 = vmatpush2.bf16.msra.mxu0 %v1892
      %2260 = vmatprep.subr.bf16.mxu0 0
      %2261 = vmatpush2.bf16.msra.mxu0 %v1891
      %2262 = vmatprep.subr.bf16.mxu0 0
      %2263 = vmatpush2.bf16.msra.mxu0 %v1890
      %2264 = vmatprep.subr.bf16.mxu0 0
      %2265 = vmatpush2.bf16.msra.mxu0 %v1889
      %2266 = vmatprep.subr.bf16.mxu0 0
      %2267 = vmatpush2.bf16.msra.mxu0 %v1888
      %2268 = vmatprep.mubr.bf16.mxu0 %v1196
      %2269 = vmatmul.mubr.bf16.gmra.mxu0 %v1195
      %v2270 = vpop.f32.mrf.mxu0
      %v2271 = vadd.f32 %v2207, %v2270
      %v2272 = vpop.f32.mrf.mxu0
      %v2273 = vpop.f32.mrf.mxu0
      %v2274 = vadd.f32 %v2210, %v2273
      %v2275 = vpop.f32.mrf.mxu0
      %2276 = vmatprep.mubr.bf16.mxu0 %v1202
      %2277 = vmatmul.mubr.bf16.gmra.mxu0 %v1200
      %v2278 = vpop.f32.mrf.mxu0
      %v2279 = vadd.f32 %v2215, %v2278
      %v2280 = vpop.f32.mrf.mxu0
      %v2281 = vpop.f32.mrf.mxu0
      %v2282 = vadd.f32 %v2218, %v2281
      %v2283 = vpop.f32.mrf.mxu0
      %2284 = vmatprep.mubr.bf16.mxu0 %v1208
      %2285 = vmatmul.mubr.bf16.gmra.mxu0 %v1206
      %v2286 = vpop.f32.mrf.mxu0
      %v2287 = vadd.f32 %v2223, %v2286
      %v2288 = vpop.f32.mrf.mxu0
      %v2289 = vpop.f32.mrf.mxu0
      %v2290 = vadd.f32 %v2226, %v2289
      %v2291 = vpop.f32.mrf.mxu0
      %2292 = vmatprep.mubr.bf16.mxu0 %v1221
      %2293 = vmatmul.mubr.bf16.gmra.mxu0 %v1220
      %v2294 = vpop.f32.mrf.mxu0
      %v2295 = vadd.f32 %v2231, %v2294
      %v2296 = vpop.f32.mrf.mxu0
      %v2297 = vpop.f32.mrf.mxu0
      %v2298 = vpop.f32.mrf.mxu0
      %2299 = vdwg.mxu0
      %2300 = vmatprep.subr.bf16.mxu0 0
      %2301 = vmatpush1.bf16.msra.mxu0 %v1903
      %2302 = vmatprep.subr.bf16.mxu0 0
      %2303 = vmatpush1.bf16.msra.mxu0 %v1902
      %2304 = vmatprep.subr.bf16.mxu0 0
      %2305 = vmatpush1.bf16.msra.mxu0 %v1901
      %2306 = vmatprep.subr.bf16.mxu0 0
      %2307 = vmatpush1.bf16.msra.mxu0 %v1900
      %2308 = vmatprep.subr.bf16.mxu0 0
      %2309 = vmatpush1.bf16.msra.mxu0 %v1899
      %2310 = vmatprep.subr.bf16.mxu0 0
      %2311 = vmatpush1.bf16.msra.mxu0 %v1898
      %2312 = vmatprep.subr.bf16.mxu0 0
      %2313 = vmatpush1.bf16.msra.mxu0 %v1897
      %2314 = vmatprep.subr.bf16.mxu0 0
      %2315 = vmatpush1.bf16.msra.mxu0 %v1896
      %2316 = vmatprep.subr.bf16.mxu0 0
      %2317 = vmatpush2.bf16.msra.mxu0 %v1911
      %2318 = vmatprep.subr.bf16.mxu0 0
      %2319 = vmatpush2.bf16.msra.mxu0 %v1910
      %2320 = vmatprep.subr.bf16.mxu0 0
      %2321 = vmatpush2.bf16.msra.mxu0 %v1909
      %2322 = vmatprep.subr.bf16.mxu0 0
      %2323 = vmatpush2.bf16.msra.mxu0 %v1908
      %2324 = vmatprep.subr.bf16.mxu0 0
      %2325 = vmatpush2.bf16.msra.mxu0 %v1907
      %2326 = vmatprep.subr.bf16.mxu0 0
      %2327 = vmatpush2.bf16.msra.mxu0 %v1906
      %2328 = vmatprep.subr.bf16.mxu0 0
      %2329 = vmatpush2.bf16.msra.mxu0 %v1905
      %2330 = vmatprep.subr.bf16.mxu0 0
      %2331 = vmatpush2.bf16.msra.mxu0 %v1904
      %2332 = vmatprep.mubr.bf16.mxu0 %v1198
      %2333 = vmatmul.mubr.bf16.gmra.mxu0 %v1197
      %v2334 = vpop.f32.mrf.mxu0
      %v2335 = vadd.f32 %v2271, %v2334
      %v2336 = vpop.f32.mrf.mxu0
      %v2337 = vpop.f32.mrf.mxu0
      %v2338 = vadd.f32 %v2274, %v2337
      %v2339 = vpop.f32.mrf.mxu0
      %2340 = vmatprep.mubr.bf16.mxu0 %v1204
      %2341 = vmatmul.mubr.bf16.gmra.mxu0 %v1203
      %v2342 = vpop.f32.mrf.mxu0
      %v2343 = vadd.f32 %v2279, %v2342
      %v2344 = vpop.f32.mrf.mxu0
      %v2345 = vpop.f32.mrf.mxu0
      %v2346 = vadd.f32 %v2282, %v2345
      %v2347 = vpop.f32.mrf.mxu0
      %2348 = vmatprep.mubr.bf16.mxu0 %v1210
      %2349 = vmatmul.mubr.bf16.gmra.mxu0 %v1209
      %v2350 = vpop.f32.mrf.mxu0
      %v2351 = vadd.f32 %v2287, %v2350
      %v2352 = vpop.f32.mrf.mxu0
      %v2353 = vpop.f32.mrf.mxu0
      %v2354 = vadd.f32 %v2290, %v2353
      %v2355 = vpop.f32.mrf.mxu0
      %2356 = vmatprep.mubr.bf16.mxu0 %v1223
      %2357 = vmatmul.mubr.bf16.gmra.mxu0 %v1222
      %v2358 = vpop.f32.mrf.mxu0
      %v2359 = vadd.f32 %v2295, %v2358
      %v2360 = vpop.f32.mrf.mxu0
      %v2361 = vpop.f32.mrf.mxu0
      %v2362 = vpop.f32.mrf.mxu0
      %2363 = vdwg.mxu0
      %2364 = vmatprep.subr.bf16.mxu0 0
      %2365 = vmatpush1.bf16.msra.mxu0 %v1919
      %2366 = vmatprep.subr.bf16.mxu0 0
      %2367 = vmatpush1.bf16.msra.mxu0 %v1918
      %2368 = vmatprep.subr.bf16.mxu0 0
      %2369 = vmatpush1.bf16.msra.mxu0 %v1917
      %2370 = vmatprep.subr.bf16.mxu0 0
      %2371 = vmatpush1.bf16.msra.mxu0 %v1916
      %2372 = vmatprep.subr.bf16.mxu0 0
      %2373 = vmatpush1.bf16.msra.mxu0 %v1915
      %2374 = vmatprep.subr.bf16.mxu0 0
      %2375 = vmatpush1.bf16.msra.mxu0 %v1914
      %2376 = vmatprep.subr.bf16.mxu0 0
      %2377 = vmatpush1.bf16.msra.mxu0 %v1913
      %2378 = vmatprep.subr.bf16.mxu0 0
      %2379 = vmatpush1.bf16.msra.mxu0 %v1912
      %2380 = vmatprep.subr.bf16.mxu0 0
      %2381 = vmatpush2.bf16.msra.mxu0 %v1927
      %2382 = vmatprep.subr.bf16.mxu0 0
      %2383 = vmatpush2.bf16.msra.mxu0 %v1926
      %2384 = vmatprep.subr.bf16.mxu0 0
      %2385 = vmatpush2.bf16.msra.mxu0 %v1925
      %2386 = vmatprep.subr.bf16.mxu0 0
      %2387 = vmatpush2.bf16.msra.mxu0 %v1924
      %2388 = vmatprep.subr.bf16.mxu0 0
      %2389 = vmatpush2.bf16.msra.mxu0 %v1923
      %2390 = vmatprep.subr.bf16.mxu0 0
      %2391 = vmatpush2.bf16.msra.mxu0 %v1922
      %2392 = vmatprep.subr.bf16.mxu0 0
      %2393 = vmatpush2.bf16.msra.mxu0 %v1921
      %2394 = vmatprep.subr.bf16.mxu0 0
      %2395 = vmatpush2.bf16.msra.mxu0 %v1920
      %2396 = vmatprep.mubr.bf16.mxu0 %v1200
      %2397 = vmatmul.mubr.bf16.gmra.mxu0 %v1199
      %v2398 = vpop.f32.mrf.mxu0
      %v2399 = vadd.f32 %v2335, %v2398
      %v2400 = vpop.f32.mrf.mxu0
      %v2401 = vpop.f32.mrf.mxu0
      %v2402 = vadd.f32 %v2338, %v2401
      %v2403 = vpop.f32.mrf.mxu0
      %2404 = vmatprep.mubr.bf16.mxu0 %v1206
      %2405 = vmatmul.mubr.bf16.gmra.mxu0 %v1205
      %v2406 = vpop.f32.mrf.mxu0
      %v2407 = vadd.f32 %v2343, %v2406
      %v2408 = vpop.f32.mrf.mxu0
      %v2409 = vpop.f32.mrf.mxu0
      %v2410 = vadd.f32 %v2346, %v2409
      %v2411 = vpop.f32.mrf.mxu0
      %2412 = vmatprep.mubr.bf16.mxu0 %v1212
      %2413 = vmatmul.mubr.bf16.gmra.mxu0 %v1211
      %v2414 = vpop.f32.mrf.mxu0
      %v2415 = vadd.f32 %v2351, %v2414
      %v2416 = vpop.f32.mrf.mxu0
      %v2417 = vpop.f32.mrf.mxu0
      %v2418 = vadd.f32 %v2354, %v2417
      %v2419 = vpop.f32.mrf.mxu0
      %2420 = vmatprep.mubr.bf16.mxu0 %v1190
      %2421 = vmatmul.mubr.bf16.gmra.mxu0 %v1189
      %v2422 = vpop.f32.mrf.mxu0
      %v2423 = vadd.f32 %v2359, %v2422
      %v2424 = vpop.f32.mrf.mxu0
      %v2425 = vpop.f32.mrf.mxu0
      %v2426 = vpop.f32.mrf.mxu0
      %2427 = vdwg.mxu0
      %2428 = vmatprep.subr.bf16.mxu0 0
      %2429 = vmatpush1.bf16.msra.mxu0 0
      %2430 = vmatprep.subr.bf16.mxu0 0
      %2431 = vmatpush1.bf16.msra.mxu0 0
      %2432 = vmatprep.subr.bf16.mxu0 0
      %2433 = vmatpush1.bf16.msra.mxu0 0
      %2434 = vmatprep.subr.bf16.mxu0 0
      %2435 = vmatpush1.bf16.msra.mxu0 0
      %2436 = vmatprep.subr.bf16.mxu0 0
      %2437 = vmatpush1.bf16.msra.mxu0 %v1931
      %2438 = vmatprep.subr.bf16.mxu0 0
      %2439 = vmatpush1.bf16.msra.mxu0 %v1930
      %2440 = vmatprep.subr.bf16.mxu0 0
      %2441 = vmatpush1.bf16.msra.mxu0 %v1929
      %2442 = vmatprep.subr.bf16.mxu0 0
      %2443 = vmatpush1.bf16.msra.mxu0 %v1928
      %2444 = vmatprep.subr.bf16.mxu0 0
      %2445 = vmatpush2.bf16.msra.mxu0 0
      %2446 = vmatprep.subr.bf16.mxu0 0
      %2447 = vmatpush2.bf16.msra.mxu0 0
      %2448 = vmatprep.subr.bf16.mxu0 0
      %2449 = vmatpush2.bf16.msra.mxu0 0
      %2450 = vmatprep.subr.bf16.mxu0 0
      %2451 = vmatpush2.bf16.msra.mxu0 0
      %2452 = vmatprep.subr.bf16.mxu0 0
      %2453 = vmatpush2.bf16.msra.mxu0 0
      %2454 = vmatprep.subr.bf16.mxu0 0
      %2455 = vmatpush2.bf16.msra.mxu0 0
      %2456 = vmatprep.subr.bf16.mxu0 0
      %2457 = vmatpush2.bf16.msra.mxu0 0
      %2458 = vmatprep.subr.bf16.mxu0 0
      %2459 = vmatpush2.bf16.msra.mxu0 0
      %2460 = vmatprep.mubr.bf16.mxu0 0
      %2461 = vmatmul.mubr.bf16.gmra.mxu0 %v2033
      %v2462 = vpop.f32.mrf.mxu0
      %v2463 = vadd.f32 %v2399, %v2462
      %v2464 = vpop.f32.mrf.mxu0
      %v2465 = vpop.f32.mrf.mxu0
      %v2466 = vadd.f32 %v2402, %v2465
      %v2467 = vpop.f32.mrf.mxu0
      %2468 = vmatprep.mubr.bf16.mxu0 0
      %2469 = vmatmul.mubr.bf16.gmra.mxu0 %v2036
      %v2470 = vpop.f32.mrf.mxu0
      %v2471 = vadd.f32 %v2407, %v2470
      %v2472 = vpop.f32.mrf.mxu0
      %v2473 = vpop.f32.mrf.mxu0
      %v2474 = vadd.f32 %v2410, %v2473
      %v2475 = vpop.f32.mrf.mxu0
      %2476 = vmatprep.mubr.bf16.mxu0 0
      %2477 = vmatmul.mubr.bf16.gmra.mxu0 %v2039
      %v2478 = vpop.f32.mrf.mxu0
      %v2479 = vadd.f32 %v2415, %v2478
      %v2480 = vpop.f32.mrf.mxu0
      %v2481 = vpop.f32.mrf.mxu0
      %v2482 = vadd.f32 %v2418, %v2481
      %v2483 = vpop.f32.mrf.mxu0
      %2484 = vmatprep.mubr.bf16.mxu0 0
      %2485 = vmatmul.mubr.bf16.gmra.mxu0 %v2042
      %v2486 = vpop.f32.mrf.mxu0
      %v2487 = vadd.f32 %v2423, %v2486
      %v2488 = vpop.f32.mrf.mxu0
      %v2489 = vpop.f32.mrf.mxu0
      %v2490 = vpop.f32.mrf.mxu0
      %2491 = vdwg.mxu0
      %v2492 = vmax.f32 %v2463, 0.0
      %v2493 = vmax.f32 %v2466, 0.0
      %v2494 = vmax.f32 %v2471, 0.0
      %v2495 = vmax.f32 %v2474, 0.0
      %v2496 = vmax.f32 %v2479, 0.0
      %v2497 = vmax.f32 %v2482, 0.0
      %v2498 = vmax.f32 %v2487, 0.0
      %v2499 = vadd.s32 %v825, 8
      %v2500 = vadd.s32 %v825, 16
      %v2501 = vadd.s32 %v825, 24
      %v2502 = vadd.s32 %v825, 32
      %v2503 = vadd.s32 %v825, 40
      %v2504 = vadd.s32 %v825, 48
      %vm2505 = vcmp.lt.s32.totalorder %v825, 0
      %v2506 = vsub.s32 0, %v825
      %v2507 = vsel %vm2505, %v2506, %v825
      %v2508 = vshrl.u32 %v2507, 3
      %v2509 = vand.u32 %v2507, 7
      %v2510 = vsub.s32 0, %v2509
      %v2511 = vsel %vm2505, %v2510, %v2509
      %vm2512 = vcmp.lt.s32.totalorder %v2499, 0
      %v2513 = vsub.s32 0, %v2499
      %v2514 = vsel %vm2512, %v2513, %v2499
      %v2515 = vshrl.u32 %v2514, 3
      %v2516 = vand.u32 %v2514, 7
      %v2517 = vsub.s32 0, %v2516
      %v2518 = vsel %vm2512, %v2517, %v2516
      %vm2519 = vcmp.lt.s32.totalorder %v2500, 0
      %v2520 = vsub.s32 0, %v2500
      %v2521 = vsel %vm2519, %v2520, %v2500
      %v2522 = vshrl.u32 %v2521, 3
      %v2523 = vand.u32 %v2521, 7
      %v2524 = vsub.s32 0, %v2523
      %v2525 = vsel %vm2519, %v2524, %v2523
      %vm2526 = vcmp.lt.s32.totalorder %v2501, 0
      %v2527 = vsub.s32 0, %v2501
      %v2528 = vsel %vm2526, %v2527, %v2501
      %v2529 = vshrl.u32 %v2528, 3
      %v2530 = vand.u32 %v2528, 7
      %v2531 = vsub.s32 0, %v2530
      %v2532 = vsel %vm2526, %v2531, %v2530
      %vm2533 = vcmp.lt.s32.totalorder %v2502, 0
      %v2534 = vsub.s32 0, %v2502
      %v2535 = vsel %vm2533, %v2534, %v2502
      %v2536 = vshrl.u32 %v2535, 3
      %v2537 = vand.u32 %v2535, 7
      %v2538 = vsub.s32 0, %v2537
      %v2539 = vsel %vm2533, %v2538, %v2537
      %vm2540 = vcmp.lt.s32.totalorder %v2503, 0
      %v2541 = vsub.s32 0, %v2503
      %v2542 = vsel %vm2540, %v2541, %v2503
      %v2543 = vshrl.u32 %v2542, 3
      %v2544 = vand.u32 %v2542, 7
      %v2545 = vsub.s32 0, %v2544
      %v2546 = vsel %vm2540, %v2545, %v2544
      %vm2547 = vcmp.lt.s32.totalorder %v2504, 0
      %v2548 = vsub.s32 0, %v2504
      %v2549 = vsel %vm2547, %v2548, %v2504
      %v2550 = vshrl.u32 %v2549, 3
      %v2551 = vand.u32 %v2549, 7
      %v2552 = vsub.s32 0, %v2551
      %v2553 = vsel %vm2547, %v2552, %v2551
      %vm2554 = vcmp.ne.s32.totalorder %v2511, 0
      %vm2555 = vcmp.ne.s32.totalorder %v2518, 0
      %vm2556 = vcmp.ne.s32.totalorder %v2525, 0
      %vm2557 = vcmp.ne.s32.totalorder %v2532, 0
      %vm2558 = vcmp.ne.s32.totalorder %v2539, 0
      %vm2559 = vcmp.ne.s32.totalorder %v2546, 0
      %vm2560 = vcmp.ne.s32.totalorder %v2553, 0
      %vm2561 = vcmp.lt.s32.totalorder %v2511, 0
      %vm2562 = vcmp.lt.s32.totalorder %v2518, 0
      %vm2563 = vcmp.lt.s32.totalorder %v2525, 0
      %vm2564 = vcmp.lt.s32.totalorder %v2532, 0
      %vm2565 = vcmp.lt.s32.totalorder %v2539, 0
      %vm2566 = vcmp.lt.s32.totalorder %v2546, 0
      %vm2567 = vcmp.lt.s32.totalorder %v2553, 0
      %vm2568 = vmand %vm2561, %vm2554
      %vm2569 = vmand %vm2562, %vm2555
      %vm2570 = vmand %vm2563, %vm2556
      %vm2571 = vmand %vm2564, %vm2557
      %vm2572 = vmand %vm2565, %vm2558
      %vm2573 = vmand %vm2566, %vm2559
      %vm2574 = vmand %vm2567, %vm2560
      %v2575 = vadd.s32 %v2511, 8
      %v2576 = vadd.s32 %v2518, 8
      %v2577 = vadd.s32 %v2525, 8
      %v2578 = vadd.s32 %v2532, 8
      %v2579 = vadd.s32 %v2539, 8
      %v2580 = vadd.s32 %v2546, 8
      %v2581 = vadd.s32 %v2553, 8
      %v2582 = vsel %vm2568, %v2575, %v2511
      %v2583 = vsel %vm2569, %v2576, %v2518
      %v2584 = vsel %vm2570, %v2577, %v2525
      %v2585 = vsel %vm2571, %v2578, %v2532
      %v2586 = vsel %vm2572, %v2579, %v2539
      %v2587 = vsel %vm2573, %v2580, %v2546
      %v2588 = vsel %vm2574, %v2581, %v2553
      %vm2589 = vcmp.lt.s32.totalorder %v2582, 7
      %vm2590 = vcmp.lt.s32.totalorder %v2583, 7
      %vm2591 = vcmp.lt.s32.totalorder %v2584, 7
      %vm2592 = vcmp.lt.s32.totalorder %v2585, 7
      %vm2593 = vcmp.lt.s32.totalorder %v2586, 7
      %vm2594 = vcmp.lt.s32.totalorder %v2587, 7
      %vm2595 = vcmp.lt.s32.totalorder %v2588, 7
      %v2596 = vsel %vm2589, %v2492, 0.0
      %v2597 = vsel %vm2590, %v2493, 0.0
      %v2598 = vsel %vm2591, %v2494, 0.0
      %v2599 = vsel %vm2592, %v2495, 0.0
      %v2600 = vsel %vm2593, %v2496, 0.0
      %v2601 = vsel %vm2594, %v2497, 0.0
      %v2602 = vsel %vm2595, %v2498, 0.0
      %v2610 = vrot.slane %v2596, 6
      %v2611 = vrot.slane %v2597, 6
      %v2612 = vrot.slane %v2598, 6
      %v2613 = vrot.slane %v2599, 6
      %v2614 = vrot.slane %v2600, 6
      %v2615 = vrot.slane %v2601, 6
      %v2616 = vrot.slane %v2602, 6
      %v2624 = vsel %vm869, 0.0, %v2610
      %v2625 = vsel %vm869, 0.0, %v2611
      %v2626 = vsel %vm869, 0.0, %v2612
      %v2627 = vsel %vm869, 0.0, %v2613
      %v2628 = vsel %vm869, 0.0, %v2614
      %v2629 = vsel %vm869, 0.0, %v2615
      %v2630 = vsel %vm869, 0.0, %v2616
      %v2631 = vsel %vm869, %v2610, 0.0
      %v2632 = vsel %vm869, %v2611, 0.0
      %v2633 = vsel %vm869, %v2612, 0.0
      %v2634 = vsel %vm869, %v2613, 0.0
      %v2635 = vsel %vm869, %v2614, 0.0
      %v2636 = vsel %vm869, %v2615, 0.0
      %v2637 = vsel %vm869, %v2616, 0.0
      %v2648 = vrot.slane %v2624, 1
      %v2649 = vrot.slane %v2631, 1
      %v2650 = vsel %vm895, %v2648, %v2649
      %v2651 = vrot.slane %v2625, 1
      %v2652 = vrot.slane %v2632, 1
      %v2653 = vsel %vm895, %v2651, %v2652
      %v2654 = vrot.slane %v2626, 1
      %v2655 = vrot.slane %v2633, 1
      %v2656 = vsel %vm895, %v2654, %v2655
      %v2657 = vrot.slane %v2627, 1
      %v2658 = vrot.slane %v2634, 1
      %v2659 = vsel %vm895, %v2657, %v2658
      %v2660 = vrot.slane %v2628, 1
      %v2661 = vrot.slane %v2635, 1
      %v2662 = vsel %vm895, %v2660, %v2661
      %v2663 = vrot.slane %v2624, 2
      %v2664 = vrot.slane %v2631, 2
      %v2665 = vsel %vm913, %v2663, %v2664
      %v2666 = vrot.slane %v2625, 2
      %v2667 = vrot.slane %v2632, 2
      %v2668 = vsel %vm913, %v2666, %v2667
      %v2669 = vrot.slane %v2626, 2
      %v2670 = vrot.slane %v2633, 2
      %v2671 = vsel %vm913, %v2669, %v2670
      %v2672 = vrot.slane %v2627, 2
      %v2673 = vrot.slane %v2634, 2
      %v2674 = vsel %vm913, %v2672, %v2673
      %v2675 = vrot.slane %v2628, 2
      %v2676 = vrot.slane %v2635, 2
      %v2677 = vsel %vm913, %v2675, %v2676
      %v2683 = vrot.slane %v2624, 3
      %v2684 = vrot.slane %v2631, 3
      %v2685 = vsel %vm937, %v2683, %v2684
      %v2686 = vrot.slane %v2625, 3
      %v2687 = vrot.slane %v2632, 3
      %v2688 = vsel %vm937, %v2686, %v2687
      %v2689 = vrot.slane %v2626, 3
      %v2690 = vrot.slane %v2633, 3
      %v2691 = vsel %vm937, %v2689, %v2690
      %v2692 = vrot.slane %v2627, 3
      %v2693 = vrot.slane %v2634, 3
      %v2694 = vsel %vm937, %v2692, %v2693
      %v2695 = vrot.slane %v2628, 3
      %v2696 = vrot.slane %v2635, 3
      %v2697 = vsel %vm937, %v2695, %v2696
      %v2698 = vrot.slane %v2624, 4
      %v2699 = vrot.slane %v2631, 4
      %v2700 = vsel %vm955, %v2698, %v2699
      %v2701 = vrot.slane %v2625, 4
      %v2702 = vrot.slane %v2632, 4
      %v2703 = vsel %vm955, %v2701, %v2702
      %v2704 = vrot.slane %v2626, 4
      %v2705 = vrot.slane %v2633, 4
      %v2706 = vsel %vm955, %v2704, %v2705
      %v2707 = vrot.slane %v2627, 4
      %v2708 = vrot.slane %v2634, 4
      %v2709 = vsel %vm955, %v2707, %v2708
      %v2710 = vrot.slane %v2628, 4
      %v2711 = vrot.slane %v2635, 4
      %v2712 = vsel %vm955, %v2710, %v2711
      %v2720 = vrot.slane %v2629, 1
      %v2721 = vrot.slane %v2636, 1
      %v2722 = vsel %vm895, %v2720, %v2721
      %v2729 = vrot.slane %v2629, 2
      %v2730 = vrot.slane %v2636, 2
      %v2731 = vsel %vm913, %v2729, %v2730
      %v2732 = vrot.slane %v2629, 3
      %v2733 = vrot.slane %v2636, 3
      %v2734 = vsel %vm937, %v2732, %v2733
      %v2741 = vrot.slane %v2629, 4
      %v2742 = vrot.slane %v2636, 4
      %v2743 = vsel %vm955, %v2741, %v2742
      %v2746 = vrot.slane %v2630, 1
      %v2747 = vrot.slane %v2637, 1
      %v2748 = vsel %vm895, %v2746, %v2747
      %v2749 = vrot.slane %v2630, 2
      %v2750 = vrot.slane %v2637, 2
      %v2751 = vsel %vm913, %v2749, %v2750
      %v2754 = vrot.slane %v2630, 3
      %v2755 = vrot.slane %v2637, 3
      %v2756 = vsel %vm937, %v2754, %v2755
      %v2757 = vrot.slane %v2630, 4
      %v2758 = vrot.slane %v2637, 4
      %v2759 = vsel %vm955, %v2757, %v2758
      %2764 = vrot.lane.b32.xlu0 %v2650, 64
      %v2765 = vpop.permute.xlu0 %2764
      %2766 = vrot.lane.b32.xlu0 %v2653, 64
      %v2767 = vpop.permute.xlu0 %2766
      %2768 = vrot.lane.b32.xlu0 %v2656, 64
      %v2769 = vpop.permute.xlu0 %2768
      %2770 = vrot.lane.b32.xlu0 %v2659, 64
      %v2771 = vpop.permute.xlu0 %2770
      %2772 = vrot.lane.b32.xlu0 %v2662, 64
      %v2773 = vpop.permute.xlu0 %2772
      %2779 = vrot.lane.b32.xlu0 %v2685, 64
      %v2780 = vpop.permute.xlu0 %2779
      %2781 = vrot.lane.b32.xlu0 %v2688, 64
      %v2782 = vpop.permute.xlu0 %2781
      %2783 = vrot.lane.b32.xlu0 %v2691, 64
      %v2784 = vpop.permute.xlu0 %2783
      %2785 = vrot.lane.b32.xlu0 %v2694, 64
      %v2786 = vpop.permute.xlu0 %2785
      %2787 = vrot.lane.b32.xlu0 %v2697, 64
      %v2788 = vpop.permute.xlu0 %2787
      %2794 = vrot.lane.b32.xlu0 %v2624, 64
      %v2795 = vpop.permute.xlu0 %2794
      %2796 = vrot.lane.b32.xlu0 %v2625, 64
      %v2797 = vpop.permute.xlu0 %2796
      %2798 = vrot.lane.b32.xlu0 %v2626, 64
      %v2799 = vpop.permute.xlu0 %2798
      %2800 = vrot.lane.b32.xlu0 %v2627, 64
      %v2801 = vpop.permute.xlu0 %2800
      %2802 = vrot.lane.b32.xlu0 %v2628, 64
      %v2803 = vpop.permute.xlu0 %2802
      %2804 = vrot.lane.b32.xlu0 %v2629, 64
      %v2805 = vpop.permute.xlu0 %2804
      %2812 = vrot.lane.b32.xlu0 %v2665, 64
      %v2813 = vpop.permute.xlu0 %2812
      %2814 = vrot.lane.b32.xlu0 %v2668, 64
      %v2815 = vpop.permute.xlu0 %2814
      %2816 = vrot.lane.b32.xlu0 %v2671, 64
      %v2817 = vpop.permute.xlu0 %2816
      %2818 = vrot.lane.b32.xlu0 %v2674, 64
      %v2819 = vpop.permute.xlu0 %2818
      %2820 = vrot.lane.b32.xlu0 %v2677, 64
      %v2821 = vpop.permute.xlu0 %2820
      %2822 = vrot.lane.b32.xlu0 %v2731, 64
      %v2823 = vpop.permute.xlu0 %2822
      %2830 = vrot.lane.b32.xlu0 %v2700, 64
      %v2831 = vpop.permute.xlu0 %2830
      %2832 = vrot.lane.b32.xlu0 %v2703, 64
      %v2833 = vpop.permute.xlu0 %2832
      %2834 = vrot.lane.b32.xlu0 %v2706, 64
      %v2835 = vpop.permute.xlu0 %2834
      %2836 = vrot.lane.b32.xlu0 %v2709, 64
      %v2837 = vpop.permute.xlu0 %2836
      %2838 = vrot.lane.b32.xlu0 %v2712, 64
      %v2839 = vpop.permute.xlu0 %2838
      %2840 = vrot.lane.b32.xlu0 %v2743, 64
      %v2841 = vpop.permute.xlu0 %2840
      %2848 = vrot.lane.b32.xlu0 %v2722, 64
      %v2849 = vpop.permute.xlu0 %2848
      %2850 = vrot.lane.b32.xlu0 %v2748, 64
      %v2851 = vpop.permute.xlu0 %2850
      %2854 = vrot.lane.b32.xlu0 %v2734, 64
      %v2855 = vpop.permute.xlu0 %2854
      %2856 = vrot.lane.b32.xlu0 %v2756, 64
      %v2857 = vpop.permute.xlu0 %2856
      %2860 = vrot.lane.b32.xlu0 %v2630, 64
      %v2861 = vpop.permute.xlu0 %2860
      %v2863 = vsel %vm1141, %v2624, %v2765
      %v2864 = vsel %vm1141, %v2625, %v2767
      %v2865 = vsel %vm1141, %v2626, %v2769
      %v2866 = vsel %vm1141, %v2627, %v2771
      %v2867 = vsel %vm1141, %v2628, %v2773
      %v2868 = vsel %vm1141, %v2665, %v2780
      %v2869 = vsel %vm1141, %v2668, %v2782
      %v2870 = vsel %vm1141, %v2671, %v2784
      %v2871 = vsel %vm1141, %v2674, %v2786
      %v2872 = vsel %vm1141, %v2677, %v2788
      %v2873 = vsel %vm1141, %v957, %v2795
      %v2874 = vsel %vm1141, %v2700, %v2797
      %v2875 = vsel %vm1141, %v2703, %v2799
      %v2876 = vsel %vm1141, %v2706, %v2801
      %v2877 = vsel %vm1141, %v2709, %v2803
      %v2878 = vsel %vm1141, %v2712, %v2805
      %v2879 = vsel %vm1141, %v2650, %v2813
      %v2880 = vsel %vm1141, %v2653, %v2815
      %v2881 = vsel %vm1141, %v2656, %v2817
      %v2882 = vsel %vm1141, %v2659, %v2819
      %v2883 = vsel %vm1141, %v2662, %v2821
      %v2884 = vsel %vm1141, %v2722, %v2823
      %v2885 = vsel %vm1141, %v2685, %v2831
      %v2886 = vsel %vm1141, %v2688, %v2833
      %v2887 = vsel %vm1141, %v2691, %v2835
      %v2888 = vsel %vm1141, %v2694, %v2837
      %v2889 = vsel %vm1141, %v2697, %v2839
      %v2890 = vsel %vm1141, %v2734, %v2841
      %v2891 = vsel %vm1141, %v2629, %v2849
      %v2892 = vsel %vm1141, %v2630, %v2851
      %v2893 = vsel %vm1141, %v2731, %v2855
      %v2894 = vsel %vm1141, %v2751, %v2857
      %v2895 = vsel %vm1141, %v2743, %v2861
      %v2896 = vsel %vm1141, %v2759, %v1064
      %2897 = vrot.lane.b32.xlu0 %v2751, 64
      %v2898 = vpop.permute.xlu0 %2897
      %2900 = vrot.lane.b32.xlu0 %v2759, 64
      %v2901 = vpop.permute.xlu0 %2900
      %v2903 = vsel %vm1141, %v2748, %v2898
      %v2904 = vsel %vm1141, %v2756, %v2901
      %v2905 = vpack.c.bf16 %v2873, %v1154
      %v2906 = vpack.c.bf16 %v2879, %v1161
      %v2907 = vpack.c.bf16 %v2885, %v1168
      %v2908 = vpack.c.bf16 %v2864, %v2863
      %v2909 = vpack.c.bf16 %v2869, %v2868
      %v2910 = vpack.c.bf16 %v2875, %v2874
      %v2911 = vpack.c.bf16 %v2881, %v2880
      %v2912 = vpack.c.bf16 %v2887, %v2886
      %v2913 = vpack.c.bf16 %v2866, %v2865
      %v2914 = vpack.c.bf16 %v2871, %v2870
      %v2915 = vpack.c.bf16 %v2709, %v2706
      %v2916 = vpack.c.bf16 %v2877, %v2876
      %v2917 = vpack.c.bf16 %v2883, %v2882
      %v2918 = vpack.c.bf16 %v2889, %v2888
      %v2919 = vpack.c.bf16 %v2891, %v2867
      %v2920 = vpack.c.bf16 %v2893, %v2872
      %v2921 = vpack.c.bf16 %v2743, %v2712
      %v2922 = vpack.c.bf16 %v2895, %v2878
      %v2923 = vpack.c.bf16 %v2903, %v2884
      %v2924 = vpack.c.bf16 %v2904, %v2890
      %v2925 = vpack.c.bf16 %v1142, %v2892
      %v2926 = vpack.c.bf16 %v1148, %v2894
      %v2927 = vpack.c.bf16 %v957, %v2759
      %v2928 = vpack.c.bf16 %v2867, %v2867
      %v2929 = vpack.c.bf16 %v2872, %v2872
      %v2930 = vpack.c.bf16 %v2878, %v2878
      %v2931 = vpack.c.bf16 %v2884, %v2884
      %v2932 = vpack.c.bf16 %v2890, %v2890
      %v2933 = vpack.c.bf16 %v2892, %v2892
      %v2934 = vpack.c.bf16 %v2894, %v2894
      %v2935 = vpack.c.bf16 %v2896, %v2896
      %v2936 = vld [vmem:[%s6] sm:$0xf]
      %v2937 = vld [vmem:[%s6 + $0x4] sm:$0xf]
      %v2938 = vld [vmem:[%s6 + $0x8] sm:$0xf]
      %v2939 = vld [vmem:[%s6 + $0xc] sm:$0xf]
      %v2940 = vld [vmem:[%s6 + $0x10] sm:$0xf]
      %v2941 = vld [vmem:[%s6 + $0x14] sm:$0xf]
      %v2942 = vld [vmem:[%s6 + $0x18] sm:$0xf]
      %v2943 = vld [vmem:[%s6 + $0x1c] sm:$0xf]
      %v2944 = vld [vmem:[%s6 + $0x20] sm:$0xf]
      %v2945 = vld [vmem:[%s6 + $0x24] sm:$0xf]
      %v2946 = vld [vmem:[%s6 + $0x28] sm:$0xf]
      %v2947 = vld [vmem:[%s6 + $0x2c] sm:$0xf]
      %v2948 = vld [vmem:[%s6 + $0x30] sm:$0xf]
      %v2949 = vld [vmem:[%s6 + $0x34] sm:$0xf]
      %v2950 = vld [vmem:[%s6 + $0x38] sm:$0xf]
      %v2951 = vld [vmem:[%s6 + $0x3c] sm:$0xf]
      %v2952 = vld [vmem:[%s6 + $0x40] sm:$0xf]
      %v2953 = vld [vmem:[%s6 + $0x44] sm:$0xf]
      %v2954 = vld [vmem:[%s6 + $0x48] sm:$0xf]
      %v2955 = vld [vmem:[%s6 + $0x4c] sm:$0xf]
      %v2956 = vld [vmem:[%s6 + $0x50] sm:$0xf]
      %v2957 = vld [vmem:[%s6 + $0x54] sm:$0xf]
      %v2958 = vld [vmem:[%s6 + $0x58] sm:$0xf]
      %v2959 = vld [vmem:[%s6 + $0x5c] sm:$0xf]
      %v2960 = vld [vmem:[%s6 + $0x60] sm:$0xf]
      %v2961 = vld [vmem:[%s6 + $0x64] sm:$0xf]
      %v2962 = vld [vmem:[%s6 + $0x68] sm:$0xf]
      %v2963 = vld [vmem:[%s6 + $0x6c] sm:$0xf]
      %v2964 = vld [vmem:[%s6 + $0x70] sm:$0xf]
      %v2965 = vld [vmem:[%s6 + $0x74] sm:$0xf]
      %v2966 = vld [vmem:[%s6 + $0x78] sm:$0xf]
      %v2967 = vld [vmem:[%s6 + $0x7c] sm:$0xf]
      %v2968 = vld [vmem:[%s6 + $0x80] sm:$0xf]
      %v2969 = vld [vmem:[%s6 + $0x84] sm:$0xf]
      %v2970 = vld [vmem:[%s6 + $0x88] sm:$0xf]
      %v2971 = vld [vmem:[%s6 + $0x8c] sm:$0xf]
      %v2972 = vld [vmem:[%s6 + $0x90] sm:$0xf]
      %v2973 = vld [vmem:[%s6 + $0x94] sm:$0xf]
      %v2974 = vld [vmem:[%s6 + $0x98] sm:$0xf]
      %v2975 = vld [vmem:[%s6 + $0x9c] sm:$0xf]
      %v2976 = vld [vmem:[%s6 + $0xa0] sm:$0xf]
      %v2977 = vld [vmem:[%s6 + $0xa4] sm:$0xf]
      %v2978 = vld [vmem:[%s6 + $0xa8] sm:$0xf]
      %v2979 = vld [vmem:[%s6 + $0xac] sm:$0xf]
      %v2980 = vld [vmem:[%s6 + $0xb0] sm:$0xf]
      %v2981 = vld [vmem:[%s6 + $0xb4] sm:$0xf]
      %v2982 = vld [vmem:[%s6 + $0xb8] sm:$0xf]
      %v2983 = vld [vmem:[%s6 + $0xbc] sm:$0xf]
      %v2984 = vld [vmem:[%s6 + $0xc0] sm:$0xf]
      %v2985 = vld [vmem:[%s6 + $0xc4] sm:$0xf]
      %v2986 = vld [vmem:[%s6 + $0xc8] sm:$0xf]
      %v2987 = vld [vmem:[%s6 + $0xcc] sm:$0xf]
      %v2988 = vld [vmem:[%s6 + $0xd0] sm:$0xf]
      %v2989 = vld [vmem:[%s6 + $0xd4] sm:$0xf]
      %v2990 = vld [vmem:[%s6 + $0xd8] sm:$0xf]
      %v2991 = vld [vmem:[%s6 + $0xdc] sm:$0xf]
      %v2992 = vld [vmem:[%s6 + $0xe0] sm:$0xf]
      %v2993 = vld [vmem:[%s6 + $0xe4] sm:$0xf]
      %v2994 = vld [vmem:[%s6 + $0xe8] sm:$0xf]
      %v2995 = vld [vmem:[%s6 + $0xec] sm:$0xf]
      %v2996 = vld [vmem:[%s6 + $0xf0] sm:$0xf]
      %v2997 = vld [vmem:[%s6 + $0xf4] sm:$0xf]
      %v2998 = vld [vmem:[%s6 + $0xf8] sm:$0xf]
      %v2999 = vld [vmem:[%s6 + $0xfc] sm:$0xf]
      %v3000 = vld [vmem:[%s6 + $0x100] sm:$0xf]
      %v3001 = vld [vmem:[%s6 + $0x104] sm:$0xf]
      %v3002 = vld [vmem:[%s6 + $0x108] sm:$0xf]
      %v3003 = vld [vmem:[%s6 + $0x10c] sm:$0xf]
      %v3004 = vld [vmem:[%s6 + $0x110] sm:$0xf]
      %v3005 = vld [vmem:[%s6 + $0x114] sm:$0xf]
      %v3006 = vld [vmem:[%s6 + $0x118] sm:$0xf]
      %v3007 = vld [vmem:[%s6 + $0x11c] sm:$0xf]
      %v3008 = vld [vmem:[%s6 + $0x120] sm:$0xf]
      %v3009 = vld [vmem:[%s6 + $0x124] sm:$0xf]
      %v3010 = vld [vmem:[%s6 + $0x128] sm:$0xf]
      %v3011 = vld [vmem:[%s6 + $0x12c] sm:$0xf]
      %v3012 = vld [vmem:[%s6 + $0x130] sm:$0xf]
      %v3013 = vld [vmem:[%s6 + $0x134] sm:$0xf]
      %v3014 = vld [vmem:[%s6 + $0x138] sm:$0xf]
      %v3015 = vld [vmem:[%s6 + $0x13c] sm:$0xf]
      %v3016 = vld [vmem:[%s6 + $0x140] sm:$0xf]
      %v3017 = vld [vmem:[%s6 + $0x144] sm:$0xf]
      %v3018 = vld [vmem:[%s6 + $0x148] sm:$0xf]
      %v3019 = vld [vmem:[%s6 + $0x14c] sm:$0xf]
      %v3020 = vld [vmem:[%s6 + $0x150] sm:$0xf]
      %v3021 = vld [vmem:[%s6 + $0x154] sm:$0xf]
      %v3022 = vld [vmem:[%s6 + $0x158] sm:$0xf]
      %v3023 = vld [vmem:[%s6 + $0x15c] sm:$0xf]
      %v3024 = vld [vmem:[%s6 + $0x160] sm:$0xf]
      %v3025 = vld [vmem:[%s6 + $0x164] sm:$0xf]
      %v3026 = vld [vmem:[%s6 + $0x168] sm:$0xf]
      %v3027 = vld [vmem:[%s6 + $0x16c] sm:$0xf]
      %v3028 = vld [vmem:[%s6 + $0x170] sm:$0xf]
      %v3029 = vld [vmem:[%s6 + $0x174] sm:$0xf]
      %v3030 = vld [vmem:[%s6 + $0x178] sm:$0xf]
      %v3031 = vld [vmem:[%s6 + $0x17c] sm:$0xf]
      %v3032 = vld [vmem:[%s6 + $0x180] sm:$0xf]
      %v3033 = vld [vmem:[%s6 + $0x184] sm:$0xf]
      %v3034 = vld [vmem:[%s6 + $0x188] sm:$0xf]
      %v3035 = vld [vmem:[%s6 + $0x18c] sm:$0xf]
      %v3036 = vld [vmem:[%s6 + $0x190] sm:$0xf]
      %v3037 = vld [vmem:[%s6 + $0x194] sm:$0xf]
      %v3038 = vld [vmem:[%s6 + $0x198] sm:$0xf]
      %v3039 = vld [vmem:[%s6 + $0x19c] sm:$0xf]
      %v3040 = vld [vmem:[%s6 + $0x1a0] sm:$0xf]
      %v3041 = vld [vmem:[%s6 + $0x1a4] sm:$0xf]
      %v3042 = vld [vmem:[%s6 + $0x1a8] sm:$0xf]
      %v3043 = vld [vmem:[%s6 + $0x1ac] sm:$0xf]
      %v3044 = vld [vmem:[%s6 + $0x1b0] sm:$0xf]
      %v3045 = vld [vmem:[%s6 + $0x1b4] sm:$0xf]
      %v3046 = vld [vmem:[%s6 + $0x1b8] sm:$0xf]
      %v3047 = vld [vmem:[%s6 + $0x1bc] sm:$0xf]
      %v3048 = vld [vmem:[%s6 + $0x1c0] sm:$0xf]
      %v3049 = vld [vmem:[%s6 + $0x1c4] sm:$0xf]
      %v3050 = vld [vmem:[%s6 + $0x1c8] sm:$0xf]
      %v3051 = vld [vmem:[%s6 + $0x1cc] sm:$0xf]
      %v3052 = vld [vmem:[%s6 + $0x1d0] sm:$0xf]
      %v3053 = vld [vmem:[%s6 + $0x1d4] sm:$0xf]
      %v3054 = vld [vmem:[%s6 + $0x1d8] sm:$0xf]
      %v3055 = vld [vmem:[%s6 + $0x1dc] sm:$0xf]
      %v3056 = vld [vmem:[%s6 + $0x1e0] sm:$0xf]
      %v3057 = vld [vmem:[%s6 + $0x1e4] sm:$0xf]
      %v3058 = vld [vmem:[%s6 + $0x1e8] sm:$0xf]
      %v3059 = vld [vmem:[%s6 + $0x1ec] sm:$0xf]
      %v3060 = vld [vmem:[%s6 + $0x1f0] sm:$0xf]
      %v3061 = vld [vmem:[%s6 + $0x1f4] sm:$0xf]
      %v3062 = vld [vmem:[%s6 + $0x1f8] sm:$0xf]
      %v3063 = vld [vmem:[%s6 + $0x1fc] sm:$0xf]
      %v3064 = vld [vmem:[%s6 + $0x200] sm:$0xf]
      %v3065 = vld [vmem:[%s6 + $0x204] sm:$0xf]
      %v3066 = vld [vmem:[%s6 + $0x208] sm:$0xf]
      %v3067 = vld [vmem:[%s6 + $0x20c] sm:$0xf]
      %v3068 = vld [vmem:[%s6 + $0x210] sm:$0xf]
      %v3069 = vld [vmem:[%s6 + $0x214] sm:$0xf]
      %v3070 = vld [vmem:[%s6 + $0x218] sm:$0xf]
      %v3071 = vld [vmem:[%s6 + $0x21c] sm:$0xf]
      %v3072 = vld [vmem:[%s6 + $0x220] sm:$0xf]
      %v3073 = vld [vmem:[%s6 + $0x224] sm:$0xf]
      %v3074 = vld [vmem:[%s6 + $0x228] sm:$0xf]
      %v3075 = vld [vmem:[%s6 + $0x22c] sm:$0xf]
      %v3076 = vld [vmem:[%s6 + $0x230] sm:$0xf]
      %v3077 = vld [vmem:[%s6 + $0x234] sm:$0xf]
      %v3078 = vld [vmem:[%s6 + $0x238] sm:$0xf]
      %v3079 = vld [vmem:[%s6 + $0x23c] sm:$0xf]
      %v3080 = vld [vmem:[%s6 + $0x240] sm:$0xf]
      %v3081 = vld [vmem:[%s6 + $0x244] sm:$0xf]
      %v3082 = vld [vmem:[%s6 + $0x248] sm:$0xf]
      %v3083 = vld [vmem:[%s6 + $0x24c] sm:$0xf]
      %v3084 = vld [vmem:[%s6 + $0x250] sm:$0xf]
      %v3085 = vld [vmem:[%s6 + $0x254] sm:$0xf]
      %v3086 = vld [vmem:[%s6 + $0x258] sm:$0xf]
      %v3087 = vld [vmem:[%s6 + $0x25c] sm:$0xf]
      %v3088 = vld [vmem:[%s6 + $0x260] sm:$0xf]
      %v3089 = vld [vmem:[%s6 + $0x264] sm:$0xf]
      %v3090 = vld [vmem:[%s6 + $0x268] sm:$0xf]
      %v3091 = vld [vmem:[%s6 + $0x26c] sm:$0xf]
      %v3092 = vld [vmem:[%s6 + $0x270] sm:$0xf]
      %v3093 = vld [vmem:[%s6 + $0x274] sm:$0xf]
      %v3094 = vld [vmem:[%s6 + $0x278] sm:$0xf]
      %v3095 = vld [vmem:[%s6 + $0x27c] sm:$0xf]
      %v3096 = vld [vmem:[%s6 + $0x280] sm:$0xf]
      %v3097 = vld [vmem:[%s6 + $0x284] sm:$0xf]
      %v3098 = vld [vmem:[%s6 + $0x288] sm:$0xf]
      %v3099 = vld [vmem:[%s6 + $0x28c] sm:$0xf]
      %v3100 = vld [vmem:[%s6 + $0x290] sm:$0xf]
      %v3101 = vld [vmem:[%s6 + $0x294] sm:$0xf]
      %v3102 = vld [vmem:[%s6 + $0x298] sm:$0xf]
      %v3103 = vld [vmem:[%s6 + $0x29c] sm:$0xf]
      %v3104 = vld [vmem:[%s6 + $0x2a0] sm:$0xf]
      %v3105 = vld [vmem:[%s6 + $0x2a4] sm:$0xf]
      %v3106 = vld [vmem:[%s6 + $0x2a8] sm:$0xf]
      %v3107 = vld [vmem:[%s6 + $0x2ac] sm:$0xf]
      %v3108 = vld [vmem:[%s6 + $0x2b0] sm:$0xf]
      %v3109 = vld [vmem:[%s6 + $0x2b4] sm:$0xf]
      %v3110 = vld [vmem:[%s6 + $0x2b8] sm:$0xf]
      %v3111 = vld [vmem:[%s6 + $0x2bc] sm:$0xf]
      %v3112 = vld [vmem:[%s6 + $0x2c0] sm:$0xf]
      %v3113 = vld [vmem:[%s6 + $0x2c4] sm:$0xf]
      %v3114 = vld [vmem:[%s6 + $0x2c8] sm:$0xf]
      %v3115 = vld [vmem:[%s6 + $0x2cc] sm:$0xf]
      %v3116 = vld [vmem:[%s6 + $0x2d0] sm:$0xf]
      %v3117 = vld [vmem:[%s6 + $0x2d4] sm:$0xf]
      %v3118 = vld [vmem:[%s6 + $0x2d8] sm:$0xf]
      %v3119 = vld [vmem:[%s6 + $0x2dc] sm:$0xf]
      %v3120 = vld [vmem:[%s6 + $0x2e0] sm:$0xf]
      %v3121 = vld [vmem:[%s6 + $0x2e4] sm:$0xf]
      %v3122 = vld [vmem:[%s6 + $0x2e8] sm:$0xf]
      %v3123 = vld [vmem:[%s6 + $0x2ec] sm:$0xf]
      %v3124 = vld [vmem:[%s6 + $0x2f0] sm:$0xf]
      %v3125 = vld [vmem:[%s6 + $0x2f4] sm:$0xf]
      %v3126 = vld [vmem:[%s6 + $0x2f8] sm:$0xf]
      %v3127 = vld [vmem:[%s6 + $0x2fc] sm:$0xf]
      %v3128 = vld [vmem:[%s6 + $0x300] sm:$0xf]
      %v3129 = vld [vmem:[%s6 + $0x304] sm:$0xf]
      %v3130 = vld [vmem:[%s6 + $0x308] sm:$0xf]
      %v3131 = vld [vmem:[%s6 + $0x30c] sm:$0xf]
      %v3132 = vld [vmem:[%s6 + $0x310] sm:$0xf]
      %v3133 = vld [vmem:[%s6 + $0x314] sm:$0xf]
      %v3134 = vld [vmem:[%s6 + $0x318] sm:$0xf]
      %v3135 = vld [vmem:[%s6 + $0x31c] sm:$0xf]
      %v3136 = vld [vmem:[%s7] sm:$0x1]
      %v3138 = vlaneseq
      %v3139 = vshrl.u32 %v3138, 7
      %v3140 = vsub.s32 0, %v3139
      %v3141 = vrot.slane %v3136, %v3140
      %v3343 = vunpack.c.l.b16 %v2936
      %v3344 = vunpack.c.l.b16 %v2937
      %v3345 = vunpack.c.l.b16 %v2938
      %v3346 = vunpack.c.l.b16 %v2939
      %v3347 = vunpack.c.l.b16 %v2940
      %v3348 = vunpack.c.l.b16 %v2941
      %v3349 = vunpack.c.l.b16 %v2942
      %v3350 = vunpack.c.l.b16 %v2943
      %v3351 = vunpack.c.l.b16 %v2944
      %v3352 = vunpack.c.l.b16 %v2945
      %v3353 = vunpack.c.l.b16 %v2946
      %v3354 = vunpack.c.l.b16 %v2947
      %v3355 = vunpack.c.l.b16 %v2948
      %v3356 = vunpack.c.l.b16 %v2949
      %v3357 = vunpack.c.l.b16 %v2950
      %v3358 = vunpack.c.l.b16 %v2951
      %v3359 = vunpack.c.l.b16 %v2952
      %v3360 = vunpack.c.l.b16 %v2953
      %v3361 = vunpack.c.l.b16 %v2954
      %v3362 = vunpack.c.l.b16 %v2955
      %v3363 = vunpack.c.l.b16 %v2956
      %v3364 = vunpack.c.l.b16 %v2957
      %v3365 = vunpack.c.l.b16 %v2958
      %v3366 = vunpack.c.l.b16 %v2959
      %v3367 = vunpack.c.l.b16 %v2960
      %v3368 = vunpack.c.l.b16 %v2961
      %v3369 = vunpack.c.l.b16 %v2962
      %v3370 = vunpack.c.l.b16 %v2963
      %v3371 = vunpack.c.l.b16 %v2964
      %v3372 = vunpack.c.l.b16 %v2965
      %v3373 = vunpack.c.l.b16 %v2966
      %v3374 = vunpack.c.l.b16 %v2967
      %v3375 = vunpack.c.l.b16 %v2968
      %v3376 = vunpack.c.l.b16 %v2969
      %v3377 = vunpack.c.l.b16 %v2970
      %v3378 = vunpack.c.l.b16 %v2971
      %v3379 = vunpack.c.l.b16 %v2972
      %v3380 = vunpack.c.l.b16 %v2973
      %v3381 = vunpack.c.l.b16 %v2974
      %v3382 = vunpack.c.l.b16 %v2975
      %v3383 = vunpack.c.l.b16 %v2976
      %v3384 = vunpack.c.l.b16 %v2977
      %v3385 = vunpack.c.l.b16 %v2978
      %v3386 = vunpack.c.l.b16 %v2979
      %v3387 = vunpack.c.l.b16 %v2980
      %v3388 = vunpack.c.l.b16 %v2981
      %v3389 = vunpack.c.l.b16 %v2982
      %v3390 = vunpack.c.l.b16 %v2983
      %v3391 = vunpack.c.l.b16 %v2984
      %v3392 = vunpack.c.l.b16 %v2985
      %v3393 = vunpack.c.l.b16 %v2986
      %v3394 = vunpack.c.l.b16 %v2987
      %v3395 = vunpack.c.l.b16 %v2988
      %v3396 = vunpack.c.l.b16 %v2989
      %v3397 = vunpack.c.l.b16 %v2990
      %v3398 = vunpack.c.l.b16 %v2991
      %v3399 = vunpack.c.l.b16 %v2992
      %v3400 = vunpack.c.l.b16 %v2993
      %v3401 = vunpack.c.l.b16 %v2994
      %v3402 = vunpack.c.l.b16 %v2995
      %v3403 = vunpack.c.l.b16 %v2996
      %v3404 = vunpack.c.l.b16 %v2997
      %v3405 = vunpack.c.l.b16 %v2998
      %v3406 = vunpack.c.l.b16 %v2999
      %v3407 = vunpack.c.l.b16 %v3000
      %v3408 = vunpack.c.l.b16 %v3001
      %v3409 = vunpack.c.l.b16 %v3002
      %v3410 = vunpack.c.l.b16 %v3003
      %v3411 = vunpack.c.l.b16 %v3004
      %v3412 = vunpack.c.l.b16 %v3005
      %v3413 = vunpack.c.l.b16 %v3006
      %v3414 = vunpack.c.l.b16 %v3007
      %v3415 = vunpack.c.l.b16 %v3008
      %v3416 = vunpack.c.l.b16 %v3009
      %v3417 = vunpack.c.l.b16 %v3010
      %v3418 = vunpack.c.l.b16 %v3011
      %v3419 = vunpack.c.l.b16 %v3012
      %v3420 = vunpack.c.l.b16 %v3013
      %v3421 = vunpack.c.l.b16 %v3014
      %v3422 = vunpack.c.l.b16 %v3015
      %v3423 = vunpack.c.l.b16 %v3016
      %v3424 = vunpack.c.l.b16 %v3017
      %v3425 = vunpack.c.l.b16 %v3018
      %v3426 = vunpack.c.l.b16 %v3019
      %v3427 = vunpack.c.l.b16 %v3020
      %v3428 = vunpack.c.l.b16 %v3021
      %v3429 = vunpack.c.l.b16 %v3022
      %v3430 = vunpack.c.l.b16 %v3023
      %v3431 = vunpack.c.l.b16 %v3024
      %v3432 = vunpack.c.l.b16 %v3025
      %v3433 = vunpack.c.l.b16 %v3026
      %v3434 = vunpack.c.l.b16 %v3027
      %v3435 = vunpack.c.l.b16 %v3028
      %v3436 = vunpack.c.l.b16 %v3029
      %v3437 = vunpack.c.l.b16 %v3030
      %v3438 = vunpack.c.l.b16 %v3031
      %v3439 = vunpack.c.l.b16 %v3032
      %v3440 = vunpack.c.l.b16 %v3033
      %v3441 = vunpack.c.l.b16 %v3034
      %v3442 = vunpack.c.l.b16 %v3035
      %v3443 = vunpack.c.l.b16 %v3036
      %v3444 = vunpack.c.l.b16 %v3037
      %v3445 = vunpack.c.l.b16 %v3038
      %v3446 = vunpack.c.l.b16 %v3039
      %v3447 = vunpack.c.l.b16 %v3040
      %v3448 = vunpack.c.l.b16 %v3041
      %v3449 = vunpack.c.l.b16 %v3042
      %v3450 = vunpack.c.l.b16 %v3043
      %v3451 = vunpack.c.l.b16 %v3044
      %v3452 = vunpack.c.l.b16 %v3045
      %v3453 = vunpack.c.l.b16 %v3046
      %v3454 = vunpack.c.l.b16 %v3047
      %v3455 = vunpack.c.l.b16 %v3048
      %v3456 = vunpack.c.l.b16 %v3049
      %v3457 = vunpack.c.l.b16 %v3050
      %v3458 = vunpack.c.l.b16 %v3051
      %v3459 = vunpack.c.l.b16 %v3052
      %v3460 = vunpack.c.l.b16 %v3053
      %v3461 = vunpack.c.l.b16 %v3054
      %v3462 = vunpack.c.l.b16 %v3055
      %v3463 = vunpack.c.l.b16 %v3056
      %v3464 = vunpack.c.l.b16 %v3057
      %v3465 = vunpack.c.l.b16 %v3058
      %v3466 = vunpack.c.l.b16 %v3059
      %v3467 = vunpack.c.l.b16 %v3060
      %v3468 = vunpack.c.l.b16 %v3061
      %v3469 = vunpack.c.l.b16 %v3062
      %v3470 = vunpack.c.l.b16 %v3063
      %v3471 = vunpack.c.l.b16 %v3064
      %v3472 = vunpack.c.l.b16 %v3065
      %v3473 = vunpack.c.l.b16 %v3066
      %v3474 = vunpack.c.l.b16 %v3067
      %v3475 = vunpack.c.l.b16 %v3068
      %v3476 = vunpack.c.l.b16 %v3069
      %v3477 = vunpack.c.l.b16 %v3070
      %v3478 = vunpack.c.l.b16 %v3071
      %v3479 = vunpack.c.l.b16 %v3072
      %v3480 = vunpack.c.l.b16 %v3073
      %v3481 = vunpack.c.l.b16 %v3074
      %v3482 = vunpack.c.l.b16 %v3075
      %v3483 = vunpack.c.l.b16 %v3076
      %v3484 = vunpack.c.l.b16 %v3077
      %v3485 = vunpack.c.l.b16 %v3078
      %v3486 = vunpack.c.l.b16 %v3079
      %v3487 = vunpack.c.l.b16 %v3080
      %v3488 = vunpack.c.l.b16 %v3081
      %v3489 = vunpack.c.l.b16 %v3082
      %v3490 = vunpack.c.l.b16 %v3083
      %v3491 = vunpack.c.l.b16 %v3084
      %v3492 = vunpack.c.l.b16 %v3085
      %v3493 = vunpack.c.l.b16 %v3086
      %v3494 = vunpack.c.l.b16 %v3087
      %v3495 = vunpack.c.l.b16 %v3088
      %v3496 = vunpack.c.l.b16 %v3089
      %v3497 = vunpack.c.l.b16 %v3090
      %v3498 = vunpack.c.l.b16 %v3091
      %v3499 = vunpack.c.l.b16 %v3092
      %v3500 = vunpack.c.l.b16 %v3093
      %v3501 = vunpack.c.l.b16 %v3094
      %v3502 = vunpack.c.l.b16 %v3095
      %v3503 = vunpack.c.l.b16 %v3096
      %v3504 = vunpack.c.l.b16 %v3097
      %v3505 = vunpack.c.l.b16 %v3098
      %v3506 = vunpack.c.l.b16 %v3099
      %v3507 = vunpack.c.l.b16 %v3100
      %v3508 = vunpack.c.l.b16 %v3101
      %v3509 = vunpack.c.l.b16 %v3102
      %v3510 = vunpack.c.l.b16 %v3103
      %v3511 = vunpack.c.l.b16 %v3104
      %v3512 = vunpack.c.l.b16 %v3105
      %v3513 = vunpack.c.l.b16 %v3106
      %v3514 = vunpack.c.l.b16 %v3107
      %v3515 = vunpack.c.l.b16 %v3108
      %v3516 = vunpack.c.l.b16 %v3109
      %v3517 = vunpack.c.l.b16 %v3110
      %v3518 = vunpack.c.l.b16 %v3111
      %v3519 = vunpack.c.l.b16 %v3112
      %v3520 = vunpack.c.l.b16 %v3113
      %v3521 = vunpack.c.l.b16 %v3114
      %v3522 = vunpack.c.l.b16 %v3115
      %v3523 = vunpack.c.l.b16 %v3116
      %v3524 = vunpack.c.l.b16 %v3117
      %v3525 = vunpack.c.l.b16 %v3118
      %v3526 = vunpack.c.l.b16 %v3119
      %v3527 = vunpack.c.l.b16 %v3120
      %v3528 = vunpack.c.l.b16 %v3121
      %v3529 = vunpack.c.l.b16 %v3122
      %v3530 = vunpack.c.l.b16 %v3123
      %v3531 = vunpack.c.l.b16 %v3124
      %v3532 = vunpack.c.l.b16 %v3125
      %v3533 = vunpack.c.l.b16 %v3126
      %v3534 = vunpack.c.l.b16 %v3127
      %v3535 = vunpack.c.l.b16 %v3128
      %v3536 = vunpack.c.l.b16 %v3129
      %v3537 = vunpack.c.l.b16 %v3130
      %v3538 = vunpack.c.l.b16 %v3131
      %v3539 = vunpack.c.l.b16 %v3132
      %v3540 = vunpack.c.l.b16 %v3133
      %v3541 = vunpack.c.l.b16 %v3134
      %v3542 = vunpack.c.l.b16 %v3135
      %v3543 = vpack.c.b16 %v3344, %v3343
      %v3544 = vpack.c.b16 %v3346, %v3345
      %v3545 = vpack.c.b16 %v3348, %v3347
      %v3546 = vpack.c.b16 %v3350, %v3349
      %v3547 = vpack.c.b16 %v3352, %v3351
      %v3548 = vpack.c.b16 %v3354, %v3353
      %v3549 = vpack.c.b16 %v3356, %v3355
      %v3550 = vpack.c.b16 %v3358, %v3357
      %v3551 = vpack.c.b16 %v3360, %v3359
      %v3552 = vpack.c.b16 %v3362, %v3361
      %v3553 = vpack.c.b16 %v3364, %v3363
      %v3554 = vpack.c.b16 %v3366, %v3365
      %v3555 = vpack.c.b16 %v3368, %v3367
      %v3556 = vpack.c.b16 %v3370, %v3369
      %v3557 = vpack.c.b16 %v3372, %v3371
      %v3558 = vpack.c.b16 %v3374, %v3373
      %v3559 = vpack.c.b16 %v3376, %v3375
      %v3560 = vpack.c.b16 %v3378, %v3377
      %v3561 = vpack.c.b16 %v3380, %v3379
      %v3562 = vpack.c.b16 %v3382, %v3381
      %v3563 = vpack.c.b16 %v3384, %v3383
      %v3564 = vpack.c.b16 %v3386, %v3385
      %v3565 = vpack.c.b16 %v3388, %v3387
      %v3566 = vpack.c.b16 %v3390, %v3389
      %v3567 = vpack.c.b16 %v3392, %v3391
      %v3568 = vpack.c.b16 %v3394, %v3393
      %v3569 = vpack.c.b16 %v3396, %v3395
      %v3570 = vpack.c.b16 %v3398, %v3397
      %v3571 = vpack.c.b16 %v3400, %v3399
      %v3572 = vpack.c.b16 %v3402, %v3401
      %v3573 = vpack.c.b16 %v3404, %v3403
      %v3574 = vpack.c.b16 %v3406, %v3405
      %v3575 = vpack.c.b16 %v3408, %v3407
      %v3576 = vpack.c.b16 %v3410, %v3409
      %v3577 = vpack.c.b16 %v3412, %v3411
      %v3578 = vpack.c.b16 %v3414, %v3413
      %v3579 = vpack.c.b16 %v3416, %v3415
      %v3580 = vpack.c.b16 %v3418, %v3417
      %v3581 = vpack.c.b16 %v3420, %v3419
      %v3582 = vpack.c.b16 %v3422, %v3421
      %v3583 = vpack.c.b16 %v3424, %v3423
      %v3584 = vpack.c.b16 %v3426, %v3425
      %v3585 = vpack.c.b16 %v3428, %v3427
      %v3586 = vpack.c.b16 %v3430, %v3429
      %v3587 = vpack.c.b16 %v3432, %v3431
      %v3588 = vpack.c.b16 %v3434, %v3433
      %v3589 = vpack.c.b16 %v3436, %v3435
      %v3590 = vpack.c.b16 %v3438, %v3437
      %v3591 = vpack.c.b16 %v3440, %v3439
      %v3592 = vpack.c.b16 %v3442, %v3441
      %v3593 = vpack.c.b16 %v3444, %v3443
      %v3594 = vpack.c.b16 %v3446, %v3445
      %v3595 = vpack.c.b16 %v3448, %v3447
      %v3596 = vpack.c.b16 %v3450, %v3449
      %v3597 = vpack.c.b16 %v3452, %v3451
      %v3598 = vpack.c.b16 %v3454, %v3453
      %v3599 = vpack.c.b16 %v3456, %v3455
      %v3600 = vpack.c.b16 %v3458, %v3457
      %v3601 = vpack.c.b16 %v3460, %v3459
      %v3602 = vpack.c.b16 %v3462, %v3461
      %v3603 = vpack.c.b16 %v3464, %v3463
      %v3604 = vpack.c.b16 %v3466, %v3465
      %v3605 = vpack.c.b16 %v3468, %v3467
      %v3606 = vpack.c.b16 %v3470, %v3469
      %v3607 = vpack.c.b16 %v3472, %v3471
      %v3608 = vpack.c.b16 %v3474, %v3473
      %v3609 = vpack.c.b16 %v3476, %v3475
      %v3610 = vpack.c.b16 %v3478, %v3477
      %v3611 = vpack.c.b16 %v3480, %v3479
      %v3612 = vpack.c.b16 %v3482, %v3481
      %v3613 = vpack.c.b16 %v3484, %v3483
      %v3614 = vpack.c.b16 %v3486, %v3485
      %v3615 = vpack.c.b16 %v3488, %v3487
      %v3616 = vpack.c.b16 %v3490, %v3489
      %v3617 = vpack.c.b16 %v3492, %v3491
      %v3618 = vpack.c.b16 %v3494, %v3493
      %v3619 = vpack.c.b16 %v3496, %v3495
      %v3620 = vpack.c.b16 %v3498, %v3497
      %v3621 = vpack.c.b16 %v3500, %v3499
      %v3622 = vpack.c.b16 %v3502, %v3501
      %v3623 = vpack.c.b16 %v3504, %v3503
      %v3624 = vpack.c.b16 %v3506, %v3505
      %v3625 = vpack.c.b16 %v3508, %v3507
      %v3626 = vpack.c.b16 %v3510, %v3509
      %v3627 = vpack.c.b16 %v3512, %v3511
      %v3628 = vpack.c.b16 %v3514, %v3513
      %v3629 = vpack.c.b16 %v3516, %v3515
      %v3630 = vpack.c.b16 %v3518, %v3517
      %v3631 = vpack.c.b16 %v3520, %v3519
      %v3632 = vpack.c.b16 %v3522, %v3521
      %v3633 = vpack.c.b16 %v3524, %v3523
      %v3634 = vpack.c.b16 %v3526, %v3525
      %v3635 = vpack.c.b16 %v3528, %v3527
      %v3636 = vpack.c.b16 %v3530, %v3529
      %v3637 = vpack.c.b16 %v3532, %v3531
      %v3638 = vpack.c.b16 %v3534, %v3533
      %v3639 = vpack.c.b16 %v3536, %v3535
      %v3640 = vpack.c.b16 %v3538, %v3537
      %v3641 = vpack.c.b16 %v3540, %v3539
      %v3642 = vpack.c.b16 %v3542, %v3541
      %v3744 = vsel %vm1141, %v2915, 0
      %v3747 = vsel %vm1141, %v2921, 0
      %v3750 = vsel %vm1141, %v2927, 0
      %3752 = vmatprep.subr.bf16.mxu0 0
      %3753 = vmatpush1.bf16.msra.mxu0 %v3550
      %3754 = vmatprep.subr.bf16.mxu0 0
      %3755 = vmatpush1.bf16.msra.mxu0 %v3549
      %3756 = vmatprep.subr.bf16.mxu0 0
      %3757 = vmatpush1.bf16.msra.mxu0 %v3548
      %3758 = vmatprep.subr.bf16.mxu0 0
      %3759 = vmatpush1.bf16.msra.mxu0 %v3547
      %3760 = vmatprep.subr.bf16.mxu0 0
      %3761 = vmatpush1.bf16.msra.mxu0 %v3546
      %3762 = vmatprep.subr.bf16.mxu0 0
      %3763 = vmatpush1.bf16.msra.mxu0 %v3545
      %3764 = vmatprep.subr.bf16.mxu0 0
      %3765 = vmatpush1.bf16.msra.mxu0 %v3544
      %3766 = vmatprep.subr.bf16.mxu0 0
      %3767 = vmatpush1.bf16.msra.mxu0 %v3543
      %3768 = vmatprep.subr.bf16.mxu0 0
      %3769 = vmatpush2.bf16.msra.mxu0 %v3558
      %3770 = vmatprep.subr.bf16.mxu0 0
      %3771 = vmatpush2.bf16.msra.mxu0 %v3557
      %3772 = vmatprep.subr.bf16.mxu0 0
      %3773 = vmatpush2.bf16.msra.mxu0 %v3556
      %3774 = vmatprep.subr.bf16.mxu0 0
      %3775 = vmatpush2.bf16.msra.mxu0 %v3555
      %3776 = vmatprep.subr.bf16.mxu0 0
      %3777 = vmatpush2.bf16.msra.mxu0 %v3554
      %3778 = vmatprep.subr.bf16.mxu0 0
      %3779 = vmatpush2.bf16.msra.mxu0 %v3553
      %3780 = vmatprep.subr.bf16.mxu0 0
      %3781 = vmatpush2.bf16.msra.mxu0 %v3552
      %3782 = vmatprep.subr.bf16.mxu0 0
      %3783 = vmatpush2.bf16.msra.mxu0 %v3551
      %3784 = vmatprep.mubr.bf16.mxu0 %v1190
      %3785 = vmatmul.mubr.bf16.gmra.mxu0 %v1189
      %v3786 = vpop.f32.mrf.mxu0
      %v3787 = vadd.f32 %v3141, %v3786
      %v3788 = vpop.f32.mrf.mxu0
      %v3789 = vpop.f32.mrf.mxu0
      %v3790 = vadd.f32 %v3141, %v3789
      %v3791 = vpop.f32.mrf.mxu0
      %3792 = vmatprep.mubr.bf16.mxu0 %v2909
      %3793 = vmatmul.mubr.bf16.gmra.mxu0 %v2908
      %v3794 = vpop.f32.mrf.mxu0
      %v3795 = vadd.f32 %v3141, %v3794
      %v3796 = vpop.f32.mrf.mxu0
      %v3797 = vpop.f32.mrf.mxu0
      %v3798 = vadd.f32 %v3141, %v3797
      %v3799 = vpop.f32.mrf.mxu0
      %3800 = vmatprep.mubr.bf16.mxu0 %v2914
      %3801 = vmatmul.mubr.bf16.gmra.mxu0 %v2913
      %v3802 = vpop.f32.mrf.mxu0
      %v3803 = vadd.f32 %v3141, %v3802
      %v3804 = vpop.f32.mrf.mxu0
      %v3805 = vpop.f32.mrf.mxu0
      %v3806 = vadd.f32 %v3141, %v3805
      %v3807 = vpop.f32.mrf.mxu0
      %3808 = vmatprep.mubr.bf16.mxu0 %v2929
      %3809 = vmatmul.mubr.bf16.gmra.mxu0 %v2928
      %v3810 = vpop.f32.mrf.mxu0
      %v3811 = vadd.f32 %v3141, %v3810
      %v3812 = vpop.f32.mrf.mxu0
      %v3813 = vpop.f32.mrf.mxu0
      %v3814 = vpop.f32.mrf.mxu0
      %3815 = vdwg.mxu0
      %3816 = vmatprep.subr.bf16.mxu0 0
      %3817 = vmatpush1.bf16.msra.mxu0 %v3566
      %3818 = vmatprep.subr.bf16.mxu0 0
      %3819 = vmatpush1.bf16.msra.mxu0 %v3565
      %3820 = vmatprep.subr.bf16.mxu0 0
      %3821 = vmatpush1.bf16.msra.mxu0 %v3564
      %3822 = vmatprep.subr.bf16.mxu0 0
      %3823 = vmatpush1.bf16.msra.mxu0 %v3563
      %3824 = vmatprep.subr.bf16.mxu0 0
      %3825 = vmatpush1.bf16.msra.mxu0 %v3562
      %3826 = vmatprep.subr.bf16.mxu0 0
      %3827 = vmatpush1.bf16.msra.mxu0 %v3561
      %3828 = vmatprep.subr.bf16.mxu0 0
      %3829 = vmatpush1.bf16.msra.mxu0 %v3560
      %3830 = vmatprep.subr.bf16.mxu0 0
      %3831 = vmatpush1.bf16.msra.mxu0 %v3559
      %3832 = vmatprep.subr.bf16.mxu0 0
      %3833 = vmatpush2.bf16.msra.mxu0 %v3574
      %3834 = vmatprep.subr.bf16.mxu0 0
      %3835 = vmatpush2.bf16.msra.mxu0 %v3573
      %3836 = vmatprep.subr.bf16.mxu0 0
      %3837 = vmatpush2.bf16.msra.mxu0 %v3572
      %3838 = vmatprep.subr.bf16.mxu0 0
      %3839 = vmatpush2.bf16.msra.mxu0 %v3571
      %3840 = vmatprep.subr.bf16.mxu0 0
      %3841 = vmatpush2.bf16.msra.mxu0 %v3570
      %3842 = vmatprep.subr.bf16.mxu0 0
      %3843 = vmatpush2.bf16.msra.mxu0 %v3569
      %3844 = vmatprep.subr.bf16.mxu0 0
      %3845 = vmatpush2.bf16.msra.mxu0 %v3568
      %3846 = vmatprep.subr.bf16.mxu0 0
      %3847 = vmatpush2.bf16.msra.mxu0 %v3567
      %3848 = vmatprep.mubr.bf16.mxu0 %v2906
      %3849 = vmatmul.mubr.bf16.gmra.mxu0 %v2905
      %v3850 = vpop.f32.mrf.mxu0
      %v3851 = vadd.f32 %v3787, %v3850
      %v3852 = vpop.f32.mrf.mxu0
      %v3853 = vpop.f32.mrf.mxu0
      %v3854 = vadd.f32 %v3790, %v3853
      %v3855 = vpop.f32.mrf.mxu0
      %3856 = vmatprep.mubr.bf16.mxu0 %v2911
      %3857 = vmatmul.mubr.bf16.gmra.mxu0 %v2910
      %v3858 = vpop.f32.mrf.mxu0
      %v3859 = vadd.f32 %v3795, %v3858
      %v3860 = vpop.f32.mrf.mxu0
      %v3861 = vpop.f32.mrf.mxu0
      %v3862 = vadd.f32 %v3798, %v3861
      %v3863 = vpop.f32.mrf.mxu0
      %3864 = vmatprep.mubr.bf16.mxu0 %v2917
      %3865 = vmatmul.mubr.bf16.gmra.mxu0 %v2916
      %v3866 = vpop.f32.mrf.mxu0
      %v3867 = vadd.f32 %v3803, %v3866
      %v3868 = vpop.f32.mrf.mxu0
      %v3869 = vpop.f32.mrf.mxu0
      %v3870 = vadd.f32 %v3806, %v3869
      %v3871 = vpop.f32.mrf.mxu0
      %3872 = vmatprep.mubr.bf16.mxu0 %v2931
      %3873 = vmatmul.mubr.bf16.gmra.mxu0 %v2930
      %v3874 = vpop.f32.mrf.mxu0
      %v3875 = vadd.f32 %v3811, %v3874
      %v3876 = vpop.f32.mrf.mxu0
      %v3877 = vpop.f32.mrf.mxu0
      %v3878 = vpop.f32.mrf.mxu0
      %3879 = vdwg.mxu0
      %3880 = vmatprep.subr.bf16.mxu0 0
      %3881 = vmatpush1.bf16.msra.mxu0 %v3582
      %3882 = vmatprep.subr.bf16.mxu0 0
      %3883 = vmatpush1.bf16.msra.mxu0 %v3581
      %3884 = vmatprep.subr.bf16.mxu0 0
      %3885 = vmatpush1.bf16.msra.mxu0 %v3580
      %3886 = vmatprep.subr.bf16.mxu0 0
      %3887 = vmatpush1.bf16.msra.mxu0 %v3579
      %3888 = vmatprep.subr.bf16.mxu0 0
      %3889 = vmatpush1.bf16.msra.mxu0 %v3578
      %3890 = vmatprep.subr.bf16.mxu0 0
      %3891 = vmatpush1.bf16.msra.mxu0 %v3577
      %3892 = vmatprep.subr.bf16.mxu0 0
      %3893 = vmatpush1.bf16.msra.mxu0 %v3576
      %3894 = vmatprep.subr.bf16.mxu0 0
      %3895 = vmatpush1.bf16.msra.mxu0 %v3575
      %3896 = vmatprep.subr.bf16.mxu0 0
      %3897 = vmatpush2.bf16.msra.mxu0 %v3590
      %3898 = vmatprep.subr.bf16.mxu0 0
      %3899 = vmatpush2.bf16.msra.mxu0 %v3589
      %3900 = vmatprep.subr.bf16.mxu0 0
      %3901 = vmatpush2.bf16.msra.mxu0 %v3588
      %3902 = vmatprep.subr.bf16.mxu0 0
      %3903 = vmatpush2.bf16.msra.mxu0 %v3587
      %3904 = vmatprep.subr.bf16.mxu0 0
      %3905 = vmatpush2.bf16.msra.mxu0 %v3586
      %3906 = vmatprep.subr.bf16.mxu0 0
      %3907 = vmatpush2.bf16.msra.mxu0 %v3585
      %3908 = vmatprep.subr.bf16.mxu0 0
      %3909 = vmatpush2.bf16.msra.mxu0 %v3584
      %3910 = vmatprep.subr.bf16.mxu0 0
      %3911 = vmatpush2.bf16.msra.mxu0 %v3583
      %3912 = vmatprep.mubr.bf16.mxu0 %v2908
      %3913 = vmatmul.mubr.bf16.gmra.mxu0 %v2907
      %v3914 = vpop.f32.mrf.mxu0
      %v3915 = vadd.f32 %v3851, %v3914
      %v3916 = vpop.f32.mrf.mxu0
      %v3917 = vpop.f32.mrf.mxu0
      %v3918 = vadd.f32 %v3854, %v3917
      %v3919 = vpop.f32.mrf.mxu0
      %3920 = vmatprep.mubr.bf16.mxu0 %v2913
      %3921 = vmatmul.mubr.bf16.gmra.mxu0 %v2912
      %v3922 = vpop.f32.mrf.mxu0
      %v3923 = vadd.f32 %v3859, %v3922
      %v3924 = vpop.f32.mrf.mxu0
      %v3925 = vpop.f32.mrf.mxu0
      %v3926 = vadd.f32 %v3862, %v3925
      %v3927 = vpop.f32.mrf.mxu0
      %3928 = vmatprep.mubr.bf16.mxu0 %v2919
      %3929 = vmatmul.mubr.bf16.gmra.mxu0 %v2918
      %v3930 = vpop.f32.mrf.mxu0
      %v3931 = vadd.f32 %v3867, %v3930
      %v3932 = vpop.f32.mrf.mxu0
      %v3933 = vpop.f32.mrf.mxu0
      %v3934 = vadd.f32 %v3870, %v3933
      %v3935 = vpop.f32.mrf.mxu0
      %3936 = vmatprep.mubr.bf16.mxu0 %v2933
      %3937 = vmatmul.mubr.bf16.gmra.mxu0 %v2932
      %v3938 = vpop.f32.mrf.mxu0
      %v3939 = vadd.f32 %v3875, %v3938
      %v3940 = vpop.f32.mrf.mxu0
      %v3941 = vpop.f32.mrf.mxu0
      %v3942 = vpop.f32.mrf.mxu0
      %3943 = vdwg.mxu0
      %3944 = vmatprep.subr.bf16.mxu0 0
      %3945 = vmatpush1.bf16.msra.mxu0 %v3598
      %3946 = vmatprep.subr.bf16.mxu0 0
      %3947 = vmatpush1.bf16.msra.mxu0 %v3597
      %3948 = vmatprep.subr.bf16.mxu0 0
      %3949 = vmatpush1.bf16.msra.mxu0 %v3596
      %3950 = vmatprep.subr.bf16.mxu0 0
      %3951 = vmatpush1.bf16.msra.mxu0 %v3595
      %3952 = vmatprep.subr.bf16.mxu0 0
      %3953 = vmatpush1.bf16.msra.mxu0 %v3594
      %3954 = vmatprep.subr.bf16.mxu0 0
      %3955 = vmatpush1.bf16.msra.mxu0 %v3593
      %3956 = vmatprep.subr.bf16.mxu0 0
      %3957 = vmatpush1.bf16.msra.mxu0 %v3592
      %3958 = vmatprep.subr.bf16.mxu0 0
      %3959 = vmatpush1.bf16.msra.mxu0 %v3591
      %3960 = vmatprep.subr.bf16.mxu0 0
      %3961 = vmatpush2.bf16.msra.mxu0 %v3606
      %3962 = vmatprep.subr.bf16.mxu0 0
      %3963 = vmatpush2.bf16.msra.mxu0 %v3605
      %3964 = vmatprep.subr.bf16.mxu0 0
      %3965 = vmatpush2.bf16.msra.mxu0 %v3604
      %3966 = vmatprep.subr.bf16.mxu0 0
      %3967 = vmatpush2.bf16.msra.mxu0 %v3603
      %3968 = vmatprep.subr.bf16.mxu0 0
      %3969 = vmatpush2.bf16.msra.mxu0 %v3602
      %3970 = vmatprep.subr.bf16.mxu0 0
      %3971 = vmatpush2.bf16.msra.mxu0 %v3601
      %3972 = vmatprep.subr.bf16.mxu0 0
      %3973 = vmatpush2.bf16.msra.mxu0 %v3600
      %3974 = vmatprep.subr.bf16.mxu0 0
      %3975 = vmatpush2.bf16.msra.mxu0 %v3599
      %3976 = vmatprep.mubr.bf16.mxu0 %v2910
      %3977 = vmatmul.mubr.bf16.gmra.mxu0 %v2909
      %v3978 = vpop.f32.mrf.mxu0
      %v3979 = vadd.f32 %v3915, %v3978
      %v3980 = vpop.f32.mrf.mxu0
      %v3981 = vpop.f32.mrf.mxu0
      %v3982 = vadd.f32 %v3918, %v3981
      %v3983 = vpop.f32.mrf.mxu0
      %3984 = vmatprep.mubr.bf16.mxu0 %v2916
      %3985 = vmatmul.mubr.bf16.gmra.mxu0 %v2914
      %v3986 = vpop.f32.mrf.mxu0
      %v3987 = vadd.f32 %v3923, %v3986
      %v3988 = vpop.f32.mrf.mxu0
      %v3989 = vpop.f32.mrf.mxu0
      %v3990 = vadd.f32 %v3926, %v3989
      %v3991 = vpop.f32.mrf.mxu0
      %3992 = vmatprep.mubr.bf16.mxu0 %v2922
      %3993 = vmatmul.mubr.bf16.gmra.mxu0 %v2920
      %v3994 = vpop.f32.mrf.mxu0
      %v3995 = vadd.f32 %v3931, %v3994
      %v3996 = vpop.f32.mrf.mxu0
      %v3997 = vpop.f32.mrf.mxu0
      %v3998 = vadd.f32 %v3934, %v3997
      %v3999 = vpop.f32.mrf.mxu0
      %4000 = vmatprep.mubr.bf16.mxu0 %v2935
      %4001 = vmatmul.mubr.bf16.gmra.mxu0 %v2934
      %v4002 = vpop.f32.mrf.mxu0
      %v4003 = vadd.f32 %v3939, %v4002
      %v4004 = vpop.f32.mrf.mxu0
      %v4005 = vpop.f32.mrf.mxu0
      %v4006 = vpop.f32.mrf.mxu0
      %4007 = vdwg.mxu0
      %4008 = vmatprep.subr.bf16.mxu0 0
      %4009 = vmatpush1.bf16.msra.mxu0 %v3614
      %4010 = vmatprep.subr.bf16.mxu0 0
      %4011 = vmatpush1.bf16.msra.mxu0 %v3613
      %4012 = vmatprep.subr.bf16.mxu0 0
      %4013 = vmatpush1.bf16.msra.mxu0 %v3612
      %4014 = vmatprep.subr.bf16.mxu0 0
      %4015 = vmatpush1.bf16.msra.mxu0 %v3611
      %4016 = vmatprep.subr.bf16.mxu0 0
      %4017 = vmatpush1.bf16.msra.mxu0 %v3610
      %4018 = vmatprep.subr.bf16.mxu0 0
      %4019 = vmatpush1.bf16.msra.mxu0 %v3609
      %4020 = vmatprep.subr.bf16.mxu0 0
      %4021 = vmatpush1.bf16.msra.mxu0 %v3608
      %4022 = vmatprep.subr.bf16.mxu0 0
      %4023 = vmatpush1.bf16.msra.mxu0 %v3607
      %4024 = vmatprep.subr.bf16.mxu0 0
      %4025 = vmatpush2.bf16.msra.mxu0 %v3622
      %4026 = vmatprep.subr.bf16.mxu0 0
      %4027 = vmatpush2.bf16.msra.mxu0 %v3621
      %4028 = vmatprep.subr.bf16.mxu0 0
      %4029 = vmatpush2.bf16.msra.mxu0 %v3620
      %4030 = vmatprep.subr.bf16.mxu0 0
      %4031 = vmatpush2.bf16.msra.mxu0 %v3619
      %4032 = vmatprep.subr.bf16.mxu0 0
      %4033 = vmatpush2.bf16.msra.mxu0 %v3618
      %4034 = vmatprep.subr.bf16.mxu0 0
      %4035 = vmatpush2.bf16.msra.mxu0 %v3617
      %4036 = vmatprep.subr.bf16.mxu0 0
      %4037 = vmatpush2.bf16.msra.mxu0 %v3616
      %4038 = vmatprep.subr.bf16.mxu0 0
      %4039 = vmatpush2.bf16.msra.mxu0 %v3615
      %4040 = vmatprep.mubr.bf16.mxu0 %v2912
      %4041 = vmatmul.mubr.bf16.gmra.mxu0 %v2911
      %v4042 = vpop.f32.mrf.mxu0
      %v4043 = vadd.f32 %v3979, %v4042
      %v4044 = vpop.f32.mrf.mxu0
      %v4045 = vpop.f32.mrf.mxu0
      %v4046 = vadd.f32 %v3982, %v4045
      %v4047 = vpop.f32.mrf.mxu0
      %4048 = vmatprep.mubr.bf16.mxu0 %v2918
      %4049 = vmatmul.mubr.bf16.gmra.mxu0 %v2917
      %v4050 = vpop.f32.mrf.mxu0
      %v4051 = vadd.f32 %v3987, %v4050
      %v4052 = vpop.f32.mrf.mxu0
      %v4053 = vpop.f32.mrf.mxu0
      %v4054 = vadd.f32 %v3990, %v4053
      %v4055 = vpop.f32.mrf.mxu0
      %4056 = vmatprep.mubr.bf16.mxu0 %v2924
      %4057 = vmatmul.mubr.bf16.gmra.mxu0 %v2923
      %v4058 = vpop.f32.mrf.mxu0
      %v4059 = vadd.f32 %v3995, %v4058
      %v4060 = vpop.f32.mrf.mxu0
      %v4061 = vpop.f32.mrf.mxu0
      %v4062 = vadd.f32 %v3998, %v4061
      %v4063 = vpop.f32.mrf.mxu0
      %4064 = vmatprep.mubr.bf16.mxu0 %v1223
      %4065 = vmatmul.mubr.bf16.gmra.mxu0 %v1222
      %v4066 = vpop.f32.mrf.mxu0
      %v4067 = vadd.f32 %v4003, %v4066
      %v4068 = vpop.f32.mrf.mxu0
      %v4069 = vpop.f32.mrf.mxu0
      %v4070 = vpop.f32.mrf.mxu0
      %4071 = vdwg.mxu0
      %4072 = vmatprep.subr.bf16.mxu0 0
      %4073 = vmatpush1.bf16.msra.mxu0 %v3630
      %4074 = vmatprep.subr.bf16.mxu0 0
      %4075 = vmatpush1.bf16.msra.mxu0 %v3629
      %4076 = vmatprep.subr.bf16.mxu0 0
      %4077 = vmatpush1.bf16.msra.mxu0 %v3628
      %4078 = vmatprep.subr.bf16.mxu0 0
      %4079 = vmatpush1.bf16.msra.mxu0 %v3627
      %4080 = vmatprep.subr.bf16.mxu0 0
      %4081 = vmatpush1.bf16.msra.mxu0 %v3626
      %4082 = vmatprep.subr.bf16.mxu0 0
      %4083 = vmatpush1.bf16.msra.mxu0 %v3625
      %4084 = vmatprep.subr.bf16.mxu0 0
      %4085 = vmatpush1.bf16.msra.mxu0 %v3624
      %4086 = vmatprep.subr.bf16.mxu0 0
      %4087 = vmatpush1.bf16.msra.mxu0 %v3623
      %4088 = vmatprep.subr.bf16.mxu0 0
      %4089 = vmatpush2.bf16.msra.mxu0 %v3638
      %4090 = vmatprep.subr.bf16.mxu0 0
      %4091 = vmatpush2.bf16.msra.mxu0 %v3637
      %4092 = vmatprep.subr.bf16.mxu0 0
      %4093 = vmatpush2.bf16.msra.mxu0 %v3636
      %4094 = vmatprep.subr.bf16.mxu0 0
      %4095 = vmatpush2.bf16.msra.mxu0 %v3635
      %4096 = vmatprep.subr.bf16.mxu0 0
      %4097 = vmatpush2.bf16.msra.mxu0 %v3634
      %4098 = vmatprep.subr.bf16.mxu0 0
      %4099 = vmatpush2.bf16.msra.mxu0 %v3633
      %4100 = vmatprep.subr.bf16.mxu0 0
      %4101 = vmatpush2.bf16.msra.mxu0 %v3632
      %4102 = vmatprep.subr.bf16.mxu0 0
      %4103 = vmatpush2.bf16.msra.mxu0 %v3631
      %4104 = vmatprep.mubr.bf16.mxu0 %v2914
      %4105 = vmatmul.mubr.bf16.gmra.mxu0 %v2913
      %v4106 = vpop.f32.mrf.mxu0
      %v4107 = vadd.f32 %v4043, %v4106
      %v4108 = vpop.f32.mrf.mxu0
      %v4109 = vpop.f32.mrf.mxu0
      %v4110 = vadd.f32 %v4046, %v4109
      %v4111 = vpop.f32.mrf.mxu0
      %4112 = vmatprep.mubr.bf16.mxu0 %v2920
      %4113 = vmatmul.mubr.bf16.gmra.mxu0 %v2919
      %v4114 = vpop.f32.mrf.mxu0
      %v4115 = vadd.f32 %v4051, %v4114
      %v4116 = vpop.f32.mrf.mxu0
      %v4117 = vpop.f32.mrf.mxu0
      %v4118 = vadd.f32 %v4054, %v4117
      %v4119 = vpop.f32.mrf.mxu0
      %4120 = vmatprep.mubr.bf16.mxu0 %v2926
      %4121 = vmatmul.mubr.bf16.gmra.mxu0 %v2925
      %v4122 = vpop.f32.mrf.mxu0
      %v4123 = vadd.f32 %v4059, %v4122
      %v4124 = vpop.f32.mrf.mxu0
      %v4125 = vpop.f32.mrf.mxu0
      %v4126 = vadd.f32 %v4062, %v4125
      %v4127 = vpop.f32.mrf.mxu0
      %4128 = vmatprep.mubr.bf16.mxu0 %v1190
      %4129 = vmatmul.mubr.bf16.gmra.mxu0 %v1189
      %v4130 = vpop.f32.mrf.mxu0
      %v4131 = vadd.f32 %v4067, %v4130
      %v4132 = vpop.f32.mrf.mxu0
      %v4133 = vpop.f32.mrf.mxu0
      %v4134 = vpop.f32.mrf.mxu0
      %4135 = vdwg.mxu0
      %4136 = vmatprep.subr.bf16.mxu0 0
      %4137 = vmatpush1.bf16.msra.mxu0 0
      %4138 = vmatprep.subr.bf16.mxu0 0
      %4139 = vmatpush1.bf16.msra.mxu0 0
      %4140 = vmatprep.subr.bf16.mxu0 0
      %4141 = vmatpush1.bf16.msra.mxu0 0
      %4142 = vmatprep.subr.bf16.mxu0 0
      %4143 = vmatpush1.bf16.msra.mxu0 0
      %4144 = vmatprep.subr.bf16.mxu0 0
      %4145 = vmatpush1.bf16.msra.mxu0 %v3642
      %4146 = vmatprep.subr.bf16.mxu0 0
      %4147 = vmatpush1.bf16.msra.mxu0 %v3641
      %4148 = vmatprep.subr.bf16.mxu0 0
      %4149 = vmatpush1.bf16.msra.mxu0 %v3640
      %4150 = vmatprep.subr.bf16.mxu0 0
      %4151 = vmatpush1.bf16.msra.mxu0 %v3639
      %4152 = vmatprep.subr.bf16.mxu0 0
      %4153 = vmatpush2.bf16.msra.mxu0 0
      %4154 = vmatprep.subr.bf16.mxu0 0
      %4155 = vmatpush2.bf16.msra.mxu0 0
      %4156 = vmatprep.subr.bf16.mxu0 0
      %4157 = vmatpush2.bf16.msra.mxu0 0
      %4158 = vmatprep.subr.bf16.mxu0 0
      %4159 = vmatpush2.bf16.msra.mxu0 0
      %4160 = vmatprep.subr.bf16.mxu0 0
      %4161 = vmatpush2.bf16.msra.mxu0 0
      %4162 = vmatprep.subr.bf16.mxu0 0
      %4163 = vmatpush2.bf16.msra.mxu0 0
      %4164 = vmatprep.subr.bf16.mxu0 0
      %4165 = vmatpush2.bf16.msra.mxu0 0
      %4166 = vmatprep.subr.bf16.mxu0 0
      %4167 = vmatpush2.bf16.msra.mxu0 0
      %4168 = vmatprep.mubr.bf16.mxu0 0
      %4169 = vmatmul.mubr.bf16.gmra.mxu0 %v3744
      %v4170 = vpop.f32.mrf.mxu0
      %v4171 = vadd.f32 %v4107, %v4170
      %v4172 = vpop.f32.mrf.mxu0
      %v4173 = vpop.f32.mrf.mxu0
      %v4174 = vadd.f32 %v4110, %v4173
      %v4175 = vpop.f32.mrf.mxu0
      %4176 = vmatprep.mubr.bf16.mxu0 0
      %4177 = vmatmul.mubr.bf16.gmra.mxu0 %v3747
      %v4178 = vpop.f32.mrf.mxu0
      %v4179 = vadd.f32 %v4115, %v4178
      %v4180 = vpop.f32.mrf.mxu0
      %v4181 = vpop.f32.mrf.mxu0
      %v4182 = vadd.f32 %v4118, %v4181
      %v4183 = vpop.f32.mrf.mxu0
      %4184 = vmatprep.mubr.bf16.mxu0 0
      %4185 = vmatmul.mubr.bf16.gmra.mxu0 %v3750
      %v4186 = vpop.f32.mrf.mxu0
      %v4187 = vadd.f32 %v4123, %v4186
      %v4188 = vpop.f32.mrf.mxu0
      %v4189 = vpop.f32.mrf.mxu0
      %v4190 = vadd.f32 %v4126, %v4189
      %v4191 = vpop.f32.mrf.mxu0
      %4192 = vmatprep.mubr.bf16.mxu0 0
      %4193 = vmatmul.mubr.bf16.gmra.mxu0 %v2042
      %v4194 = vpop.f32.mrf.mxu0
      %v4195 = vadd.f32 %v4131, %v4194
      %v4196 = vpop.f32.mrf.mxu0
      %v4197 = vpop.f32.mrf.mxu0
      %v4198 = vpop.f32.mrf.mxu0
      %4199 = vdwg.mxu0
      %4200 = vst [vmem:[%s325] sm:$0xff] %v4171
      %4201 = vst [vmem:[%s325 + $0x8] sm:$0xff] %v4174
      %4202 = vst [vmem:[%s325 + $0x10] sm:$0xff] %v4179
      %4203 = vst [vmem:[%s325 + $0x18] sm:$0xff] %v4182
      %4204 = vst [vmem:[%s325 + $0x20] sm:$0xff] %v4187
      %4205 = vst [vmem:[%s325 + $0x28] sm:$0xff] %v4190
      %4206 = vst [vmem:[%s325 + $0x30] sm:$0xff] %v4195
      %p4207 = scmp.lt.s32.totalorder %s19, 1
      %s4208 = scalar_select %p4207, %s19, 1
      %s4209 = smul.addr %s4208, 7
      %s4210 = smul.addr %s4209, 8
      %s4211 = scalar_lea.vmem %s8, %s4210
      // Predicated region
      $region53: #{local_fine_net_forward.1} parent=51 // pred_check
        %p4212 = pneg %p215
      $region54: #{local_fine_net_forward.1} parent=51 // pred_check_branch
        %4214 = sbr.rel (%p4212) target = $region56
      $region55: #{local_fine_net_forward.1} parent=51 // pred_region
        _
      $region56: #{local_fine_net_forward.1} parent=51 // pred_fallthru
        _
    $region52: #{local_fine_net_forward.1} parent=5 // pred_fallthru
      _
    %p4215 = scmp.le.s32.totalorder 2, %s14
    // Predicated region
    $region57: #{local_fine_net_forward.1} parent=5 // pred_check
      %p4216 = pneg %p4215
    $region58: #{local_fine_net_forward.1} parent=5 // pred_check_branch
      %4218 = sbr.rel (%p4216) target = $region60
    $region59: #{local_fine_net_forward.1} parent=5 // pred_region
      %s4219 = ssub.s32 %s14, 2
      // Predicated region
      $region61: #{local_fine_net_forward.1} parent=59 // pred_check
        %p4220 = pneg %p221
      $region62: #{local_fine_net_forward.1} parent=59 // pred_check_branch
        %4222 = sbr.rel (%p4220) target = $region64
      $region63: #{local_fine_net_forward.1} parent=59 // pred_region
        %p4223 = scmp.lt.s32.totalorder %s20, 1
        %s4224 = scalar_select %p4223, %s20, 1
        %s4225 = smul.addr %s4224, 7
        %s4226 = smul.addr %s4225, 8
        %s4227 = scalar_lea.vmem %s8, %s4226
      $region64: #{local_fine_net_forward.1} parent=59 // pred_fallthru
        _
    $region60: #{local_fine_net_forward.1} parent=5 // pred_fallthru
      _
  $region6: #{local_fine_net_forward.1} parent=0 // loop_footer
    %s18 = sadd.s32 1, %s14
  $region7: #{local_fine_net_forward.1} parent=0 // loop_footer_branch
    %13 = sbr.rel target = $region3
  $region8: #{local_fine_net_forward.1} parent=0 // loop_exit
    _

</llo_original>
